<compile_context>
chip_gen: v5e
topology: v5e:2x2
jax: 0.10.0
libtpu: 0.0.40
codegen_flags: <defaults>
</compile_context>

<pallas_src>
import functools

import jax
import jax.numpy as jnp
from jax import lax
from jax.experimental import pallas as pl
from jax.experimental.pallas import tpu as pltpu


# ----------------------------------------------------------------------------
# Pallas kernel: h-dependent half of one PM_Cell layer over a time chunk.
# grid = (B, T // Tc); hidden state carried in a VMEM scratch across chunks.
# ----------------------------------------------------------------------------
def pm_cell_chunk_kernel(h0_ref, stream_ref,
                         wgh_ref, wuh_ref,
                         eg_exp_ref, rg_red_ref, eu_exp_ref, ru_red_ref,
                         out_ref, h_scr,
                         *, t_chunk, hidden, cheb_k, n_nodes, emb_dim):
    chunk = pl.program_id(1)

    # Reset the recurrent state at the start of each batch element's sequence.
    @pl.when(chunk == 0)
    def _():
        h_scr[...] = h0_ref[...]

    N, D, H = n_nodes, emb_dim, hidden
    Og, Ou = 2 * H, H

    # Packed lane layout of the streamed block: [pre_g | pre_u | S_g | S_u | e_g | e_u]
    o_pg = 0
    o_pu = o_pg + Og
    o_sg = o_pu + Ou
    o_su = o_sg + N
    o_eg = o_su + N
    o_eu = o_eg + D

    # Resident (constant across the whole sequence) bf16 weights.
    wgh = wgh_ref[...]          # [K, H, D*Og]
    wuh = wuh_ref[...]          # [K, H, D*Ou]
    eg_exp = eg_exp_ref[...]    # [D, D*Og]
    rg_red = rg_red_ref[...]    # [D*Og, Og]
    eu_exp = eu_exp_ref[...]    # [D, D*Ou]
    ru_red = ru_red_ref[...]    # [D*Ou, Ou]

    def h_path(h_f32, s_bf16, e_bf16, wh, expand, reduce_m):
        """h-side of the time-modulated graph conv (x-side is precomputed).

        h_f32: [N, H] f32,  s: [N, N] bf16,  e: [N, D] bf16,
        wh: [K, H, D*O] bf16, expand: [D, D*O] bf16, reduce_m: [D*O, O] bf16.
        Returns [N, O] f32 (no bias — bias is folded into the pre-activation).
        """
        hb = h_f32.astype(jnp.bfloat16)
        z = jnp.dot(hb, wh[0], preferred_element_type=jnp.float32)
        if cheb_k >= 2:
            th_prev = hb
            th_cur = jnp.dot(s_bf16, hb,
                             preferred_element_type=jnp.float32).astype(jnp.bfloat16)
            z = z + jnp.dot(th_cur, wh[1], preferred_element_type=jnp.float32)
            for k in range(2, cheb_k):   # Chebyshev recursion on features.
                th_nxt = (2.0 * jnp.dot(s_bf16, th_cur,
                                        preferred_element_type=jnp.float32)
                          - th_prev.astype(jnp.float32)).astype(jnp.bfloat16)
                z = z + jnp.dot(th_nxt, wh[k], preferred_element_type=jnp.float32)
                th_prev, th_cur = th_cur, th_nxt
        # Embed-dim contraction out[n,o] = sum_d e[n,d] * z[n, d*O+o],
        # done as (z * (e @ E)) @ R.  (Static D-group slices would only be
        # lane-aligned for O % 128 == 0 — not the case at this config.)
        e_full = jnp.dot(e_bf16, expand, preferred_element_type=jnp.float32)
        return jnp.dot((z * e_full).astype(jnp.bfloat16), reduce_m,
                       preferred_element_type=jnp.float32)

    def step(t, h):
        blk = stream_ref[t]                                   # [N, C] bf16
        pre_g = blk[:, o_pg:o_pg + Og].astype(jnp.float32)    # x-path + bias (gate)
        pre_u = blk[:, o_pu:o_pu + Ou].astype(jnp.float32)    # x-path + bias (cand.)
        s_g = blk[:, o_sg:o_sg + N]
        s_u = blk[:, o_su:o_su + N]
        e_g = blk[:, o_eg:o_eg + D]
        e_u = blk[:, o_eu:o_eu + D]

        # --- gate ------------------------------------------------------------
        zr = jax.nn.sigmoid(pre_g + h_path(h, s_g, e_g, wgh, eg_exp, rg_red))
        zg = zr[:, :H]
        rg = zr[:, H:]

        # --- candidate ---------------------------------------------------------
        hc = jnp.tanh(pre_u + h_path(zg * h, s_u, e_u, wuh, eu_exp, ru_red))

        h_new = rg * h + (1.0 - rg) * hc
        out_ref[t] = h_new.astype(out_ref.dtype)
        return h_new

    h_final = lax.fori_loop(0, t_chunk, step, h_scr[...], unroll=True)
    h_scr[...] = h_final


# ----------------------------------------------------------------------------
# Plain-JAX precompute (fully parallel over B, T — off the serial path).
# ----------------------------------------------------------------------------
def _adj_and_emb(t_emb, n_emb, wt):
    """Time-modulated node embedding e and row-softmax adjacency S (f32)."""
    te = jnp.einsum('btc,cd->btd', t_emb, wt)                 # [B,T,D]
    e = jnp.tanh(n_emb[None, None] * te[:, :, None, :])       # [B,T,N,D]
    a = jax.nn.relu(jnp.einsum('btnd,btmd->btnm', e, e))      # [B,T,N,N]
    s = jax.nn.softmax(a, axis=-1)                            # f32 softmax
    return s, e


def _x_path_pre(x_seq, s, e, wx, bpool):
    """pre = contract_e( sum_k T_k(S) x @ Wx[k] ) + e @ bpool  -> [B,T,N,O]."""
    K = wx.shape[0]
    D, O = bpool.shape
    z = jnp.einsum('btni,io->btno', x_seq, wx[0])
    if K >= 2:
        t_prev = x_seq
        t_cur = jnp.einsum('btnm,btmi->btni', s, x_seq)
        z = z + jnp.einsum('btni,io->btno', t_cur, wx[1])
        for k in range(2, K):
            t_nxt = 2.0 * jnp.einsum('btnm,btmi->btni', s, t_cur) - t_prev
            z = z + jnp.einsum('btni,io->btno', t_nxt, wx[k])
            t_prev, t_cur = t_cur, t_nxt
    B, T, N, _ = x_seq.shape
    z5 = z.reshape(B, T, N, D, O)                              # z[..., d*O+o]
    pre = jnp.einsum('btnd,btndo->btno', e, z5)
    pre = pre + jnp.einsum('btnd,do->btno', e, bpool)
    return pre


def _pick_chunk(T, cap=16):
    """Largest divisor of T not exceeding `cap` (keeps per-chunk VMEM modest)."""
    for c in range(min(T, cap), 0, -1):
        if T % c == 0:
            return c
    return 1


# ----------------------------------------------------------------------------
# One PM_Cell layer over the full sequence: precompute + one pallas_call.
# ----------------------------------------------------------------------------
def pm_layer_forward(x_seq, h0, t_emb, n_emb, params, *, cheb_k, t_chunk=None):
    """x_seq: [B, T, N, din], h0: [B, N, H] -> outputs [B, T, N, H] (f32)."""
    B, T, N, _ = x_seq.shape
    H = h0.shape[-1]
    D = n_emb.shape[-1]
    Og, Ou = 2 * H, H

    # ---- h-independent precompute (adjacency, embeddings, x-path + bias) ----
    s_g, e_g = _adj_and_emb(t_emb, n_emb, params['wt_g'])
    s_u, e_u = _adj_and_emb(t_emb, n_emb, params['wt_u'])
    pre_g = _x_path_pre(x_seq, s_g, e_g, params['wgx'], params['bp_g'])   # [B,T,N,2H]
    pre_u = _x_path_pre(x_seq, s_u, e_u, params['wux'], params['bp_u'])   # [B,T,N,H]

    # One lane-packed bf16 stream per (b, t): [pre_g | pre_u | S_g | S_u | e_g | e_u].
    stream = jnp.concatenate([pre_g, pre_u, s_g, s_u, e_g, e_u],
                             axis=-1).astype(jnp.bfloat16)                # [B,T,N,C]
    C = stream.shape[-1]

    # Constant expand / reduce matrices for the embed-dim contraction (0/1 -> exact in bf16).
    eye_d = jnp.eye(D, dtype=jnp.float32)
    Eg = jnp.repeat(eye_d, Og, axis=1).astype(jnp.bfloat16)               # [D, D*Og]
    Rg = jnp.tile(jnp.eye(Og, dtype=jnp.float32), (D, 1)).astype(jnp.bfloat16)
    Eu = jnp.repeat(eye_d, Ou, axis=1).astype(jnp.bfloat16)               # [D, D*Ou]
    Ru = jnp.tile(jnp.eye(Ou, dtype=jnp.float32), (D, 1)).astype(jnp.bfloat16)

    wgh = params['wgh'].astype(jnp.bfloat16)                              # [K, H, D*Og]
    wuh = params['wuh'].astype(jnp.bfloat16)                              # [K, H, D*Ou]

    if t_chunk is None:
        t_chunk = _pick_chunk(T)
    assert T % t_chunk == 0

    kernel = functools.partial(pm_cell_chunk_kernel, t_chunk=t_chunk, hidden=H,
                               cheb_k=cheb_k, n_nodes=N, emb_dim=D)

    btc = lambda b, c: (b, c, 0, 0)   # streamed per (batch, time-chunk) slab
    bm = lambda b, c: (b, 0, 0)       # per-batch (resident across chunks)
    c3 = lambda b, c: (0, 0, 0)       # fully resident constants
    c2 = lambda b, c: (0, 0)

    out = pl.pallas_call(
        kernel,
        out_shape=jax.ShapeDtypeStruct((B, T, N, H), jnp.float32),
        grid_spec=pltpu.PrefetchScalarGridSpec(
            num_scalar_prefetch=0,
            grid=(B, T // t_chunk),
            in_specs=[
                pl.BlockSpec((None, N, H), bm),                 # init state
                pl.BlockSpec((None, t_chunk, N, C), btc),       # packed stream
                pl.BlockSpec(wgh.shape, c3),                    # gate weights (h blk)
                pl.BlockSpec(wuh.shape, c3),                    # update weights (h blk)
                pl.BlockSpec(Eg.shape, c2),
                pl.BlockSpec(Rg.shape, c2),
                pl.BlockSpec(Eu.shape, c2),
                pl.BlockSpec(Ru.shape, c2),
            ],
            out_specs=pl.BlockSpec((None, t_chunk, N, H), btc),
            scratch_shapes=[pltpu.VMEM((N, H), jnp.float32)],   # recurrent state
        ),
        compiler_params=pltpu.CompilerParams(
            dimension_semantics=("parallel", "arbitrary"),
            vmem_limit_bytes=32 * 1024 * 1024),
    )(h0, stream, wgh, wuh, Eg, Rg, Eu, Ru)
    return out


# ----------------------------------------------------------------------------
# Parameter construction (deterministic, in-script).
# ----------------------------------------------------------------------------
def _split_weights_pool(wpool, din):
    """[D, K, I, O] (I = din + H) -> Wx [K, din, D*O], Wh [K, H, D*O].

    Layout: Wx[k, i, d*O + o] = wpool[d, k, i, o], so that
    sum_k T_k(S)x @ Wx[k] + T_k(S)h @ Wh[k]  ==  xg @ flattened_weights_pool.
    """
    D, K, I, O = wpool.shape
    wx = jnp.transpose(wpool[:, :, :din, :], (1, 2, 0, 3)).reshape(K, din, D * O)
    wh = jnp.transpose(wpool[:, :, din:, :], (1, 2, 0, 3)).reshape(K, I - din, D * O)
    return wx, wh


def _init_pgcn_params(key, dim_in, dim_out, cheb_k, embed_dim, time_dim):
    k1, k2, k3 = jax.random.split(key, 3)
    scale = 0.1
    wpool = scale * jax.random.normal(k1, (embed_dim, cheb_k, dim_in, dim_out), jnp.float32)
    bpool = scale * jax.random.normal(k2, (embed_dim, dim_out), jnp.float32)
    wt = scale * jax.random.normal(k3, (time_dim, embed_dim), jnp.float32)
    return wt, wpool, bpool


def init_encoder_params(key, num_layers, dim_in, dim_out, cheb_k, embed_dim, time_dim):
    layer_params = []
    keys = jax.random.split(key, num_layers)
    for i in range(num_layers):
        din_l = dim_in if i == 0 else dim_out
        dcat = din_l + dim_out
        kg, ku = jax.random.split(keys[i])
        wt_g, wpool_g, bp_g = _init_pgcn_params(kg, dcat, 2 * dim_out, cheb_k, embed_dim, time_dim)
        wt_u, wpool_u, bp_u = _init_pgcn_params(ku, dcat, dim_out, cheb_k, embed_dim, time_dim)
        wgx, wgh = _split_weights_pool(wpool_g, din_l)
        wux, wuh = _split_weights_pool(wpool_u, din_l)
        layer_params.append(dict(wt_g=wt_g, bp_g=bp_g, wgx=wgx, wgh=wgh,
                                 wt_u=wt_u, bp_u=bp_u, wux=wux, wuh=wuh))
    return layer_params


# ----------------------------------------------------------------------------
# PM_Encoder forward: one fused recurrent pallas_call per layer.
# ----------------------------------------------------------------------------
def pm_encoder_forward(x, init_state, node_embeddings, layer_params, *, cheb_k):
    """
    x:               [B, T, N, dim_in]
    init_state:      [num_layers, B, N, dim_out]
    node_embeddings: (T_emb [B, T, time_dim], N_emb [N, embed_dim])
    returns (outputs [B, T, N, dim_out], list of final hidden states [B, N, dim_out])
    """
    t_emb_seq, n_emb = node_embeddings
    current = x
    output_hidden = []
    for i, params in enumerate(layer_params):
        current = pm_layer_forward(current, init_state[i], t_emb_seq, n_emb,
                                   params, cheb_k=cheb_k)
        output_hidden.append(current[:, -1])   # state after the last time step
    return current, output_hidden


# ----------------------------------------------------------------------------
# Demo
# ----------------------------------------------------------------------------
if __name__ == "__main__":
    B, T, N = 2, 8, 16
    dim_in, dim_out = 2, 32
    cheb_k, embed_dim, time_dim = 2, 8, 8
    num_layers = 2

    key = jax.random.PRNGKey(0)
    kx, kt, kn, kp = jax.random.split(key, 4)
    x = jax.random.normal(kx, (B, T, N, dim_in), jnp.float32)
    t_emb = jax.random.normal(kt, (B, T, time_dim), jnp.float32)
    n_emb = jax.random.normal(kn, (N, embed_dim), jnp.float32)
    init_state = jnp.zeros((num_layers, B, N, dim_out), jnp.float32)  # init_hidden()

    layer_params = init_encoder_params(kp, num_layers, dim_in, dim_out,
                                       cheb_k, embed_dim, time_dim)

    fwd = jax.jit(functools.partial(pm_encoder_forward, cheb_k=cheb_k))
    outputs, output_hidden = fwd(x, init_state, (t_emb, n_emb), layer_params)

    jax.block_until_ready(outputs)
    assert outputs.shape == (B, T, N, dim_out)
    assert len(output_hidden) == num_layers
    assert output_hidden[-1].shape == (B, N, dim_out)
    assert bool(jnp.all(jnp.isfinite(outputs)))
    print("KERNEL_OK")
</pallas_src>

<mosaic_0001>
module attributes {stable_mosaic.version = 11 : i64} {
  func.func @pm_cell_chunk_kernel(%arg0: i32, %arg1: i32, %arg2: memref<1x16x32xf32, #tpu.memory_space<vmem>>, %arg3: memref<1x8x16x144xbf16, #tpu.memory_space<vmem>>, %arg4: memref<2x32x512xbf16, #tpu.memory_space<vmem>>, %arg5: memref<2x32x256xbf16, #tpu.memory_space<vmem>>, %arg6: memref<8x512xbf16, #tpu.memory_space<vmem>>, %arg7: memref<512x64xbf16, #tpu.memory_space<vmem>>, %arg8: memref<8x256xbf16, #tpu.memory_space<vmem>>, %arg9: memref<256x32xbf16, #tpu.memory_space<vmem>>, %arg10: memref<1x8x16x32xf32, #tpu.memory_space<vmem>>, %arg11: memref<16x32xf32, #tpu.memory_space<vmem>>) attributes {dimension_semantics = [#tpu.dimension_semantics<parallel>, #tpu.dimension_semantics<arbitrary>], iteration_bounds = array<i64: 2, 1>, scalar_prefetch = 0 : i64, scratch_operands = 1 : i64, tpu.core_type = #tpu.core_type<tc>, window_params = [{transform_indices = @transform_0, window_bounds = array<i64: 1, 16, 32>}, {transform_indices = @transform_1, window_bounds = array<i64: 1, 8, 16, 144>}, {pipeline_mode = #tpu.pipeline_mode<synchronous>, transform_indices = @transform_2, window_bounds = array<i64: 2, 32, 512>}, {pipeline_mode = #tpu.pipeline_mode<synchronous>, transform_indices = @transform_3, window_bounds = array<i64: 2, 32, 256>}, {pipeline_mode = #tpu.pipeline_mode<synchronous>, transform_indices = @transform_4, window_bounds = array<i64: 8, 512>}, {pipeline_mode = #tpu.pipeline_mode<synchronous>, transform_indices = @transform_5, window_bounds = array<i64: 512, 64>}, {pipeline_mode = #tpu.pipeline_mode<synchronous>, transform_indices = @transform_6, window_bounds = array<i64: 8, 256>}, {pipeline_mode = #tpu.pipeline_mode<synchronous>, transform_indices = @transform_7, window_bounds = array<i64: 256, 32>}, {transform_indices = @transform_8, window_bounds = array<i64: 1, 8, 16, 32>}]} {
    %c0_i32 = arith.constant 0 : i32
    %0 = arith.cmpi eq, %arg1, %c0_i32 : i32
    %1 = arith.extui %0 : i1 to i32
    %c0_i32_0 = arith.constant 0 : i32
    %2 = arith.cmpi ne, %1, %c0_i32_0 : i32
    scf.if %2 {
      %c0_162 = arith.constant 0 : index
      %c0_163 = arith.constant 0 : index
      %c0_164 = arith.constant 0 : index
      %483 = vector.load %arg2[%c0_162, %c0_163, %c0_164] : memref<1x16x32xf32, #tpu.memory_space<vmem>>, vector<1x16x32xf32>
      %484 = vector.shape_cast %483 : vector<1x16x32xf32> to vector<16x32xf32>
      %c0_165 = arith.constant 0 : index
      %c0_166 = arith.constant 0 : index
      %485 = vector.load %arg11[%c0_165, %c0_166] : memref<16x32xf32, #tpu.memory_space<vmem>>, vector<16x32xf32>
      tpu.vector_store %arg11[%c0_165, %c0_166], %484 {strides = array<i32>} : memref<16x32xf32, #tpu.memory_space<vmem>>, vector<16x32xf32>,
    } else {
    }
    %c0 = arith.constant 0 : index
    %c0_1 = arith.constant 0 : index
    %c0_2 = arith.constant 0 : index
    %3 = vector.load %arg4[%c0, %c0_1, %c0_2] : memref<2x32x512xbf16, #tpu.memory_space<vmem>>, vector<2x32x512xbf16>
    %c0_3 = arith.constant 0 : index
    %c0_4 = arith.constant 0 : index
    %c0_5 = arith.constant 0 : index
    %4 = vector.load %arg5[%c0_3, %c0_4, %c0_5] : memref<2x32x256xbf16, #tpu.memory_space<vmem>>, vector<2x32x256xbf16>
    %c0_6 = arith.constant 0 : index
    %c0_7 = arith.constant 0 : index
    %5 = vector.load %arg6[%c0_6, %c0_7] : memref<8x512xbf16, #tpu.memory_space<vmem>>, vector<8x512xbf16>
    %c0_8 = arith.constant 0 : index
    %c0_9 = arith.constant 0 : index
    %6 = vector.load %arg7[%c0_8, %c0_9] : memref<512x64xbf16, #tpu.memory_space<vmem>>, vector<512x64xbf16>
    %c0_10 = arith.constant 0 : index
    %c0_11 = arith.constant 0 : index
    %7 = vector.load %arg8[%c0_10, %c0_11] : memref<8x256xbf16, #tpu.memory_space<vmem>>, vector<8x256xbf16>
    %c0_12 = arith.constant 0 : index
    %c0_13 = arith.constant 0 : index
    %8 = vector.load %arg9[%c0_12, %c0_13] : memref<256x32xbf16, #tpu.memory_space<vmem>>, vector<256x32xbf16>
    %c0_14 = arith.constant 0 : index
    %c0_15 = arith.constant 0 : index
    %9 = vector.load %arg11[%c0_14, %c0_15] : memref<16x32xf32, #tpu.memory_space<vmem>>, vector<16x32xf32>
    %c0_i32_16 = arith.constant 0 : i32
    %c0_17 = arith.constant 0 : index
    %10 = arith.index_cast %c0_i32_16 : i32 to index
    %c0_18 = arith.constant 0 : index
    %c0_19 = arith.constant 0 : index
    %11 = vector.load %arg3[%c0_17, %10, %c0_18, %c0_19] : memref<1x8x16x144xbf16, #tpu.memory_space<vmem>>, vector<1x1x16x144xbf16>
    %12 = vector.shape_cast %11 : vector<1x1x16x144xbf16> to vector<16x144xbf16>
    %13 = vector.extract_strided_slice %12 {offsets = [0, 0], sizes = [16, 64], strides = [1, 1]} : vector<16x144xbf16> to vector<16x64xbf16>
    %14 = arith.extf %13 : vector<16x64xbf16> to vector<16x64xf32>
    %15 = vector.extract_strided_slice %12 {offsets = [0, 64], sizes = [16, 32], strides = [1, 1]} : vector<16x144xbf16> to vector<16x32xbf16>
    %16 = arith.extf %15 : vector<16x32xbf16> to vector<16x32xf32>
    %17 = vector.extract_strided_slice %12 {offsets = [0, 96], sizes = [16, 16], strides = [1, 1]} : vector<16x144xbf16> to vector<16x16xbf16>
    %18 = vector.extract_strided_slice %12 {offsets = [0, 112], sizes = [16, 16], strides = [1, 1]} : vector<16x144xbf16> to vector<16x16xbf16>
    %19 = vector.extract_strided_slice %12 {offsets = [0, 128], sizes = [16, 8], strides = [1, 1]} : vector<16x144xbf16> to vector<16x8xbf16>
    %20 = vector.extract_strided_slice %12 {offsets = [0, 136], sizes = [16, 8], strides = [1, 1]} : vector<16x144xbf16> to vector<16x8xbf16>
    %21 = arith.truncf %9 : vector<16x32xf32> to vector<16x32xbf16>
    %22 = vector.extract_strided_slice %3 {offsets = [0, 0, 0], sizes = [1, 32, 512], strides = [1, 1, 1]} : vector<2x32x512xbf16> to vector<1x32x512xbf16>
    %23 = vector.shape_cast %22 : vector<1x32x512xbf16> to vector<32x512xbf16>
    %cst = arith.constant dense<0.000000e+00> : vector<16x512xf32>
    %24 = tpu.matmul %21, %23, %cst {dimension_numbers = #tpu.dot_dimension_numbers<[1], [0], [0], [1], [0, 0, 1, 1], [], []>} : vector<16x32xbf16>, vector<32x512xbf16>, vector<16x512xf32> -> vector<16x512xf32>
    %cst_20 = arith.constant dense<0.000000e+00> : vector<16x32xf32>
    %25 = tpu.matmul %17, %21, %cst_20 {dimension_numbers = #tpu.dot_dimension_numbers<[1], [0], [0], [1], [0, 0, 1, 1], [], []>} : vector<16x16xbf16>, vector<16x32xbf16>, vector<16x32xf32> -> vector<16x32xf32>
    %26 = arith.truncf %25 : vector<16x32xf32> to vector<16x32xbf16>
    %27 = vector.extract_strided_slice %3 {offsets = [1, 0, 0], sizes = [1, 32, 512], strides = [1, 1, 1]} : vector<2x32x512xbf16> to vector<1x32x512xbf16>
    %28 = vector.shape_cast %27 : vector<1x32x512xbf16> to vector<32x512xbf16>
    %cst_21 = arith.constant dense<0.000000e+00> : vector<16x512xf32>
    %29 = tpu.matmul %26, %28, %cst_21 {dimension_numbers = #tpu.dot_dimension_numbers<[1], [0], [0], [1], [0, 0, 1, 1], [], []>} : vector<16x32xbf16>, vector<32x512xbf16>, vector<16x512xf32> -> vector<16x512xf32>
    %30 = arith.addf %24, %29 : vector<16x512xf32>
    %cst_22 = arith.constant dense<0.000000e+00> : vector<16x512xf32>
    %31 = tpu.matmul %19, %5, %cst_22 {dimension_numbers = #tpu.dot_dimension_numbers<[1], [0], [0], [1], [0, 0, 1, 1], [], []>} : vector<16x8xbf16>, vector<8x512xbf16>, vector<16x512xf32> -> vector<16x512xf32>
    %32 = arith.mulf %30, %31 : vector<16x512xf32>
    %33 = arith.truncf %32 : vector<16x512xf32> to vector<16x512xbf16>
    %cst_23 = arith.constant dense<0.000000e+00> : vector<16x64xf32>
    %34 = tpu.matmul %33, %6, %cst_23 {dimension_numbers = #tpu.dot_dimension_numbers<[1], [0], [0], [1], [0, 0, 1, 1], [], []>} : vector<16x512xbf16>, vector<512x64xbf16>, vector<16x64xf32> -> vector<16x64xf32>
    %35 = arith.addf %14, %34 : vector<16x64xf32>
    %36 = arith.negf %35 : vector<16x64xf32>
    %37 = math.exp %36 : vector<16x64xf32>
    %cst_24 = arith.constant 1.000000e+00 : f32
    %38 = vector.broadcast %cst_24 : f32 to vector<16x64xf32>
    %39 = arith.addf %38, %37 : vector<16x64xf32>
    %40 = arith.divf %38, %39 : vector<16x64xf32>
    %41 = vector.extract_strided_slice %40 {offsets = [0, 0], sizes = [16, 32], strides = [1, 1]} : vector<16x64xf32> to vector<16x32xf32>
    %42 = vector.extract_strided_slice %40 {offsets = [0, 32], sizes = [16, 32], strides = [1, 1]} : vector<16x64xf32> to vector<16x32xf32>
    %43 = arith.mulf %41, %9 : vector<16x32xf32>
    %44 = arith.truncf %43 : vector<16x32xf32> to vector<16x32xbf16>
    %45 = vector.extract_strided_slice %4 {offsets = [0, 0, 0], sizes = [1, 32, 256], strides = [1, 1, 1]} : vector<2x32x256xbf16> to vector<1x32x256xbf16>
    %46 = vector.shape_cast %45 : vector<1x32x256xbf16> to vector<32x256xbf16>
    %cst_25 = arith.constant dense<0.000000e+00> : vector<16x256xf32>
    %47 = tpu.matmul %44, %46, %cst_25 {dimension_numbers = #tpu.dot_dimension_numbers<[1], [0], [0], [1], [0, 0, 1, 1], [], []>} : vector<16x32xbf16>, vector<32x256xbf16>, vector<16x256xf32> -> vector<16x256xf32>
    %cst_26 = arith.constant dense<0.000000e+00> : vector<16x32xf32>
    %48 = tpu.matmul %18, %44, %cst_26 {dimension_numbers = #tpu.dot_dimension_numbers<[1], [0], [0], [1], [0, 0, 1, 1], [], []>} : vector<16x16xbf16>, vector<16x32xbf16>, vector<16x32xf32> -> vector<16x32xf32>
    %49 = arith.truncf %48 : vector<16x32xf32> to vector<16x32xbf16>
    %50 = vector.extract_strided_slice %4 {offsets = [1, 0, 0], sizes = [1, 32, 256], strides = [1, 1, 1]} : vector<2x32x256xbf16> to vector<1x32x256xbf16>
    %51 = vector.shape_cast %50 : vector<1x32x256xbf16> to vector<32x256xbf16>
    %cst_27 = arith.constant dense<0.000000e+00> : vector<16x256xf32>
    %52 = tpu.matmul %49, %51, %cst_27 {dimension_numbers = #tpu.dot_dimension_numbers<[1], [0], [0], [1], [0, 0, 1, 1], [], []>} : vector<16x32xbf16>, vector<32x256xbf16>, vector<16x256xf32> -> vector<16x256xf32>
    %53 = arith.addf %47, %52 : vector<16x256xf32>
    %cst_28 = arith.constant dense<0.000000e+00> : vector<16x256xf32>
    %54 = tpu.matmul %20, %7, %cst_28 {dimension_numbers = #tpu.dot_dimension_numbers<[1], [0], [0], [1], [0, 0, 1, 1], [], []>} : vector<16x8xbf16>, vector<8x256xbf16>, vector<16x256xf32> -> vector<16x256xf32>
    %55 = arith.mulf %53, %54 : vector<16x256xf32>
    %56 = arith.truncf %55 : vector<16x256xf32> to vector<16x256xbf16>
    %cst_29 = arith.constant dense<0.000000e+00> : vector<16x32xf32>
    %57 = tpu.matmul %56, %8, %cst_29 {dimension_numbers = #tpu.dot_dimension_numbers<[1], [0], [0], [1], [0, 0, 1, 1], [], []>} : vector<16x256xbf16>, vector<256x32xbf16>, vector<16x32xf32> -> vector<16x32xf32>
    %58 = arith.addf %16, %57 : vector<16x32xf32>
    %59 = math.tanh %58 : vector<16x32xf32>
    %60 = arith.mulf %42, %9 : vector<16x32xf32>
    %cst_30 = arith.constant 1.000000e+00 : f32
    %61 = vector.broadcast %cst_30 : f32 to vector<16x32xf32>
    %62 = arith.subf %61, %42 : vector<16x32xf32>
    %63 = arith.mulf %62, %59 : vector<16x32xf32>
    %64 = arith.addf %60, %63 : vector<16x32xf32>
    %c0_31 = arith.constant 0 : index
    %65 = arith.index_cast %c0_i32_16 : i32 to index
    %c0_32 = arith.constant 0 : index
    %c0_33 = arith.constant 0 : index
    %66 = vector.load %arg10[%c0_31, %65, %c0_32, %c0_33] : memref<1x8x16x32xf32, #tpu.memory_space<vmem>>, vector<1x1x16x32xf32>
    %67 = vector.shape_cast %66 : vector<1x1x16x32xf32> to vector<16x32xf32>
    %68 = vector.shape_cast %64 : vector<16x32xf32> to vector<1x1x16x32xf32>
    tpu.vector_store %arg10[%c0_31, %65, %c0_32, %c0_33], %68 {strides = array<i32>} : memref<1x8x16x32xf32, #tpu.memory_space<vmem>>, vector<1x1x16x32xf32>,
    %c1_i32 = arith.constant 1 : i32
    %c0_34 = arith.constant 0 : index
    %69 = arith.index_cast %c1_i32 : i32 to index
    %c0_35 = arith.constant 0 : index
    %c0_36 = arith.constant 0 : index
    %70 = vector.load %arg3[%c0_34, %69, %c0_35, %c0_36] : memref<1x8x16x144xbf16, #tpu.memory_space<vmem>>, vector<1x1x16x144xbf16>
    %71 = vector.shape_cast %70 : vector<1x1x16x144xbf16> to vector<16x144xbf16>
    %72 = vector.extract_strided_slice %71 {offsets = [0, 0], sizes = [16, 64], strides = [1, 1]} : vector<16x144xbf16> to vector<16x64xbf16>
    %73 = arith.extf %72 : vector<16x64xbf16> to vector<16x64xf32>
    %74 = vector.extract_strided_slice %71 {offsets = [0, 64], sizes = [16, 32], strides = [1, 1]} : vector<16x144xbf16> to vector<16x32xbf16>
    %75 = arith.extf %74 : vector<16x32xbf16> to vector<16x32xf32>
    %76 = vector.extract_strided_slice %71 {offsets = [0, 96], sizes = [16, 16], strides = [1, 1]} : vector<16x144xbf16> to vector<16x16xbf16>
    %77 = vector.extract_strided_slice %71 {offsets = [0, 112], sizes = [16, 16], strides = [1, 1]} : vector<16x144xbf16> to vector<16x16xbf16>
    %78 = vector.extract_strided_slice %71 {offsets = [0, 128], sizes = [16, 8], strides = [1, 1]} : vector<16x144xbf16> to vector<16x8xbf16>
    %79 = vector.extract_strided_slice %71 {offsets = [0, 136], sizes = [16, 8], strides = [1, 1]} : vector<16x144xbf16> to vector<16x8xbf16>
    %80 = arith.truncf %64 : vector<16x32xf32> to vector<16x32xbf16>
    %81 = vector.extract_strided_slice %3 {offsets = [0, 0, 0], sizes = [1, 32, 512], strides = [1, 1, 1]} : vector<2x32x512xbf16> to vector<1x32x512xbf16>
    %82 = vector.shape_cast %81 : vector<1x32x512xbf16> to vector<32x512xbf16>
    %cst_37 = arith.constant dense<0.000000e+00> : vector<16x512xf32>
    %83 = tpu.matmul %80, %82, %cst_37 {dimension_numbers = #tpu.dot_dimension_numbers<[1], [0], [0], [1], [0, 0, 1, 1], [], []>} : vector<16x32xbf16>, vector<32x512xbf16>, vector<16x512xf32> -> vector<16x512xf32>
    %cst_38 = arith.constant dense<0.000000e+00> : vector<16x32xf32>
    %84 = tpu.matmul %76, %80, %cst_38 {dimension_numbers = #tpu.dot_dimension_numbers<[1], [0], [0], [1], [0, 0, 1, 1], [], []>} : vector<16x16xbf16>, vector<16x32xbf16>, vector<16x32xf32> -> vector<16x32xf32>
    %85 = arith.truncf %84 : vector<16x32xf32> to vector<16x32xbf16>
    %86 = vector.extract_strided_slice %3 {offsets = [1, 0, 0], sizes = [1, 32, 512], strides = [1, 1, 1]} : vector<2x32x512xbf16> to vector<1x32x512xbf16>
    %87 = vector.shape_cast %86 : vector<1x32x512xbf16> to vector<32x512xbf16>
    %cst_39 = arith.constant dense<0.000000e+00> : vector<16x512xf32>
    %88 = tpu.matmul %85, %87, %cst_39 {dimension_numbers = #tpu.dot_dimension_numbers<[1], [0], [0], [1], [0, 0, 1, 1], [], []>} : vector<16x32xbf16>, vector<32x512xbf16>, vector<16x512xf32> -> vector<16x512xf32>
    %89 = arith.addf %83, %88 : vector<16x512xf32>
    %cst_40 = arith.constant dense<0.000000e+00> : vector<16x512xf32>
    %90 = tpu.matmul %78, %5, %cst_40 {dimension_numbers = #tpu.dot_dimension_numbers<[1], [0], [0], [1], [0, 0, 1, 1], [], []>} : vector<16x8xbf16>, vector<8x512xbf16>, vector<16x512xf32> -> vector<16x512xf32>
    %91 = arith.mulf %89, %90 : vector<16x512xf32>
    %92 = arith.truncf %91 : vector<16x512xf32> to vector<16x512xbf16>
    %cst_41 = arith.constant dense<0.000000e+00> : vector<16x64xf32>
    %93 = tpu.matmul %92, %6, %cst_41 {dimension_numbers = #tpu.dot_dimension_numbers<[1], [0], [0], [1], [0, 0, 1, 1], [], []>} : vector<16x512xbf16>, vector<512x64xbf16>, vector<16x64xf32> -> vector<16x64xf32>
    %94 = arith.addf %73, %93 : vector<16x64xf32>
    %95 = arith.negf %94 : vector<16x64xf32>
    %96 = math.exp %95 : vector<16x64xf32>
    %cst_42 = arith.constant 1.000000e+00 : f32
    %97 = vector.broadcast %cst_42 : f32 to vector<16x64xf32>
    %98 = arith.addf %97, %96 : vector<16x64xf32>
    %99 = arith.divf %97, %98 : vector<16x64xf32>
    %100 = vector.extract_strided_slice %99 {offsets = [0, 0], sizes = [16, 32], strides = [1, 1]} : vector<16x64xf32> to vector<16x32xf32>
    %101 = vector.extract_strided_slice %99 {offsets = [0, 32], sizes = [16, 32], strides = [1, 1]} : vector<16x64xf32> to vector<16x32xf32>
    %102 = arith.mulf %100, %64 : vector<16x32xf32>
    %103 = arith.truncf %102 : vector<16x32xf32> to vector<16x32xbf16>
    %104 = vector.extract_strided_slice %4 {offsets = [0, 0, 0], sizes = [1, 32, 256], strides = [1, 1, 1]} : vector<2x32x256xbf16> to vector<1x32x256xbf16>
    %105 = vector.shape_cast %104 : vector<1x32x256xbf16> to vector<32x256xbf16>
    %cst_43 = arith.constant dense<0.000000e+00> : vector<16x256xf32>
    %106 = tpu.matmul %103, %105, %cst_43 {dimension_numbers = #tpu.dot_dimension_numbers<[1], [0], [0], [1], [0, 0, 1, 1], [], []>} : vector<16x32xbf16>, vector<32x256xbf16>, vector<16x256xf32> -> vector<16x256xf32>
    %cst_44 = arith.constant dense<0.000000e+00> : vector<16x32xf32>
    %107 = tpu.matmul %77, %103, %cst_44 {dimension_numbers = #tpu.dot_dimension_numbers<[1], [0], [0], [1], [0, 0, 1, 1], [], []>} : vector<16x16xbf16>, vector<16x32xbf16>, vector<16x32xf32> -> vector<16x32xf32>
    %108 = arith.truncf %107 : vector<16x32xf32> to vector<16x32xbf16>
    %109 = vector.extract_strided_slice %4 {offsets = [1, 0, 0], sizes = [1, 32, 256], strides = [1, 1, 1]} : vector<2x32x256xbf16> to vector<1x32x256xbf16>
    %110 = vector.shape_cast %109 : vector<1x32x256xbf16> to vector<32x256xbf16>
    %cst_45 = arith.constant dense<0.000000e+00> : vector<16x256xf32>
    %111 = tpu.matmul %108, %110, %cst_45 {dimension_numbers = #tpu.dot_dimension_numbers<[1], [0], [0], [1], [0, 0, 1, 1], [], []>} : vector<16x32xbf16>, vector<32x256xbf16>, vector<16x256xf32> -> vector<16x256xf32>
    %112 = arith.addf %106, %111 : vector<16x256xf32>
    %cst_46 = arith.constant dense<0.000000e+00> : vector<16x256xf32>
    %113 = tpu.matmul %79, %7, %cst_46 {dimension_numbers = #tpu.dot_dimension_numbers<[1], [0], [0], [1], [0, 0, 1, 1], [], []>} : vector<16x8xbf16>, vector<8x256xbf16>, vector<16x256xf32> -> vector<16x256xf32>
    %114 = arith.mulf %112, %113 : vector<16x256xf32>
    %115 = arith.truncf %114 : vector<16x256xf32> to vector<16x256xbf16>
    %cst_47 = arith.constant dense<0.000000e+00> : vector<16x32xf32>
    %116 = tpu.matmul %115, %8, %cst_47 {dimension_numbers = #tpu.dot_dimension_numbers<[1], [0], [0], [1], [0, 0, 1, 1], [], []>} : vector<16x256xbf16>, vector<256x32xbf16>, vector<16x32xf32> -> vector<16x32xf32>
    %117 = arith.addf %75, %116 : vector<16x32xf32>
    %118 = math.tanh %117 : vector<16x32xf32>
    %119 = arith.mulf %101, %64 : vector<16x32xf32>
    %cst_48 = arith.constant 1.000000e+00 : f32
    %120 = vector.broadcast %cst_48 : f32 to vector<16x32xf32>
    %121 = arith.subf %120, %101 : vector<16x32xf32>
    %122 = arith.mulf %121, %118 : vector<16x32xf32>
    %123 = arith.addf %119, %122 : vector<16x32xf32>
    %c0_49 = arith.constant 0 : index
    %124 = arith.index_cast %c1_i32 : i32 to index
    %c0_50 = arith.constant 0 : index
    %c0_51 = arith.constant 0 : index
    %125 = vector.load %arg10[%c0_49, %124, %c0_50, %c0_51] : memref<1x8x16x32xf32, #tpu.memory_space<vmem>>, vector<1x1x16x32xf32>
    %126 = vector.shape_cast %125 : vector<1x1x16x32xf32> to vector<16x32xf32>
    %127 = vector.shape_cast %123 : vector<16x32xf32> to vector<1x1x16x32xf32>
    tpu.vector_store %arg10[%c0_49, %124, %c0_50, %c0_51], %127 {strides = array<i32>} : memref<1x8x16x32xf32, #tpu.memory_space<vmem>>, vector<1x1x16x32xf32>,
    %c2_i32 = arith.constant 2 : i32
    %c0_52 = arith.constant 0 : index
    %128 = arith.index_cast %c2_i32 : i32 to index
    %c0_53 = arith.constant 0 : index
    %c0_54 = arith.constant 0 : index
    %129 = vector.load %arg3[%c0_52, %128, %c0_53, %c0_54] : memref<1x8x16x144xbf16, #tpu.memory_space<vmem>>, vector<1x1x16x144xbf16>
    %130 = vector.shape_cast %129 : vector<1x1x16x144xbf16> to vector<16x144xbf16>
    %131 = vector.extract_strided_slice %130 {offsets = [0, 0], sizes = [16, 64], strides = [1, 1]} : vector<16x144xbf16> to vector<16x64xbf16>
    %132 = arith.extf %131 : vector<16x64xbf16> to vector<16x64xf32>
    %133 = vector.extract_strided_slice %130 {offsets = [0, 64], sizes = [16, 32], strides = [1, 1]} : vector<16x144xbf16> to vector<16x32xbf16>
    %134 = arith.extf %133 : vector<16x32xbf16> to vector<16x32xf32>
    %135 = vector.extract_strided_slice %130 {offsets = [0, 96], sizes = [16, 16], strides = [1, 1]} : vector<16x144xbf16> to vector<16x16xbf16>
    %136 = vector.extract_strided_slice %130 {offsets = [0, 112], sizes = [16, 16], strides = [1, 1]} : vector<16x144xbf16> to vector<16x16xbf16>
    %137 = vector.extract_strided_slice %130 {offsets = [0, 128], sizes = [16, 8], strides = [1, 1]} : vector<16x144xbf16> to vector<16x8xbf16>
    %138 = vector.extract_strided_slice %130 {offsets = [0, 136], sizes = [16, 8], strides = [1, 1]} : vector<16x144xbf16> to vector<16x8xbf16>
    %139 = arith.truncf %123 : vector<16x32xf32> to vector<16x32xbf16>
    %140 = vector.extract_strided_slice %3 {offsets = [0, 0, 0], sizes = [1, 32, 512], strides = [1, 1, 1]} : vector<2x32x512xbf16> to vector<1x32x512xbf16>
    %141 = vector.shape_cast %140 : vector<1x32x512xbf16> to vector<32x512xbf16>
    %cst_55 = arith.constant dense<0.000000e+00> : vector<16x512xf32>
    %142 = tpu.matmul %139, %141, %cst_55 {dimension_numbers = #tpu.dot_dimension_numbers<[1], [0], [0], [1], [0, 0, 1, 1], [], []>} : vector<16x32xbf16>, vector<32x512xbf16>, vector<16x512xf32> -> vector<16x512xf32>
    %cst_56 = arith.constant dense<0.000000e+00> : vector<16x32xf32>
    %143 = tpu.matmul %135, %139, %cst_56 {dimension_numbers = #tpu.dot_dimension_numbers<[1], [0], [0], [1], [0, 0, 1, 1], [], []>} : vector<16x16xbf16>, vector<16x32xbf16>, vector<16x32xf32> -> vector<16x32xf32>
    %144 = arith.truncf %143 : vector<16x32xf32> to vector<16x32xbf16>
    %145 = vector.extract_strided_slice %3 {offsets = [1, 0, 0], sizes = [1, 32, 512], strides = [1, 1, 1]} : vector<2x32x512xbf16> to vector<1x32x512xbf16>
    %146 = vector.shape_cast %145 : vector<1x32x512xbf16> to vector<32x512xbf16>
    %cst_57 = arith.constant dense<0.000000e+00> : vector<16x512xf32>
    %147 = tpu.matmul %144, %146, %cst_57 {dimension_numbers = #tpu.dot_dimension_numbers<[1], [0], [0], [1], [0, 0, 1, 1], [], []>} : vector<16x32xbf16>, vector<32x512xbf16>, vector<16x512xf32> -> vector<16x512xf32>
    %148 = arith.addf %142, %147 : vector<16x512xf32>
    %cst_58 = arith.constant dense<0.000000e+00> : vector<16x512xf32>
    %149 = tpu.matmul %137, %5, %cst_58 {dimension_numbers = #tpu.dot_dimension_numbers<[1], [0], [0], [1], [0, 0, 1, 1], [], []>} : vector<16x8xbf16>, vector<8x512xbf16>, vector<16x512xf32> -> vector<16x512xf32>
    %150 = arith.mulf %148, %149 : vector<16x512xf32>
    %151 = arith.truncf %150 : vector<16x512xf32> to vector<16x512xbf16>
    %cst_59 = arith.constant dense<0.000000e+00> : vector<16x64xf32>
    %152 = tpu.matmul %151, %6, %cst_59 {dimension_numbers = #tpu.dot_dimension_numbers<[1], [0], [0], [1], [0, 0, 1, 1], [], []>} : vector<16x512xbf16>, vector<512x64xbf16>, vector<16x64xf32> -> vector<16x64xf32>
    %153 = arith.addf %132, %152 : vector<16x64xf32>
    %154 = arith.negf %153 : vector<16x64xf32>
    %155 = math.exp %154 : vector<16x64xf32>
    %cst_60 = arith.constant 1.000000e+00 : f32
    %156 = vector.broadcast %cst_60 : f32 to vector<16x64xf32>
    %157 = arith.addf %156, %155 : vector<16x64xf32>
    %158 = arith.divf %156, %157 : vector<16x64xf32>
    %159 = vector.extract_strided_slice %158 {offsets = [0, 0], sizes = [16, 32], strides = [1, 1]} : vector<16x64xf32> to vector<16x32xf32>
    %160 = vector.extract_strided_slice %158 {offsets = [0, 32], sizes = [16, 32], strides = [1, 1]} : vector<16x64xf32> to vector<16x32xf32>
    %161 = arith.mulf %159, %123 : vector<16x32xf32>
    %162 = arith.truncf %161 : vector<16x32xf32> to vector<16x32xbf16>
    %163 = vector.extract_strided_slice %4 {offsets = [0, 0, 0], sizes = [1, 32, 256], strides = [1, 1, 1]} : vector<2x32x256xbf16> to vector<1x32x256xbf16>
    %164 = vector.shape_cast %163 : vector<1x32x256xbf16> to vector<32x256xbf16>
    %cst_61 = arith.constant dense<0.000000e+00> : vector<16x256xf32>
    %165 = tpu.matmul %162, %164, %cst_61 {dimension_numbers = #tpu.dot_dimension_numbers<[1], [0], [0], [1], [0, 0, 1, 1], [], []>} : vector<16x32xbf16>, vector<32x256xbf16>, vector<16x256xf32> -> vector<16x256xf32>
    %cst_62 = arith.constant dense<0.000000e+00> : vector<16x32xf32>
    %166 = tpu.matmul %136, %162, %cst_62 {dimension_numbers = #tpu.dot_dimension_numbers<[1], [0], [0], [1], [0, 0, 1, 1], [], []>} : vector<16x16xbf16>, vector<16x32xbf16>, vector<16x32xf32> -> vector<16x32xf32>
    %167 = arith.truncf %166 : vector<16x32xf32> to vector<16x32xbf16>
    %168 = vector.extract_strided_slice %4 {offsets = [1, 0, 0], sizes = [1, 32, 256], strides = [1, 1, 1]} : vector<2x32x256xbf16> to vector<1x32x256xbf16>
    %169 = vector.shape_cast %168 : vector<1x32x256xbf16> to vector<32x256xbf16>
    %cst_63 = arith.constant dense<0.000000e+00> : vector<16x256xf32>
    %170 = tpu.matmul %167, %169, %cst_63 {dimension_numbers = #tpu.dot_dimension_numbers<[1], [0], [0], [1], [0, 0, 1, 1], [], []>} : vector<16x32xbf16>, vector<32x256xbf16>, vector<16x256xf32> -> vector<16x256xf32>
    %171 = arith.addf %165, %170 : vector<16x256xf32>
    %cst_64 = arith.constant dense<0.000000e+00> : vector<16x256xf32>
    %172 = tpu.matmul %138, %7, %cst_64 {dimension_numbers = #tpu.dot_dimension_numbers<[1], [0], [0], [1], [0, 0, 1, 1], [], []>} : vector<16x8xbf16>, vector<8x256xbf16>, vector<16x256xf32> -> vector<16x256xf32>
    %173 = arith.mulf %171, %172 : vector<16x256xf32>
    %174 = arith.truncf %173 : vector<16x256xf32> to vector<16x256xbf16>
    %cst_65 = arith.constant dense<0.000000e+00> : vector<16x32xf32>
    %175 = tpu.matmul %174, %8, %cst_65 {dimension_numbers = #tpu.dot_dimension_numbers<[1], [0], [0], [1], [0, 0, 1, 1], [], []>} : vector<16x256xbf16>, vector<256x32xbf16>, vector<16x32xf32> -> vector<16x32xf32>
    %176 = arith.addf %134, %175 : vector<16x32xf32>
    %177 = math.tanh %176 : vector<16x32xf32>
    %178 = arith.mulf %160, %123 : vector<16x32xf32>
    %cst_66 = arith.constant 1.000000e+00 : f32
    %179 = vector.broadcast %cst_66 : f32 to vector<16x32xf32>
    %180 = arith.subf %179, %160 : vector<16x32xf32>
    %181 = arith.mulf %180, %177 : vector<16x32xf32>
    %182 = arith.addf %178, %181 : vector<16x32xf32>
    %c0_67 = arith.constant 0 : index
    %183 = arith.index_cast %c2_i32 : i32 to index
    %c0_68 = arith.constant 0 : index
    %c0_69 = arith.constant 0 : index
    %184 = vector.load %arg10[%c0_67, %183, %c0_68, %c0_69] : memref<1x8x16x32xf32, #tpu.memory_space<vmem>>, vector<1x1x16x32xf32>
    %185 = vector.shape_cast %184 : vector<1x1x16x32xf32> to vector<16x32xf32>
    %186 = vector.shape_cast %182 : vector<16x32xf32> to vector<1x1x16x32xf32>
    tpu.vector_store %arg10[%c0_67, %183, %c0_68, %c0_69], %186 {strides = array<i32>} : memref<1x8x16x32xf32, #tpu.memory_space<vmem>>, vector<1x1x16x32xf32>,
    %c3_i32 = arith.constant 3 : i32
    %c0_70 = arith.constant 0 : index
    %187 = arith.index_cast %c3_i32 : i32 to index
    %c0_71 = arith.constant 0 : index
    %c0_72 = arith.constant 0 : index
    %188 = vector.load %arg3[%c0_70, %187, %c0_71, %c0_72] : memref<1x8x16x144xbf16, #tpu.memory_space<vmem>>, vector<1x1x16x144xbf16>
    %189 = vector.shape_cast %188 : vector<1x1x16x144xbf16> to vector<16x144xbf16>
    %190 = vector.extract_strided_slice %189 {offsets = [0, 0], sizes = [16, 64], strides = [1, 1]} : vector<16x144xbf16> to vector<16x64xbf16>
    %191 = arith.extf %190 : vector<16x64xbf16> to vector<16x64xf32>
    %192 = vector.extract_strided_slice %189 {offsets = [0, 64], sizes = [16, 32], strides = [1, 1]} : vector<16x144xbf16> to vector<16x32xbf16>
    %193 = arith.extf %192 : vector<16x32xbf16> to vector<16x32xf32>
    %194 = vector.extract_strided_slice %189 {offsets = [0, 96], sizes = [16, 16], strides = [1, 1]} : vector<16x144xbf16> to vector<16x16xbf16>
    %195 = vector.extract_strided_slice %189 {offsets = [0, 112], sizes = [16, 16], strides = [1, 1]} : vector<16x144xbf16> to vector<16x16xbf16>
    %196 = vector.extract_strided_slice %189 {offsets = [0, 128], sizes = [16, 8], strides = [1, 1]} : vector<16x144xbf16> to vector<16x8xbf16>
    %197 = vector.extract_strided_slice %189 {offsets = [0, 136], sizes = [16, 8], strides = [1, 1]} : vector<16x144xbf16> to vector<16x8xbf16>
    %198 = arith.truncf %182 : vector<16x32xf32> to vector<16x32xbf16>
    %199 = vector.extract_strided_slice %3 {offsets = [0, 0, 0], sizes = [1, 32, 512], strides = [1, 1, 1]} : vector<2x32x512xbf16> to vector<1x32x512xbf16>
    %200 = vector.shape_cast %199 : vector<1x32x512xbf16> to vector<32x512xbf16>
    %cst_73 = arith.constant dense<0.000000e+00> : vector<16x512xf32>
    %201 = tpu.matmul %198, %200, %cst_73 {dimension_numbers = #tpu.dot_dimension_numbers<[1], [0], [0], [1], [0, 0, 1, 1], [], []>} : vector<16x32xbf16>, vector<32x512xbf16>, vector<16x512xf32> -> vector<16x512xf32>
    %cst_74 = arith.constant dense<0.000000e+00> : vector<16x32xf32>
    %202 = tpu.matmul %194, %198, %cst_74 {dimension_numbers = #tpu.dot_dimension_numbers<[1], [0], [0], [1], [0, 0, 1, 1], [], []>} : vector<16x16xbf16>, vector<16x32xbf16>, vector<16x32xf32> -> vector<16x32xf32>
    %203 = arith.truncf %202 : vector<16x32xf32> to vector<16x32xbf16>
    %204 = vector.extract_strided_slice %3 {offsets = [1, 0, 0], sizes = [1, 32, 512], strides = [1, 1, 1]} : vector<2x32x512xbf16> to vector<1x32x512xbf16>
    %205 = vector.shape_cast %204 : vector<1x32x512xbf16> to vector<32x512xbf16>
    %cst_75 = arith.constant dense<0.000000e+00> : vector<16x512xf32>
    %206 = tpu.matmul %203, %205, %cst_75 {dimension_numbers = #tpu.dot_dimension_numbers<[1], [0], [0], [1], [0, 0, 1, 1], [], []>} : vector<16x32xbf16>, vector<32x512xbf16>, vector<16x512xf32> -> vector<16x512xf32>
    %207 = arith.addf %201, %206 : vector<16x512xf32>
    %cst_76 = arith.constant dense<0.000000e+00> : vector<16x512xf32>
    %208 = tpu.matmul %196, %5, %cst_76 {dimension_numbers = #tpu.dot_dimension_numbers<[1], [0], [0], [1], [0, 0, 1, 1], [], []>} : vector<16x8xbf16>, vector<8x512xbf16>, vector<16x512xf32> -> vector<16x512xf32>
    %209 = arith.mulf %207, %208 : vector<16x512xf32>
    %210 = arith.truncf %209 : vector<16x512xf32> to vector<16x512xbf16>
    %cst_77 = arith.constant dense<0.000000e+00> : vector<16x64xf32>
    %211 = tpu.matmul %210, %6, %cst_77 {dimension_numbers = #tpu.dot_dimension_numbers<[1], [0], [0], [1], [0, 0, 1, 1], [], []>} : vector<16x512xbf16>, vector<512x64xbf16>, vector<16x64xf32> -> vector<16x64xf32>
    %212 = arith.addf %191, %211 : vector<16x64xf32>
    %213 = arith.negf %212 : vector<16x64xf32>
    %214 = math.exp %213 : vector<16x64xf32>
    %cst_78 = arith.constant 1.000000e+00 : f32
    %215 = vector.broadcast %cst_78 : f32 to vector<16x64xf32>
    %216 = arith.addf %215, %214 : vector<16x64xf32>
    %217 = arith.divf %215, %216 : vector<16x64xf32>
    %218 = vector.extract_strided_slice %217 {offsets = [0, 0], sizes = [16, 32], strides = [1, 1]} : vector<16x64xf32> to vector<16x32xf32>
    %219 = vector.extract_strided_slice %217 {offsets = [0, 32], sizes = [16, 32], strides = [1, 1]} : vector<16x64xf32> to vector<16x32xf32>
    %220 = arith.mulf %218, %182 : vector<16x32xf32>
    %221 = arith.truncf %220 : vector<16x32xf32> to vector<16x32xbf16>
    %222 = vector.extract_strided_slice %4 {offsets = [0, 0, 0], sizes = [1, 32, 256], strides = [1, 1, 1]} : vector<2x32x256xbf16> to vector<1x32x256xbf16>
    %223 = vector.shape_cast %222 : vector<1x32x256xbf16> to vector<32x256xbf16>
    %cst_79 = arith.constant dense<0.000000e+00> : vector<16x256xf32>
    %224 = tpu.matmul %221, %223, %cst_79 {dimension_numbers = #tpu.dot_dimension_numbers<[1], [0], [0], [1], [0, 0, 1, 1], [], []>} : vector<16x32xbf16>, vector<32x256xbf16>, vector<16x256xf32> -> vector<16x256xf32>
    %cst_80 = arith.constant dense<0.000000e+00> : vector<16x32xf32>
    %225 = tpu.matmul %195, %221, %cst_80 {dimension_numbers = #tpu.dot_dimension_numbers<[1], [0], [0], [1], [0, 0, 1, 1], [], []>} : vector<16x16xbf16>, vector<16x32xbf16>, vector<16x32xf32> -> vector<16x32xf32>
    %226 = arith.truncf %225 : vector<16x32xf32> to vector<16x32xbf16>
    %227 = vector.extract_strided_slice %4 {offsets = [1, 0, 0], sizes = [1, 32, 256], strides = [1, 1, 1]} : vector<2x32x256xbf16> to vector<1x32x256xbf16>
    %228 = vector.shape_cast %227 : vector<1x32x256xbf16> to vector<32x256xbf16>
    %cst_81 = arith.constant dense<0.000000e+00> : vector<16x256xf32>
    %229 = tpu.matmul %226, %228, %cst_81 {dimension_numbers = #tpu.dot_dimension_numbers<[1], [0], [0], [1], [0, 0, 1, 1], [], []>} : vector<16x32xbf16>, vector<32x256xbf16>, vector<16x256xf32> -> vector<16x256xf32>
    %230 = arith.addf %224, %229 : vector<16x256xf32>
    %cst_82 = arith.constant dense<0.000000e+00> : vector<16x256xf32>
    %231 = tpu.matmul %197, %7, %cst_82 {dimension_numbers = #tpu.dot_dimension_numbers<[1], [0], [0], [1], [0, 0, 1, 1], [], []>} : vector<16x8xbf16>, vector<8x256xbf16>, vector<16x256xf32> -> vector<16x256xf32>
    %232 = arith.mulf %230, %231 : vector<16x256xf32>
    %233 = arith.truncf %232 : vector<16x256xf32> to vector<16x256xbf16>
    %cst_83 = arith.constant dense<0.000000e+00> : vector<16x32xf32>
    %234 = tpu.matmul %233, %8, %cst_83 {dimension_numbers = #tpu.dot_dimension_numbers<[1], [0], [0], [1], [0, 0, 1, 1], [], []>} : vector<16x256xbf16>, vector<256x32xbf16>, vector<16x32xf32> -> vector<16x32xf32>
    %235 = arith.addf %193, %234 : vector<16x32xf32>
    %236 = math.tanh %235 : vector<16x32xf32>
    %237 = arith.mulf %219, %182 : vector<16x32xf32>
    %cst_84 = arith.constant 1.000000e+00 : f32
    %238 = vector.broadcast %cst_84 : f32 to vector<16x32xf32>
    %239 = arith.subf %238, %219 : vector<16x32xf32>
    %240 = arith.mulf %239, %236 : vector<16x32xf32>
    %241 = arith.addf %237, %240 : vector<16x32xf32>
    %c0_85 = arith.constant 0 : index
    %242 = arith.index_cast %c3_i32 : i32 to index
    %c0_86 = arith.constant 0 : index
    %c0_87 = arith.constant 0 : index
    %243 = vector.load %arg10[%c0_85, %242, %c0_86, %c0_87] : memref<1x8x16x32xf32, #tpu.memory_space<vmem>>, vector<1x1x16x32xf32>
    %244 = vector.shape_cast %243 : vector<1x1x16x32xf32> to vector<16x32xf32>
    %245 = vector.shape_cast %241 : vector<16x32xf32> to vector<1x1x16x32xf32>
    tpu.vector_store %arg10[%c0_85, %242, %c0_86, %c0_87], %245 {strides = array<i32>} : memref<1x8x16x32xf32, #tpu.memory_space<vmem>>, vector<1x1x16x32xf32>,
    %c4_i32 = arith.constant 4 : i32
    %c0_88 = arith.constant 0 : index
    %246 = arith.index_cast %c4_i32 : i32 to index
    %c0_89 = arith.constant 0 : index
    %c0_90 = arith.constant 0 : index
    %247 = vector.load %arg3[%c0_88, %246, %c0_89, %c0_90] : memref<1x8x16x144xbf16, #tpu.memory_space<vmem>>, vector<1x1x16x144xbf16>
    %248 = vector.shape_cast %247 : vector<1x1x16x144xbf16> to vector<16x144xbf16>
    %249 = vector.extract_strided_slice %248 {offsets = [0, 0], sizes = [16, 64], strides = [1, 1]} : vector<16x144xbf16> to vector<16x64xbf16>
    %250 = arith.extf %249 : vector<16x64xbf16> to vector<16x64xf32>
    %251 = vector.extract_strided_slice %248 {offsets = [0, 64], sizes = [16, 32], strides = [1, 1]} : vector<16x144xbf16> to vector<16x32xbf16>
    %252 = arith.extf %251 : vector<16x32xbf16> to vector<16x32xf32>
    %253 = vector.extract_strided_slice %248 {offsets = [0, 96], sizes = [16, 16], strides = [1, 1]} : vector<16x144xbf16> to vector<16x16xbf16>
    %254 = vector.extract_strided_slice %248 {offsets = [0, 112], sizes = [16, 16], strides = [1, 1]} : vector<16x144xbf16> to vector<16x16xbf16>
    %255 = vector.extract_strided_slice %248 {offsets = [0, 128], sizes = [16, 8], strides = [1, 1]} : vector<16x144xbf16> to vector<16x8xbf16>
    %256 = vector.extract_strided_slice %248 {offsets = [0, 136], sizes = [16, 8], strides = [1, 1]} : vector<16x144xbf16> to vector<16x8xbf16>
    %257 = arith.truncf %241 : vector<16x32xf32> to vector<16x32xbf16>
    %258 = vector.extract_strided_slice %3 {offsets = [0, 0, 0], sizes = [1, 32, 512], strides = [1, 1, 1]} : vector<2x32x512xbf16> to vector<1x32x512xbf16>
    %259 = vector.shape_cast %258 : vector<1x32x512xbf16> to vector<32x512xbf16>
    %cst_91 = arith.constant dense<0.000000e+00> : vector<16x512xf32>
    %260 = tpu.matmul %257, %259, %cst_91 {dimension_numbers = #tpu.dot_dimension_numbers<[1], [0], [0], [1], [0, 0, 1, 1], [], []>} : vector<16x32xbf16>, vector<32x512xbf16>, vector<16x512xf32> -> vector<16x512xf32>
    %cst_92 = arith.constant dense<0.000000e+00> : vector<16x32xf32>
    %261 = tpu.matmul %253, %257, %cst_92 {dimension_numbers = #tpu.dot_dimension_numbers<[1], [0], [0], [1], [0, 0, 1, 1], [], []>} : vector<16x16xbf16>, vector<16x32xbf16>, vector<16x32xf32> -> vector<16x32xf32>
    %262 = arith.truncf %261 : vector<16x32xf32> to vector<16x32xbf16>
    %263 = vector.extract_strided_slice %3 {offsets = [1, 0, 0], sizes = [1, 32, 512], strides = [1, 1, 1]} : vector<2x32x512xbf16> to vector<1x32x512xbf16>
    %264 = vector.shape_cast %263 : vector<1x32x512xbf16> to vector<32x512xbf16>
    %cst_93 = arith.constant dense<0.000000e+00> : vector<16x512xf32>
    %265 = tpu.matmul %262, %264, %cst_93 {dimension_numbers = #tpu.dot_dimension_numbers<[1], [0], [0], [1], [0, 0, 1, 1], [], []>} : vector<16x32xbf16>, vector<32x512xbf16>, vector<16x512xf32> -> vector<16x512xf32>
    %266 = arith.addf %260, %265 : vector<16x512xf32>
    %cst_94 = arith.constant dense<0.000000e+00> : vector<16x512xf32>
    %267 = tpu.matmul %255, %5, %cst_94 {dimension_numbers = #tpu.dot_dimension_numbers<[1], [0], [0], [1], [0, 0, 1, 1], [], []>} : vector<16x8xbf16>, vector<8x512xbf16>, vector<16x512xf32> -> vector<16x512xf32>
    %268 = arith.mulf %266, %267 : vector<16x512xf32>
    %269 = arith.truncf %268 : vector<16x512xf32> to vector<16x512xbf16>
    %cst_95 = arith.constant dense<0.000000e+00> : vector<16x64xf32>
    %270 = tpu.matmul %269, %6, %cst_95 {dimension_numbers = #tpu.dot_dimension_numbers<[1], [0], [0], [1], [0, 0, 1, 1], [], []>} : vector<16x512xbf16>, vector<512x64xbf16>, vector<16x64xf32> -> vector<16x64xf32>
    %271 = arith.addf %250, %270 : vector<16x64xf32>
    %272 = arith.negf %271 : vector<16x64xf32>
    %273 = math.exp %272 : vector<16x64xf32>
    %cst_96 = arith.constant 1.000000e+00 : f32
    %274 = vector.broadcast %cst_96 : f32 to vector<16x64xf32>
    %275 = arith.addf %274, %273 : vector<16x64xf32>
    %276 = arith.divf %274, %275 : vector<16x64xf32>
    %277 = vector.extract_strided_slice %276 {offsets = [0, 0], sizes = [16, 32], strides = [1, 1]} : vector<16x64xf32> to vector<16x32xf32>
    %278 = vector.extract_strided_slice %276 {offsets = [0, 32], sizes = [16, 32], strides = [1, 1]} : vector<16x64xf32> to vector<16x32xf32>
    %279 = arith.mulf %277, %241 : vector<16x32xf32>
    %280 = arith.truncf %279 : vector<16x32xf32> to vector<16x32xbf16>
    %281 = vector.extract_strided_slice %4 {offsets = [0, 0, 0], sizes = [1, 32, 256], strides = [1, 1, 1]} : vector<2x32x256xbf16> to vector<1x32x256xbf16>
    %282 = vector.shape_cast %281 : vector<1x32x256xbf16> to vector<32x256xbf16>
    %cst_97 = arith.constant dense<0.000000e+00> : vector<16x256xf32>
    %283 = tpu.matmul %280, %282, %cst_97 {dimension_numbers = #tpu.dot_dimension_numbers<[1], [0], [0], [1], [0, 0, 1, 1], [], []>} : vector<16x32xbf16>, vector<32x256xbf16>, vector<16x256xf32> -> vector<16x256xf32>
    %cst_98 = arith.constant dense<0.000000e+00> : vector<16x32xf32>
    %284 = tpu.matmul %254, %280, %cst_98 {dimension_numbers = #tpu.dot_dimension_numbers<[1], [0], [0], [1], [0, 0, 1, 1], [], []>} : vector<16x16xbf16>, vector<16x32xbf16>, vector<16x32xf32> -> vector<16x32xf32>
    %285 = arith.truncf %284 : vector<16x32xf32> to vector<16x32xbf16>
    %286 = vector.extract_strided_slice %4 {offsets = [1, 0, 0], sizes = [1, 32, 256], strides = [1, 1, 1]} : vector<2x32x256xbf16> to vector<1x32x256xbf16>
    %287 = vector.shape_cast %286 : vector<1x32x256xbf16> to vector<32x256xbf16>
    %cst_99 = arith.constant dense<0.000000e+00> : vector<16x256xf32>
    %288 = tpu.matmul %285, %287, %cst_99 {dimension_numbers = #tpu.dot_dimension_numbers<[1], [0], [0], [1], [0, 0, 1, 1], [], []>} : vector<16x32xbf16>, vector<32x256xbf16>, vector<16x256xf32> -> vector<16x256xf32>
    %289 = arith.addf %283, %288 : vector<16x256xf32>
    %cst_100 = arith.constant dense<0.000000e+00> : vector<16x256xf32>
    %290 = tpu.matmul %256, %7, %cst_100 {dimension_numbers = #tpu.dot_dimension_numbers<[1], [0], [0], [1], [0, 0, 1, 1], [], []>} : vector<16x8xbf16>, vector<8x256xbf16>, vector<16x256xf32> -> vector<16x256xf32>
    %291 = arith.mulf %289, %290 : vector<16x256xf32>
    %292 = arith.truncf %291 : vector<16x256xf32> to vector<16x256xbf16>
    %cst_101 = arith.constant dense<0.000000e+00> : vector<16x32xf32>
    %293 = tpu.matmul %292, %8, %cst_101 {dimension_numbers = #tpu.dot_dimension_numbers<[1], [0], [0], [1], [0, 0, 1, 1], [], []>} : vector<16x256xbf16>, vector<256x32xbf16>, vector<16x32xf32> -> vector<16x32xf32>
    %294 = arith.addf %252, %293 : vector<16x32xf32>
    %295 = math.tanh %294 : vector<16x32xf32>
    %296 = arith.mulf %278, %241 : vector<16x32xf32>
    %cst_102 = arith.constant 1.000000e+00 : f32
    %297 = vector.broadcast %cst_102 : f32 to vector<16x32xf32>
    %298 = arith.subf %297, %278 : vector<16x32xf32>
    %299 = arith.mulf %298, %295 : vector<16x32xf32>
    %300 = arith.addf %296, %299 : vector<16x32xf32>
    %c0_103 = arith.constant 0 : index
    %301 = arith.index_cast %c4_i32 : i32 to index
    %c0_104 = arith.constant 0 : index
    %c0_105 = arith.constant 0 : index
    %302 = vector.load %arg10[%c0_103, %301, %c0_104, %c0_105] : memref<1x8x16x32xf32, #tpu.memory_space<vmem>>, vector<1x1x16x32xf32>
    %303 = vector.shape_cast %302 : vector<1x1x16x32xf32> to vector<16x32xf32>
    %304 = vector.shape_cast %300 : vector<16x32xf32> to vector<1x1x16x32xf32>
    tpu.vector_store %arg10[%c0_103, %301, %c0_104, %c0_105], %304 {strides = array<i32>} : memref<1x8x16x32xf32, #tpu.memory_space<vmem>>, vector<1x1x16x32xf32>,
    %c5_i32 = arith.constant 5 : i32
    %c0_106 = arith.constant 0 : index
    %305 = arith.index_cast %c5_i32 : i32 to index
    %c0_107 = arith.constant 0 : index
    %c0_108 = arith.constant 0 : index
    %306 = vector.load %arg3[%c0_106, %305, %c0_107, %c0_108] : memref<1x8x16x144xbf16, #tpu.memory_space<vmem>>, vector<1x1x16x144xbf16>
    %307 = vector.shape_cast %306 : vector<1x1x16x144xbf16> to vector<16x144xbf16>
    %308 = vector.extract_strided_slice %307 {offsets = [0, 0], sizes = [16, 64], strides = [1, 1]} : vector<16x144xbf16> to vector<16x64xbf16>
    %309 = arith.extf %308 : vector<16x64xbf16> to vector<16x64xf32>
    %310 = vector.extract_strided_slice %307 {offsets = [0, 64], sizes = [16, 32], strides = [1, 1]} : vector<16x144xbf16> to vector<16x32xbf16>
    %311 = arith.extf %310 : vector<16x32xbf16> to vector<16x32xf32>
    %312 = vector.extract_strided_slice %307 {offsets = [0, 96], sizes = [16, 16], strides = [1, 1]} : vector<16x144xbf16> to vector<16x16xbf16>
    %313 = vector.extract_strided_slice %307 {offsets = [0, 112], sizes = [16, 16], strides = [1, 1]} : vector<16x144xbf16> to vector<16x16xbf16>
    %314 = vector.extract_strided_slice %307 {offsets = [0, 128], sizes = [16, 8], strides = [1, 1]} : vector<16x144xbf16> to vector<16x8xbf16>
    %315 = vector.extract_strided_slice %307 {offsets = [0, 136], sizes = [16, 8], strides = [1, 1]} : vector<16x144xbf16> to vector<16x8xbf16>
    %316 = arith.truncf %300 : vector<16x32xf32> to vector<16x32xbf16>
    %317 = vector.extract_strided_slice %3 {offsets = [0, 0, 0], sizes = [1, 32, 512], strides = [1, 1, 1]} : vector<2x32x512xbf16> to vector<1x32x512xbf16>
    %318 = vector.shape_cast %317 : vector<1x32x512xbf16> to vector<32x512xbf16>
    %cst_109 = arith.constant dense<0.000000e+00> : vector<16x512xf32>
    %319 = tpu.matmul %316, %318, %cst_109 {dimension_numbers = #tpu.dot_dimension_numbers<[1], [0], [0], [1], [0, 0, 1, 1], [], []>} : vector<16x32xbf16>, vector<32x512xbf16>, vector<16x512xf32> -> vector<16x512xf32>
    %cst_110 = arith.constant dense<0.000000e+00> : vector<16x32xf32>
    %320 = tpu.matmul %312, %316, %cst_110 {dimension_numbers = #tpu.dot_dimension_numbers<[1], [0], [0], [1], [0, 0, 1, 1], [], []>} : vector<16x16xbf16>, vector<16x32xbf16>, vector<16x32xf32> -> vector<16x32xf32>
    %321 = arith.truncf %320 : vector<16x32xf32> to vector<16x32xbf16>
    %322 = vector.extract_strided_slice %3 {offsets = [1, 0, 0], sizes = [1, 32, 512], strides = [1, 1, 1]} : vector<2x32x512xbf16> to vector<1x32x512xbf16>
    %323 = vector.shape_cast %322 : vector<1x32x512xbf16> to vector<32x512xbf16>
    %cst_111 = arith.constant dense<0.000000e+00> : vector<16x512xf32>
    %324 = tpu.matmul %321, %323, %cst_111 {dimension_numbers = #tpu.dot_dimension_numbers<[1], [0], [0], [1], [0, 0, 1, 1], [], []>} : vector<16x32xbf16>, vector<32x512xbf16>, vector<16x512xf32> -> vector<16x512xf32>
    %325 = arith.addf %319, %324 : vector<16x512xf32>
    %cst_112 = arith.constant dense<0.000000e+00> : vector<16x512xf32>
    %326 = tpu.matmul %314, %5, %cst_112 {dimension_numbers = #tpu.dot_dimension_numbers<[1], [0], [0], [1], [0, 0, 1, 1], [], []>} : vector<16x8xbf16>, vector<8x512xbf16>, vector<16x512xf32> -> vector<16x512xf32>
    %327 = arith.mulf %325, %326 : vector<16x512xf32>
    %328 = arith.truncf %327 : vector<16x512xf32> to vector<16x512xbf16>
    %cst_113 = arith.constant dense<0.000000e+00> : vector<16x64xf32>
    %329 = tpu.matmul %328, %6, %cst_113 {dimension_numbers = #tpu.dot_dimension_numbers<[1], [0], [0], [1], [0, 0, 1, 1], [], []>} : vector<16x512xbf16>, vector<512x64xbf16>, vector<16x64xf32> -> vector<16x64xf32>
    %330 = arith.addf %309, %329 : vector<16x64xf32>
    %331 = arith.negf %330 : vector<16x64xf32>
    %332 = math.exp %331 : vector<16x64xf32>
    %cst_114 = arith.constant 1.000000e+00 : f32
    %333 = vector.broadcast %cst_114 : f32 to vector<16x64xf32>
    %334 = arith.addf %333, %332 : vector<16x64xf32>
    %335 = arith.divf %333, %334 : vector<16x64xf32>
    %336 = vector.extract_strided_slice %335 {offsets = [0, 0], sizes = [16, 32], strides = [1, 1]} : vector<16x64xf32> to vector<16x32xf32>
    %337 = vector.extract_strided_slice %335 {offsets = [0, 32], sizes = [16, 32], strides = [1, 1]} : vector<16x64xf32> to vector<16x32xf32>
    %338 = arith.mulf %336, %300 : vector<16x32xf32>
    %339 = arith.truncf %338 : vector<16x32xf32> to vector<16x32xbf16>
    %340 = vector.extract_strided_slice %4 {offsets = [0, 0, 0], sizes = [1, 32, 256], strides = [1, 1, 1]} : vector<2x32x256xbf16> to vector<1x32x256xbf16>
    %341 = vector.shape_cast %340 : vector<1x32x256xbf16> to vector<32x256xbf16>
    %cst_115 = arith.constant dense<0.000000e+00> : vector<16x256xf32>
    %342 = tpu.matmul %339, %341, %cst_115 {dimension_numbers = #tpu.dot_dimension_numbers<[1], [0], [0], [1], [0, 0, 1, 1], [], []>} : vector<16x32xbf16>, vector<32x256xbf16>, vector<16x256xf32> -> vector<16x256xf32>
    %cst_116 = arith.constant dense<0.000000e+00> : vector<16x32xf32>
    %343 = tpu.matmul %313, %339, %cst_116 {dimension_numbers = #tpu.dot_dimension_numbers<[1], [0], [0], [1], [0, 0, 1, 1], [], []>} : vector<16x16xbf16>, vector<16x32xbf16>, vector<16x32xf32> -> vector<16x32xf32>
    %344 = arith.truncf %343 : vector<16x32xf32> to vector<16x32xbf16>
    %345 = vector.extract_strided_slice %4 {offsets = [1, 0, 0], sizes = [1, 32, 256], strides = [1, 1, 1]} : vector<2x32x256xbf16> to vector<1x32x256xbf16>
    %346 = vector.shape_cast %345 : vector<1x32x256xbf16> to vector<32x256xbf16>
    %cst_117 = arith.constant dense<0.000000e+00> : vector<16x256xf32>
    %347 = tpu.matmul %344, %346, %cst_117 {dimension_numbers = #tpu.dot_dimension_numbers<[1], [0], [0], [1], [0, 0, 1, 1], [], []>} : vector<16x32xbf16>, vector<32x256xbf16>, vector<16x256xf32> -> vector<16x256xf32>
    %348 = arith.addf %342, %347 : vector<16x256xf32>
    %cst_118 = arith.constant dense<0.000000e+00> : vector<16x256xf32>
    %349 = tpu.matmul %315, %7, %cst_118 {dimension_numbers = #tpu.dot_dimension_numbers<[1], [0], [0], [1], [0, 0, 1, 1], [], []>} : vector<16x8xbf16>, vector<8x256xbf16>, vector<16x256xf32> -> vector<16x256xf32>
    %350 = arith.mulf %348, %349 : vector<16x256xf32>
    %351 = arith.truncf %350 : vector<16x256xf32> to vector<16x256xbf16>
    %cst_119 = arith.constant dense<0.000000e+00> : vector<16x32xf32>
    %352 = tpu.matmul %351, %8, %cst_119 {dimension_numbers = #tpu.dot_dimension_numbers<[1], [0], [0], [1], [0, 0, 1, 1], [], []>} : vector<16x256xbf16>, vector<256x32xbf16>, vector<16x32xf32> -> vector<16x32xf32>
    %353 = arith.addf %311, %352 : vector<16x32xf32>
    %354 = math.tanh %353 : vector<16x32xf32>
    %355 = arith.mulf %337, %300 : vector<16x32xf32>
    %cst_120 = arith.constant 1.000000e+00 : f32
    %356 = vector.broadcast %cst_120 : f32 to vector<16x32xf32>
    %357 = arith.subf %356, %337 : vector<16x32xf32>
    %358 = arith.mulf %357, %354 : vector<16x32xf32>
    %359 = arith.addf %355, %358 : vector<16x32xf32>
    %c0_121 = arith.constant 0 : index
    %360 = arith.index_cast %c5_i32 : i32 to index
    %c0_122 = arith.constant 0 : index
    %c0_123 = arith.constant 0 : index
    %361 = vector.load %arg10[%c0_121, %360, %c0_122, %c0_123] : memref<1x8x16x32xf32, #tpu.memory_space<vmem>>, vector<1x1x16x32xf32>
    %362 = vector.shape_cast %361 : vector<1x1x16x32xf32> to vector<16x32xf32>
    %363 = vector.shape_cast %359 : vector<16x32xf32> to vector<1x1x16x32xf32>
    tpu.vector_store %arg10[%c0_121, %360, %c0_122, %c0_123], %363 {strides = array<i32>} : memref<1x8x16x32xf32, #tpu.memory_space<vmem>>, vector<1x1x16x32xf32>,
    %c6_i32 = arith.constant 6 : i32
    %c0_124 = arith.constant 0 : index
    %364 = arith.index_cast %c6_i32 : i32 to index
    %c0_125 = arith.constant 0 : index
    %c0_126 = arith.constant 0 : index
    %365 = vector.load %arg3[%c0_124, %364, %c0_125, %c0_126] : memref<1x8x16x144xbf16, #tpu.memory_space<vmem>>, vector<1x1x16x144xbf16>
    %366 = vector.shape_cast %365 : vector<1x1x16x144xbf16> to vector<16x144xbf16>
    %367 = vector.extract_strided_slice %366 {offsets = [0, 0], sizes = [16, 64], strides = [1, 1]} : vector<16x144xbf16> to vector<16x64xbf16>
    %368 = arith.extf %367 : vector<16x64xbf16> to vector<16x64xf32>
    %369 = vector.extract_strided_slice %366 {offsets = [0, 64], sizes = [16, 32], strides = [1, 1]} : vector<16x144xbf16> to vector<16x32xbf16>
    %370 = arith.extf %369 : vector<16x32xbf16> to vector<16x32xf32>
    %371 = vector.extract_strided_slice %366 {offsets = [0, 96], sizes = [16, 16], strides = [1, 1]} : vector<16x144xbf16> to vector<16x16xbf16>
    %372 = vector.extract_strided_slice %366 {offsets = [0, 112], sizes = [16, 16], strides = [1, 1]} : vector<16x144xbf16> to vector<16x16xbf16>
    %373 = vector.extract_strided_slice %366 {offsets = [0, 128], sizes = [16, 8], strides = [1, 1]} : vector<16x144xbf16> to vector<16x8xbf16>
    %374 = vector.extract_strided_slice %366 {offsets = [0, 136], sizes = [16, 8], strides = [1, 1]} : vector<16x144xbf16> to vector<16x8xbf16>
    %375 = arith.truncf %359 : vector<16x32xf32> to vector<16x32xbf16>
    %376 = vector.extract_strided_slice %3 {offsets = [0, 0, 0], sizes = [1, 32, 512], strides = [1, 1, 1]} : vector<2x32x512xbf16> to vector<1x32x512xbf16>
    %377 = vector.shape_cast %376 : vector<1x32x512xbf16> to vector<32x512xbf16>
    %cst_127 = arith.constant dense<0.000000e+00> : vector<16x512xf32>
    %378 = tpu.matmul %375, %377, %cst_127 {dimension_numbers = #tpu.dot_dimension_numbers<[1], [0], [0], [1], [0, 0, 1, 1], [], []>} : vector<16x32xbf16>, vector<32x512xbf16>, vector<16x512xf32> -> vector<16x512xf32>
    %cst_128 = arith.constant dense<0.000000e+00> : vector<16x32xf32>
    %379 = tpu.matmul %371, %375, %cst_128 {dimension_numbers = #tpu.dot_dimension_numbers<[1], [0], [0], [1], [0, 0, 1, 1], [], []>} : vector<16x16xbf16>, vector<16x32xbf16>, vector<16x32xf32> -> vector<16x32xf32>
    %380 = arith.truncf %379 : vector<16x32xf32> to vector<16x32xbf16>
    %381 = vector.extract_strided_slice %3 {offsets = [1, 0, 0], sizes = [1, 32, 512], strides = [1, 1, 1]} : vector<2x32x512xbf16> to vector<1x32x512xbf16>
    %382 = vector.shape_cast %381 : vector<1x32x512xbf16> to vector<32x512xbf16>
    %cst_129 = arith.constant dense<0.000000e+00> : vector<16x512xf32>
    %383 = tpu.matmul %380, %382, %cst_129 {dimension_numbers = #tpu.dot_dimension_numbers<[1], [0], [0], [1], [0, 0, 1, 1], [], []>} : vector<16x32xbf16>, vector<32x512xbf16>, vector<16x512xf32> -> vector<16x512xf32>
    %384 = arith.addf %378, %383 : vector<16x512xf32>
    %cst_130 = arith.constant dense<0.000000e+00> : vector<16x512xf32>
    %385 = tpu.matmul %373, %5, %cst_130 {dimension_numbers = #tpu.dot_dimension_numbers<[1], [0], [0], [1], [0, 0, 1, 1], [], []>} : vector<16x8xbf16>, vector<8x512xbf16>, vector<16x512xf32> -> vector<16x512xf32>
    %386 = arith.mulf %384, %385 : vector<16x512xf32>
    %387 = arith.truncf %386 : vector<16x512xf32> to vector<16x512xbf16>
    %cst_131 = arith.constant dense<0.000000e+00> : vector<16x64xf32>
    %388 = tpu.matmul %387, %6, %cst_131 {dimension_numbers = #tpu.dot_dimension_numbers<[1], [0], [0], [1], [0, 0, 1, 1], [], []>} : vector<16x512xbf16>, vector<512x64xbf16>, vector<16x64xf32> -> vector<16x64xf32>
    %389 = arith.addf %368, %388 : vector<16x64xf32>
    %390 = arith.negf %389 : vector<16x64xf32>
    %391 = math.exp %390 : vector<16x64xf32>
    %cst_132 = arith.constant 1.000000e+00 : f32
    %392 = vector.broadcast %cst_132 : f32 to vector<16x64xf32>
    %393 = arith.addf %392, %391 : vector<16x64xf32>
    %394 = arith.divf %392, %393 : vector<16x64xf32>
    %395 = vector.extract_strided_slice %394 {offsets = [0, 0], sizes = [16, 32], strides = [1, 1]} : vector<16x64xf32> to vector<16x32xf32>
    %396 = vector.extract_strided_slice %394 {offsets = [0, 32], sizes = [16, 32], strides = [1, 1]} : vector<16x64xf32> to vector<16x32xf32>
    %397 = arith.mulf %395, %359 : vector<16x32xf32>
    %398 = arith.truncf %397 : vector<16x32xf32> to vector<16x32xbf16>
    %399 = vector.extract_strided_slice %4 {offsets = [0, 0, 0], sizes = [1, 32, 256], strides = [1, 1, 1]} : vector<2x32x256xbf16> to vector<1x32x256xbf16>
    %400 = vector.shape_cast %399 : vector<1x32x256xbf16> to vector<32x256xbf16>
    %cst_133 = arith.constant dense<0.000000e+00> : vector<16x256xf32>
    %401 = tpu.matmul %398, %400, %cst_133 {dimension_numbers = #tpu.dot_dimension_numbers<[1], [0], [0], [1], [0, 0, 1, 1], [], []>} : vector<16x32xbf16>, vector<32x256xbf16>, vector<16x256xf32> -> vector<16x256xf32>
    %cst_134 = arith.constant dense<0.000000e+00> : vector<16x32xf32>
    %402 = tpu.matmul %372, %398, %cst_134 {dimension_numbers = #tpu.dot_dimension_numbers<[1], [0], [0], [1], [0, 0, 1, 1], [], []>} : vector<16x16xbf16>, vector<16x32xbf16>, vector<16x32xf32> -> vector<16x32xf32>
    %403 = arith.truncf %402 : vector<16x32xf32> to vector<16x32xbf16>
    %404 = vector.extract_strided_slice %4 {offsets = [1, 0, 0], sizes = [1, 32, 256], strides = [1, 1, 1]} : vector<2x32x256xbf16> to vector<1x32x256xbf16>
    %405 = vector.shape_cast %404 : vector<1x32x256xbf16> to vector<32x256xbf16>
    %cst_135 = arith.constant dense<0.000000e+00> : vector<16x256xf32>
    %406 = tpu.matmul %403, %405, %cst_135 {dimension_numbers = #tpu.dot_dimension_numbers<[1], [0], [0], [1], [0, 0, 1, 1], [], []>} : vector<16x32xbf16>, vector<32x256xbf16>, vector<16x256xf32> -> vector<16x256xf32>
    %407 = arith.addf %401, %406 : vector<16x256xf32>
    %cst_136 = arith.constant dense<0.000000e+00> : vector<16x256xf32>
    %408 = tpu.matmul %374, %7, %cst_136 {dimension_numbers = #tpu.dot_dimension_numbers<[1], [0], [0], [1], [0, 0, 1, 1], [], []>} : vector<16x8xbf16>, vector<8x256xbf16>, vector<16x256xf32> -> vector<16x256xf32>
    %409 = arith.mulf %407, %408 : vector<16x256xf32>
    %410 = arith.truncf %409 : vector<16x256xf32> to vector<16x256xbf16>
    %cst_137 = arith.constant dense<0.000000e+00> : vector<16x32xf32>
    %411 = tpu.matmul %410, %8, %cst_137 {dimension_numbers = #tpu.dot_dimension_numbers<[1], [0], [0], [1], [0, 0, 1, 1], [], []>} : vector<16x256xbf16>, vector<256x32xbf16>, vector<16x32xf32> -> vector<16x32xf32>
    %412 = arith.addf %370, %411 : vector<16x32xf32>
    %413 = math.tanh %412 : vector<16x32xf32>
    %414 = arith.mulf %396, %359 : vector<16x32xf32>
    %cst_138 = arith.constant 1.000000e+00 : f32
    %415 = vector.broadcast %cst_138 : f32 to vector<16x32xf32>
    %416 = arith.subf %415, %396 : vector<16x32xf32>
    %417 = arith.mulf %416, %413 : vector<16x32xf32>
    %418 = arith.addf %414, %417 : vector<16x32xf32>
    %c0_139 = arith.constant 0 : index
    %419 = arith.index_cast %c6_i32 : i32 to index
    %c0_140 = arith.constant 0 : index
    %c0_141 = arith.constant 0 : index
    %420 = vector.load %arg10[%c0_139, %419, %c0_140, %c0_141] : memref<1x8x16x32xf32, #tpu.memory_space<vmem>>, vector<1x1x16x32xf32>
    %421 = vector.shape_cast %420 : vector<1x1x16x32xf32> to vector<16x32xf32>
    %422 = vector.shape_cast %418 : vector<16x32xf32> to vector<1x1x16x32xf32>
    tpu.vector_store %arg10[%c0_139, %419, %c0_140, %c0_141], %422 {strides = array<i32>} : memref<1x8x16x32xf32, #tpu.memory_space<vmem>>, vector<1x1x16x32xf32>,
    %c7_i32 = arith.constant 7 : i32
    %c0_142 = arith.constant 0 : index
    %423 = arith.index_cast %c7_i32 : i32 to index
    %c0_143 = arith.constant 0 : index
    %c0_144 = arith.constant 0 : index
    %424 = vector.load %arg3[%c0_142, %423, %c0_143, %c0_144] : memref<1x8x16x144xbf16, #tpu.memory_space<vmem>>, vector<1x1x16x144xbf16>
    %425 = vector.shape_cast %424 : vector<1x1x16x144xbf16> to vector<16x144xbf16>
    %426 = vector.extract_strided_slice %425 {offsets = [0, 0], sizes = [16, 64], strides = [1, 1]} : vector<16x144xbf16> to vector<16x64xbf16>
    %427 = arith.extf %426 : vector<16x64xbf16> to vector<16x64xf32>
    %428 = vector.extract_strided_slice %425 {offsets = [0, 64], sizes = [16, 32], strides = [1, 1]} : vector<16x144xbf16> to vector<16x32xbf16>
    %429 = arith.extf %428 : vector<16x32xbf16> to vector<16x32xf32>
    %430 = vector.extract_strided_slice %425 {offsets = [0, 96], sizes = [16, 16], strides = [1, 1]} : vector<16x144xbf16> to vector<16x16xbf16>
    %431 = vector.extract_strided_slice %425 {offsets = [0, 112], sizes = [16, 16], strides = [1, 1]} : vector<16x144xbf16> to vector<16x16xbf16>
    %432 = vector.extract_strided_slice %425 {offsets = [0, 128], sizes = [16, 8], strides = [1, 1]} : vector<16x144xbf16> to vector<16x8xbf16>
    %433 = vector.extract_strided_slice %425 {offsets = [0, 136], sizes = [16, 8], strides = [1, 1]} : vector<16x144xbf16> to vector<16x8xbf16>
    %434 = arith.truncf %418 : vector<16x32xf32> to vector<16x32xbf16>
    %435 = vector.extract_strided_slice %3 {offsets = [0, 0, 0], sizes = [1, 32, 512], strides = [1, 1, 1]} : vector<2x32x512xbf16> to vector<1x32x512xbf16>
    %436 = vector.shape_cast %435 : vector<1x32x512xbf16> to vector<32x512xbf16>
    %cst_145 = arith.constant dense<0.000000e+00> : vector<16x512xf32>
    %437 = tpu.matmul %434, %436, %cst_145 {dimension_numbers = #tpu.dot_dimension_numbers<[1], [0], [0], [1], [0, 0, 1, 1], [], []>} : vector<16x32xbf16>, vector<32x512xbf16>, vector<16x512xf32> -> vector<16x512xf32>
    %cst_146 = arith.constant dense<0.000000e+00> : vector<16x32xf32>
    %438 = tpu.matmul %430, %434, %cst_146 {dimension_numbers = #tpu.dot_dimension_numbers<[1], [0], [0], [1], [0, 0, 1, 1], [], []>} : vector<16x16xbf16>, vector<16x32xbf16>, vector<16x32xf32> -> vector<16x32xf32>
    %439 = arith.truncf %438 : vector<16x32xf32> to vector<16x32xbf16>
    %440 = vector.extract_strided_slice %3 {offsets = [1, 0, 0], sizes = [1, 32, 512], strides = [1, 1, 1]} : vector<2x32x512xbf16> to vector<1x32x512xbf16>
    %441 = vector.shape_cast %440 : vector<1x32x512xbf16> to vector<32x512xbf16>
    %cst_147 = arith.constant dense<0.000000e+00> : vector<16x512xf32>
    %442 = tpu.matmul %439, %441, %cst_147 {dimension_numbers = #tpu.dot_dimension_numbers<[1], [0], [0], [1], [0, 0, 1, 1], [], []>} : vector<16x32xbf16>, vector<32x512xbf16>, vector<16x512xf32> -> vector<16x512xf32>
    %443 = arith.addf %437, %442 : vector<16x512xf32>
    %cst_148 = arith.constant dense<0.000000e+00> : vector<16x512xf32>
    %444 = tpu.matmul %432, %5, %cst_148 {dimension_numbers = #tpu.dot_dimension_numbers<[1], [0], [0], [1], [0, 0, 1, 1], [], []>} : vector<16x8xbf16>, vector<8x512xbf16>, vector<16x512xf32> -> vector<16x512xf32>
    %445 = arith.mulf %443, %444 : vector<16x512xf32>
    %446 = arith.truncf %445 : vector<16x512xf32> to vector<16x512xbf16>
    %cst_149 = arith.constant dense<0.000000e+00> : vector<16x64xf32>
    %447 = tpu.matmul %446, %6, %cst_149 {dimension_numbers = #tpu.dot_dimension_numbers<[1], [0], [0], [1], [0, 0, 1, 1], [], []>} : vector<16x512xbf16>, vector<512x64xbf16>, vector<16x64xf32> -> vector<16x64xf32>
    %448 = arith.addf %427, %447 : vector<16x64xf32>
    %449 = arith.negf %448 : vector<16x64xf32>
    %450 = math.exp %449 : vector<16x64xf32>
    %cst_150 = arith.constant 1.000000e+00 : f32
    %451 = vector.broadcast %cst_150 : f32 to vector<16x64xf32>
    %452 = arith.addf %451, %450 : vector<16x64xf32>
    %453 = arith.divf %451, %452 : vector<16x64xf32>
    %454 = vector.extract_strided_slice %453 {offsets = [0, 0], sizes = [16, 32], strides = [1, 1]} : vector<16x64xf32> to vector<16x32xf32>
    %455 = vector.extract_strided_slice %453 {offsets = [0, 32], sizes = [16, 32], strides = [1, 1]} : vector<16x64xf32> to vector<16x32xf32>
    %456 = arith.mulf %454, %418 : vector<16x32xf32>
    %457 = arith.truncf %456 : vector<16x32xf32> to vector<16x32xbf16>
    %458 = vector.extract_strided_slice %4 {offsets = [0, 0, 0], sizes = [1, 32, 256], strides = [1, 1, 1]} : vector<2x32x256xbf16> to vector<1x32x256xbf16>
    %459 = vector.shape_cast %458 : vector<1x32x256xbf16> to vector<32x256xbf16>
    %cst_151 = arith.constant dense<0.000000e+00> : vector<16x256xf32>
    %460 = tpu.matmul %457, %459, %cst_151 {dimension_numbers = #tpu.dot_dimension_numbers<[1], [0], [0], [1], [0, 0, 1, 1], [], []>} : vector<16x32xbf16>, vector<32x256xbf16>, vector<16x256xf32> -> vector<16x256xf32>
    %cst_152 = arith.constant dense<0.000000e+00> : vector<16x32xf32>
    %461 = tpu.matmul %431, %457, %cst_152 {dimension_numbers = #tpu.dot_dimension_numbers<[1], [0], [0], [1], [0, 0, 1, 1], [], []>} : vector<16x16xbf16>, vector<16x32xbf16>, vector<16x32xf32> -> vector<16x32xf32>
    %462 = arith.truncf %461 : vector<16x32xf32> to vector<16x32xbf16>
    %463 = vector.extract_strided_slice %4 {offsets = [1, 0, 0], sizes = [1, 32, 256], strides = [1, 1, 1]} : vector<2x32x256xbf16> to vector<1x32x256xbf16>
    %464 = vector.shape_cast %463 : vector<1x32x256xbf16> to vector<32x256xbf16>
    %cst_153 = arith.constant dense<0.000000e+00> : vector<16x256xf32>
    %465 = tpu.matmul %462, %464, %cst_153 {dimension_numbers = #tpu.dot_dimension_numbers<[1], [0], [0], [1], [0, 0, 1, 1], [], []>} : vector<16x32xbf16>, vector<32x256xbf16>, vector<16x256xf32> -> vector<16x256xf32>
    %466 = arith.addf %460, %465 : vector<16x256xf32>
    %cst_154 = arith.constant dense<0.000000e+00> : vector<16x256xf32>
    %467 = tpu.matmul %433, %7, %cst_154 {dimension_numbers = #tpu.dot_dimension_numbers<[1], [0], [0], [1], [0, 0, 1, 1], [], []>} : vector<16x8xbf16>, vector<8x256xbf16>, vector<16x256xf32> -> vector<16x256xf32>
    %468 = arith.mulf %466, %467 : vector<16x256xf32>
    %469 = arith.truncf %468 : vector<16x256xf32> to vector<16x256xbf16>
    %cst_155 = arith.constant dense<0.000000e+00> : vector<16x32xf32>
    %470 = tpu.matmul %469, %8, %cst_155 {dimension_numbers = #tpu.dot_dimension_numbers<[1], [0], [0], [1], [0, 0, 1, 1], [], []>} : vector<16x256xbf16>, vector<256x32xbf16>, vector<16x32xf32> -> vector<16x32xf32>
    %471 = arith.addf %429, %470 : vector<16x32xf32>
    %472 = math.tanh %471 : vector<16x32xf32>
    %473 = arith.mulf %455, %418 : vector<16x32xf32>
    %cst_156 = arith.constant 1.000000e+00 : f32
    %474 = vector.broadcast %cst_156 : f32 to vector<16x32xf32>
    %475 = arith.subf %474, %455 : vector<16x32xf32>
    %476 = arith.mulf %475, %472 : vector<16x32xf32>
    %477 = arith.addf %473, %476 : vector<16x32xf32>
    %c0_157 = arith.constant 0 : index
    %478 = arith.index_cast %c7_i32 : i32 to index
    %c0_158 = arith.constant 0 : index
    %c0_159 = arith.constant 0 : index
    %479 = vector.load %arg10[%c0_157, %478, %c0_158, %c0_159] : memref<1x8x16x32xf32, #tpu.memory_space<vmem>>, vector<1x1x16x32xf32>
    %480 = vector.shape_cast %479 : vector<1x1x16x32xf32> to vector<16x32xf32>
    %481 = vector.shape_cast %477 : vector<16x32xf32> to vector<1x1x16x32xf32>
    tpu.vector_store %arg10[%c0_157, %478, %c0_158, %c0_159], %481 {strides = array<i32>} : memref<1x8x16x32xf32, #tpu.memory_space<vmem>>, vector<1x1x16x32xf32>,
    %c8_i32 = arith.constant 8 : i32
    %c0_160 = arith.constant 0 : index
    %c0_161 = arith.constant 0 : index
    %482 = vector.load %arg11[%c0_160, %c0_161] : memref<16x32xf32, #tpu.memory_space<vmem>>, vector<16x32xf32>
    tpu.vector_store %arg11[%c0_160, %c0_161], %477 {strides = array<i32>} : memref<16x32xf32, #tpu.memory_space<vmem>>, vector<16x32xf32>,
    return
  }
  func.func @transform_0(%arg0: i32, %arg1: i32) -> (i32, i32, i32) {
    %c0_i32 = arith.constant 0 : i32
    %c0_i32_0 = arith.constant 0 : i32
    %c0_i32_1 = arith.constant 0 : i32
    return %arg0, %c0_i32, %c0_i32_0 : i32, i32, i32
  }
  func.func @transform_1(%arg0: i32, %arg1: i32) -> (i32, i32, i32, i32) {
    %c0_i32 = arith.constant 0 : i32
    %c0_i32_0 = arith.constant 0 : i32
    %c0_i32_1 = arith.constant 0 : i32
    return %arg0, %arg1, %c0_i32, %c0_i32_0 : i32, i32, i32, i32
  }
  func.func @transform_2(%arg0: i32, %arg1: i32) -> (i32, i32, i32) {
    %c0_i32 = arith.constant 0 : i32
    %c0_i32_0 = arith.constant 0 : i32
    %c0_i32_1 = arith.constant 0 : i32
    %c0_i32_2 = arith.constant 0 : i32
    return %c0_i32, %c0_i32_0, %c0_i32_1 : i32, i32, i32
  }
  func.func @transform_3(%arg0: i32, %arg1: i32) -> (i32, i32, i32) {
    %c0_i32 = arith.constant 0 : i32
    %c0_i32_0 = arith.constant 0 : i32
    %c0_i32_1 = arith.constant 0 : i32
    %c0_i32_2 = arith.constant 0 : i32
    return %c0_i32, %c0_i32_0, %c0_i32_1 : i32, i32, i32
  }
  func.func @transform_4(%arg0: i32, %arg1: i32) -> (i32, i32) {
    %c0_i32 = arith.constant 0 : i32
    %c0_i32_0 = arith.constant 0 : i32
    %c0_i32_1 = arith.constant 0 : i32
    return %c0_i32, %c0_i32_0 : i32, i32
  }
  func.func @transform_5(%arg0: i32, %arg1: i32) -> (i32, i32) {
    %c0_i32 = arith.constant 0 : i32
    %c0_i32_0 = arith.constant 0 : i32
    %c0_i32_1 = arith.constant 0 : i32
    return %c0_i32, %c0_i32_0 : i32, i32
  }
  func.func @transform_6(%arg0: i32, %arg1: i32) -> (i32, i32) {
    %c0_i32 = arith.constant 0 : i32
    %c0_i32_0 = arith.constant 0 : i32
    %c0_i32_1 = arith.constant 0 : i32
    return %c0_i32, %c0_i32_0 : i32, i32
  }
  func.func @transform_7(%arg0: i32, %arg1: i32) -> (i32, i32) {
    %c0_i32 = arith.constant 0 : i32
    %c0_i32_0 = arith.constant 0 : i32
    %c0_i32_1 = arith.constant 0 : i32
    return %c0_i32, %c0_i32_0 : i32, i32
  }
  func.func @transform_8(%arg0: i32, %arg1: i32) -> (i32, i32, i32, i32) {
    %c0_i32 = arith.constant 0 : i32
    %c0_i32_0 = arith.constant 0 : i32
    %c0_i32_1 = arith.constant 0 : i32
    return %arg0, %arg1, %c0_i32, %c0_i32_0 : i32, i32, i32, i32
  }
}

</mosaic_0001>

<llo_original>
// kernel: pm_encoder_forward.2
$region0: #{pm_encoder_forward.2}
  #allocation0 [shape = 'u32[]', space=smem, size = 0x4, offset = 0x4, fixed_abs, tag = 'smem constant byte address 0x4 - core index']
  #allocation1 [shape = 'u32[72,128]{1,0:T(1,128)}', space=vmem, size = 0x9000, scoped, tag = 'internal scratch']
  #allocation2 [shape = 'f32[16,32]{1,0:T(8,128)}', space=vmem, size = 0x2000, scoped, tag = 'scratch operand']
  %s0 = inlined_call_operand.vmem [shape: f32[2,16,32], index: 0, kind: input, shape index: {}]
  %s1 = inlined_call_operand.vmem [shape: bf16[2,8,16,144], index: 1, kind: input, shape index: {}]
  %s2 = inlined_call_operand.vmem [shape: bf16[2,32,512], index: 2, kind: input, shape index: {}]
  %s3 = inlined_call_operand.vmem [shape: bf16[2,32,256], index: 3, kind: input, shape index: {}]
  %s4 = inlined_call_operand.vmem [shape: bf16[8,512], index: 4, kind: input, shape index: {}]
  %s5 = inlined_call_operand.vmem [shape: bf16[512,64], index: 5, kind: input, shape index: {}]
  %s6 = inlined_call_operand.vmem [shape: bf16[8,256], index: 6, kind: input, shape index: {}]
  %s7 = inlined_call_operand.vmem [shape: bf16[256,32], index: 7, kind: input, shape index: {}]
  %s8 = inlined_call_operand.vmem [shape: f32[2,8,16,32], index: 8, kind: output, shape index: {}]
  %s9 = sld [smem:[#allocation0]]
  $region69: #{pm_encoder_forward.2} parent=0
    _
  %s11 = ssub.s32 1, %s9
  %s12 = scalar_select 0, %s11, %s9
  loop: start=0, step=1, limit=4
  $region2: #{pm_encoder_forward.2} parent=0 // loop_pre_header
    _
  $region3: #{pm_encoder_forward.2} parent=0 // loop_header
    %s14 = sphi 0, %s18
    %p15 = scmp.ge.s32.totalorder %s14, 4
    %s21 = sphi 0, %s33
    %s22 = sphi 0, %s29
    %s23 = sphi 0, %s21
    %s24 = sphi 0, %s22
    %s25 = sphi 0, %s23
    %s26 = sphi 0, %s24
    %s36 = sphi 0, %s38
    %s39 = sphi 0, %s36
    %s40 = sphi 0, %s39
    %s56 = sphi 0, %s40
    %s64 = sphi 0, %s66
    %s67 = sphi 0, %s64
    %s68 = sphi 0, %s67
    %s84 = sphi 0, %s68
    %s88 = sphi 0, %s88
    %s90 = sphi 0, %s88
    %s91 = sphi 0, %s90
    %s105 = sphi 0, %s91
    %s109 = sphi 0, %s109
    %s111 = sphi 0, %s109
    %s112 = sphi 0, %s111
    %s126 = sphi 0, %s112
    %s130 = sphi 0, %s130
    %s132 = sphi 0, %s130
    %s133 = sphi 0, %s132
    %s147 = sphi 0, %s133
    %s151 = sphi 0, %s151
    %s153 = sphi 0, %s151
    %s154 = sphi 0, %s153
    %s168 = sphi 0, %s154
    %s172 = sphi 0, %s172
    %s174 = sphi 0, %s172
    %s175 = sphi 0, %s174
    %s189 = sphi 0, %s175
    %s193 = sphi 0, %s193
    %s195 = sphi 0, %s193
    %s196 = sphi 0, %s195
    %s210 = sphi 0, %s196
    %s218 = sphi 0, %s220
    %s221 = sphi 0, %s218
    %s222 = sphi 0, %s221
    %s238 = sphi 0, %s222
  $region4: #{pm_encoder_forward.2} parent=0 // loop_header_branch
    %17 = sbr.rel (%p15) target = $region8
  $region5: #{pm_encoder_forward.2} parent=0 // loop_body
    %s19 = ssub.s32 %s14, 1
    %s20 = ssub.s32 %s14, 2
    %s27 = sadd.s32 1, %s22
    %p28 = scmp.ge.s32.totalorder %s27, 1
    %s29 = scalar_select %p28, 0, %s27
    %s30 = sadd.s32 1, %s21
    %s31 = scalar_select %p28, %s30, %s21
    %p32 = scmp.ge.s32.totalorder %s31, 2
    %s33 = scalar_select %p32, 0, %s31
    %s34 = ssub.s32 %s21, %s33
    %p35 = scmp.eq.s32.totalorder %s34, 0
    %s37 = sadd.s32 %s36, 1
    %s38 = scalar_select %p35, %s36, %s37
    %p41 = pneg %p35
    %p42 = scmp.eq.s32.totalorder %s14, 1
    %p43 = por %p41, %p42
    %p44 = scmp.ne.s32.totalorder %s36, %s39
    %p45 = scmp.eq.s32.totalorder %s14, 0
    %p46 = por %p44, %p45
    %p47 = scmp.ne.s32.totalorder %s36, %s39
    %p48 = scmp.eq.s32.totalorder %s19, 1
    %p49 = por %p47, %p48
    %p50 = scmp.ne.s32.totalorder %s39, %s40
    %p51 = scmp.eq.s32.totalorder %s19, 0
    %p52 = por %p50, %p51
    %p53 = scmp.ne.s32.totalorder %s39, %s40
    %p54 = scmp.eq.s32.totalorder %s20, 1
    %p55 = por %p53, %p54
    %p57 = scmp.ne.s32.totalorder %s40, %s56
    %p58 = scmp.eq.s32.totalorder %s20, 0
    %p59 = por %p57, %p58
    %s60 = ssub.s32 %s21, %s33
    %s61 = ssub.s32 %s22, %s29
    %s62 = sor.u32 %s60, %s61
    %p63 = scmp.eq.s32.totalorder %s62, 0
    %s65 = sadd.s32 %s64, 1
    %s66 = scalar_select %p63, %s64, %s65
    %p69 = pneg %p63
    %p70 = scmp.eq.s32.totalorder %s14, 1
    %p71 = por %p69, %p70
    %p72 = scmp.ne.s32.totalorder %s64, %s67
    %p73 = scmp.eq.s32.totalorder %s14, 0
    %p74 = por %p72, %p73
    %p75 = scmp.ne.s32.totalorder %s64, %s67
    %p76 = scmp.eq.s32.totalorder %s19, 1
    %p77 = por %p75, %p76
    %p78 = scmp.ne.s32.totalorder %s67, %s68
    %p79 = scmp.eq.s32.totalorder %s19, 0
    %p80 = por %p78, %p79
    %p81 = scmp.ne.s32.totalorder %s67, %s68
    %p82 = scmp.eq.s32.totalorder %s20, 1
    %p83 = por %p81, %p82
    %p85 = scmp.ne.s32.totalorder %s68, %s84
    %p86 = scmp.eq.s32.totalorder %s20, 0
    %p87 = por %p85, %p86
    %s89 = sadd.s32 %s88, 1
    %p92 = scmp.eq.s32.totalorder %s14, 1
    %p93 = scmp.ne.s32.totalorder %s88, %s90
    %p94 = scmp.eq.s32.totalorder %s14, 0
    %p95 = por %p93, %p94
    %p96 = scmp.ne.s32.totalorder %s88, %s90
    %p97 = scmp.eq.s32.totalorder %s19, 1
    %p98 = por %p96, %p97
    %p99 = scmp.ne.s32.totalorder %s90, %s91
    %p100 = scmp.eq.s32.totalorder %s19, 0
    %p101 = por %p99, %p100
    %p102 = scmp.ne.s32.totalorder %s90, %s91
    %p103 = scmp.eq.s32.totalorder %s20, 1
    %p104 = por %p102, %p103
    %p106 = scmp.ne.s32.totalorder %s91, %s105
    %p107 = scmp.eq.s32.totalorder %s20, 0
    %p108 = por %p106, %p107
    %s110 = sadd.s32 %s109, 1
    %p113 = scmp.eq.s32.totalorder %s14, 1
    %p114 = scmp.ne.s32.totalorder %s109, %s111
    %p115 = scmp.eq.s32.totalorder %s14, 0
    %p116 = por %p114, %p115
    %p117 = scmp.ne.s32.totalorder %s109, %s111
    %p118 = scmp.eq.s32.totalorder %s19, 1
    %p119 = por %p117, %p118
    %p120 = scmp.ne.s32.totalorder %s111, %s112
    %p121 = scmp.eq.s32.totalorder %s19, 0
    %p122 = por %p120, %p121
    %p123 = scmp.ne.s32.totalorder %s111, %s112
    %p124 = scmp.eq.s32.totalorder %s20, 1
    %p125 = por %p123, %p124
    %p127 = scmp.ne.s32.totalorder %s112, %s126
    %p128 = scmp.eq.s32.totalorder %s20, 0
    %p129 = por %p127, %p128
    %s131 = sadd.s32 %s130, 1
    %p134 = scmp.eq.s32.totalorder %s14, 1
    %p135 = scmp.ne.s32.totalorder %s130, %s132
    %p136 = scmp.eq.s32.totalorder %s14, 0
    %p137 = por %p135, %p136
    %p138 = scmp.ne.s32.totalorder %s130, %s132
    %p139 = scmp.eq.s32.totalorder %s19, 1
    %p140 = por %p138, %p139
    %p141 = scmp.ne.s32.totalorder %s132, %s133
    %p142 = scmp.eq.s32.totalorder %s19, 0
    %p143 = por %p141, %p142
    %p144 = scmp.ne.s32.totalorder %s132, %s133
    %p145 = scmp.eq.s32.totalorder %s20, 1
    %p146 = por %p144, %p145
    %p148 = scmp.ne.s32.totalorder %s133, %s147
    %p149 = scmp.eq.s32.totalorder %s20, 0
    %p150 = por %p148, %p149
    %s152 = sadd.s32 %s151, 1
    %p155 = scmp.eq.s32.totalorder %s14, 1
    %p156 = scmp.ne.s32.totalorder %s151, %s153
    %p157 = scmp.eq.s32.totalorder %s14, 0
    %p158 = por %p156, %p157
    %p159 = scmp.ne.s32.totalorder %s151, %s153
    %p160 = scmp.eq.s32.totalorder %s19, 1
    %p161 = por %p159, %p160
    %p162 = scmp.ne.s32.totalorder %s153, %s154
    %p163 = scmp.eq.s32.totalorder %s19, 0
    %p164 = por %p162, %p163
    %p165 = scmp.ne.s32.totalorder %s153, %s154
    %p166 = scmp.eq.s32.totalorder %s20, 1
    %p167 = por %p165, %p166
    %p169 = scmp.ne.s32.totalorder %s154, %s168
    %p170 = scmp.eq.s32.totalorder %s20, 0
    %p171 = por %p169, %p170
    %s173 = sadd.s32 %s172, 1
    %p176 = scmp.eq.s32.totalorder %s14, 1
    %p177 = scmp.ne.s32.totalorder %s172, %s174
    %p178 = scmp.eq.s32.totalorder %s14, 0
    %p179 = por %p177, %p178
    %p180 = scmp.ne.s32.totalorder %s172, %s174
    %p181 = scmp.eq.s32.totalorder %s19, 1
    %p182 = por %p180, %p181
    %p183 = scmp.ne.s32.totalorder %s174, %s175
    %p184 = scmp.eq.s32.totalorder %s19, 0
    %p185 = por %p183, %p184
    %p186 = scmp.ne.s32.totalorder %s174, %s175
    %p187 = scmp.eq.s32.totalorder %s20, 1
    %p188 = por %p186, %p187
    %p190 = scmp.ne.s32.totalorder %s175, %s189
    %p191 = scmp.eq.s32.totalorder %s20, 0
    %p192 = por %p190, %p191
    %s194 = sadd.s32 %s193, 1
    %p197 = scmp.eq.s32.totalorder %s14, 1
    %p198 = scmp.ne.s32.totalorder %s193, %s195
    %p199 = scmp.eq.s32.totalorder %s14, 0
    %p200 = por %p198, %p199
    %p201 = scmp.ne.s32.totalorder %s193, %s195
    %p202 = scmp.eq.s32.totalorder %s19, 1
    %p203 = por %p201, %p202
    %p204 = scmp.ne.s32.totalorder %s195, %s196
    %p205 = scmp.eq.s32.totalorder %s19, 0
    %p206 = por %p204, %p205
    %p207 = scmp.ne.s32.totalorder %s195, %s196
    %p208 = scmp.eq.s32.totalorder %s20, 1
    %p209 = por %p207, %p208
    %p211 = scmp.ne.s32.totalorder %s196, %s210
    %p212 = scmp.eq.s32.totalorder %s20, 0
    %p213 = por %p211, %p212
    %s214 = ssub.s32 %s21, %s33
    %s215 = ssub.s32 %s22, %s29
    %s216 = sor.u32 %s214, %s215
    %p217 = scmp.eq.s32.totalorder %s216, 0
    %s219 = sadd.s32 %s218, 1
    %s220 = scalar_select %p217, %s218, %s219
    %p223 = pneg %p217
    %p224 = scmp.eq.s32.totalorder %s14, 1
    %p225 = por %p223, %p224
    %p226 = scmp.ne.s32.totalorder %s218, %s221
    %p227 = scmp.eq.s32.totalorder %s14, 0
    %p228 = por %p226, %p227
    %p229 = scmp.ne.s32.totalorder %s218, %s221
    %p230 = scmp.eq.s32.totalorder %s19, 1
    %p231 = por %p229, %p230
    %p232 = scmp.ne.s32.totalorder %s221, %s222
    %p233 = scmp.eq.s32.totalorder %s19, 0
    %p234 = por %p232, %p233
    %p235 = scmp.ne.s32.totalorder %s221, %s222
    %p236 = scmp.eq.s32.totalorder %s20, 1
    %p237 = por %p235, %p236
    %p239 = scmp.ne.s32.totalorder %s222, %s238
    %p240 = scmp.eq.s32.totalorder %s20, 0
    %p241 = por %p239, %p240
    %p242 = scmp.le.s32.totalorder 1, %s14
    %p243 = scmp.lt.s32.totalorder %s14, 3
    %p244 = pnand %p242, %p243
    %p245 = pneg %p244
    // Predicated region
    $region9: #{pm_encoder_forward.2} parent=5 // pred_check
      _
    $region10: #{pm_encoder_forward.2} parent=5 // pred_check_branch
      %247 = sbr.rel (%p244) target = $region12
    $region11: #{pm_encoder_forward.2} parent=5 // pred_region
      %s248 = ssub.s32 %s14, 1
      // Predicated region
      $region13: #{pm_encoder_forward.2} parent=11 // pred_check
        %p249 = pneg %p101
      $region14: #{pm_encoder_forward.2} parent=11 // pred_check_branch
        %251 = sbr.rel (%p249) target = $region16
      $region15: #{pm_encoder_forward.2} parent=11 // pred_region
        _
      $region16: #{pm_encoder_forward.2} parent=11 // pred_fallthru
        _
      // Predicated region
      $region17: #{pm_encoder_forward.2} parent=11 // pred_check
        %p252 = pneg %p122
      $region18: #{pm_encoder_forward.2} parent=11 // pred_check_branch
        %254 = sbr.rel (%p252) target = $region20
      $region19: #{pm_encoder_forward.2} parent=11 // pred_region
        _
      $region20: #{pm_encoder_forward.2} parent=11 // pred_fallthru
        _
      // Predicated region
      $region21: #{pm_encoder_forward.2} parent=11 // pred_check
        %p255 = pneg %p143
      $region22: #{pm_encoder_forward.2} parent=11 // pred_check_branch
        %257 = sbr.rel (%p255) target = $region24
      $region23: #{pm_encoder_forward.2} parent=11 // pred_region
        _
      $region24: #{pm_encoder_forward.2} parent=11 // pred_fallthru
        _
      // Predicated region
      $region25: #{pm_encoder_forward.2} parent=11 // pred_check
        %p258 = pneg %p164
      $region26: #{pm_encoder_forward.2} parent=11 // pred_check_branch
        %260 = sbr.rel (%p258) target = $region28
      $region27: #{pm_encoder_forward.2} parent=11 // pred_region
        _
      $region28: #{pm_encoder_forward.2} parent=11 // pred_fallthru
        _
      // Predicated region
      $region29: #{pm_encoder_forward.2} parent=11 // pred_check
        %p261 = pneg %p185
      $region30: #{pm_encoder_forward.2} parent=11 // pred_check_branch
        %263 = sbr.rel (%p261) target = $region32
      $region31: #{pm_encoder_forward.2} parent=11 // pred_region
        _
      $region32: #{pm_encoder_forward.2} parent=11 // pred_fallthru
        _
      // Predicated region
      $region33: #{pm_encoder_forward.2} parent=11 // pred_check
        %p264 = pneg %p206
      $region34: #{pm_encoder_forward.2} parent=11 // pred_check_branch
        %266 = sbr.rel (%p264) target = $region36
      $region35: #{pm_encoder_forward.2} parent=11 // pred_region
        _
      $region36: #{pm_encoder_forward.2} parent=11 // pred_fallthru
        _
    $region12: #{pm_encoder_forward.2} parent=5 // pred_fallthru
      _
    %p267 = scmp.lt.s32.totalorder %s14, 2
    // Predicated region
    $region37: #{pm_encoder_forward.2} parent=5 // pred_check
      %p268 = pneg %p267
    $region38: #{pm_encoder_forward.2} parent=5 // pred_check_branch
      %270 = sbr.rel (%p268) target = $region40
    $region39: #{pm_encoder_forward.2} parent=5 // pred_region
      // Predicated region
      $region41: #{pm_encoder_forward.2} parent=39 // pred_check
        %p271 = pneg %p46
      $region42: #{pm_encoder_forward.2} parent=39 // pred_check_branch
        %273 = sbr.rel (%p271) target = $region44
      $region43: #{pm_encoder_forward.2} parent=39 // pred_region
        %p274 = scmp.lt.s32.totalorder %s21, 1
        %s275 = scalar_select %p274, %s21, 1
        %s276 = smul.addr %s275, 2
        %s277 = smul.addr %s276, 8
        %s278 = scalar_lea.vmem %s0, %s277
      $region44: #{pm_encoder_forward.2} parent=39 // pred_fallthru
        _
      // Predicated region
      $region45: #{pm_encoder_forward.2} parent=39 // pred_check
        %p279 = pneg %p74
      $region46: #{pm_encoder_forward.2} parent=39 // pred_check_branch
        %281 = sbr.rel (%p279) target = $region48
      $region47: #{pm_encoder_forward.2} parent=39 // pred_region
        %s282 = smul.u32 8, %s22
        %p283 = scmp.lt.s32.totalorder %s21, 1
        %s284 = scalar_select %p283, %s21, 1
        %p285 = scmp.lt.s32.totalorder %s282, 7
        %s286 = scalar_select %p285, %s282, 7
        %s287 = smul.addr %s286, 4
        %s288 = smul.addr %s284, 32
        %s289 = sadd.s32 %s287, %s288
        %s290 = smul.addr %s289, 4
        %s291 = scalar_lea.vmem %s1, %s290
        %s292 = smul.u32 8, %s22
      $region48: #{pm_encoder_forward.2} parent=39 // pred_fallthru
        _
    $region40: #{pm_encoder_forward.2} parent=5 // pred_fallthru
      _
    %p293 = scmp.le.s32.totalorder 1, %s14
    %p294 = scmp.lt.s32.totalorder %s14, 3
    %p295 = pnand %p293, %p294
    %p296 = pneg %p295
    // Predicated region
    $region49: #{pm_encoder_forward.2} parent=5 // pred_check
      _
    $region50: #{pm_encoder_forward.2} parent=5 // pred_check_branch
      %298 = sbr.rel (%p295) target = $region52
    $region51: #{pm_encoder_forward.2} parent=5 // pred_region
      %s299 = ssub.s32 %s14, 1
      %p300 = scmp.lt.s32.totalorder %s23, 1
      %s301 = scalar_select %p300, %s23, 1
      %s302 = smul.addr %s301, 2
      %s303 = smul.addr %s302, 8
      %s304 = scalar_lea.vmem %s0, %s303
      %p305 = pneg %p52
      %p306 = pneg %p49
      %s307 = smul.u32 8, %s24
      %p308 = scmp.lt.s32.totalorder %s23, 1
      %s309 = scalar_select %p308, %s23, 1
      %p310 = scmp.lt.s32.totalorder %s307, 7
      %s311 = scalar_select %p310, %s307, 7
      %s312 = smul.addr %s311, 4
      %s313 = smul.addr %s309, 32
      %s314 = sadd.s32 %s312, %s313
      %s315 = smul.addr %s314, 4
      %s316 = scalar_lea.vmem %s1, %s315
      %p317 = pneg %p80
      %p318 = pneg %p77
      %p319 = pneg %p101
      %p320 = pneg %p98
      %p321 = pneg %p122
      %p322 = pneg %p119
      %p323 = pneg %p143
      %p324 = pneg %p140
      %p325 = pneg %p164
      %p326 = pneg %p161
      %p327 = pneg %p185
      %p328 = pneg %p182
      %p329 = pneg %p206
      %p330 = pneg %p203
      %p331 = pneg %p234
      %p332 = pneg %p231
      %s333 = smul.u32 8, %s24
      %p334 = scmp.lt.s32.totalorder %s23, 1
      %s335 = scalar_select %p334, %s23, 1
      %p336 = scmp.lt.s32.totalorder %s333, 7
      %s337 = scalar_select %p336, %s333, 7
      %s338 = smul.addr %s337, 2
      %s339 = smul.addr %s335, 16
      %s340 = sadd.s32 %s338, %s339
      %s341 = smul.addr %s340, 8
      %s342 = scalar_lea.vmem %s8, %s341
      %p343 = scmp.lt.s32.totalorder %s23, 1
      %s344 = scalar_select %p343, %s23, 1
      %s345 = smul.addr %s344, 2
      %s346 = smul.addr %s345, 8
      %s347 = scalar_lea.vmem %s0, %s346
      %s348 = smul.u32 8, %s24
      %p349 = scmp.lt.s32.totalorder %s23, 1
      %s350 = scalar_select %p349, %s23, 1
      %p351 = scmp.lt.s32.totalorder %s348, 7
      %s352 = scalar_select %p351, %s348, 7
      %s353 = smul.addr %s352, 4
      %s354 = smul.addr %s350, 32
      %s355 = sadd.s32 %s353, %s354
      %s356 = smul.addr %s355, 4
      %s357 = scalar_lea.vmem %s1, %s356
      %s358 = smul.u32 8, %s24
      %s359 = smul.u32 8, %s24
      %p360 = scmp.lt.s32.totalorder %s23, 1
      %s361 = scalar_select %p360, %s23, 1
      %p362 = scmp.lt.s32.totalorder %s359, 7
      %s363 = scalar_select %p362, %s359, 7
      %s364 = smul.addr %s363, 2
      %s365 = smul.addr %s361, 16
      %s366 = sadd.s32 %s364, %s365
      %s367 = smul.addr %s366, 8
      %s368 = scalar_lea.vmem %s8, %s367
      %s369 = smul.u32 8, %s24
      %p371 = scmp.eq.s32.totalorder %s24, 0
      // Predicated region
      $region53: #{pm_encoder_forward.2} parent=51 // pred_check
        %p372 = pneg %p371
      $region54: #{pm_encoder_forward.2} parent=51 // pred_check_branch
        %374 = sbr.rel (%p372) target = $region56
      $region55: #{pm_encoder_forward.2} parent=51 // pred_region
        %v375 = vld [vmem:[%s347] sm:$0xff]
        %v376 = vld [vmem:[%s347 + $0x8] sm:$0xff]
        %vm377 = vcmask 261120
        %378 = vst.msk [vmem:[#allocation2] sm:$0xff] %vm377, %v375
        %379 = vst.msk [vmem:[#allocation2 + $0x8] sm:$0xff] %vm377, %v376
      $region56: #{pm_encoder_forward.2} parent=51 // pred_fallthru
        _
      %v380 = vld [vmem:[%s2] sm:$0xff]
      %v381 = vld [vmem:[%s2 + $0x8] sm:$0xff]
      %v382 = vld [vmem:[%s2 + $0x10] sm:$0xff]
      %v383 = vld [vmem:[%s2 + $0x18] sm:$0xff]
      %v384 = vld [vmem:[%s2 + $0x20] sm:$0xff]
      %v385 = vld [vmem:[%s2 + $0x28] sm:$0xff]
      %v386 = vld [vmem:[%s2 + $0x30] sm:$0xff]
      %v387 = vld [vmem:[%s2 + $0x38] sm:$0xff]
      %v388 = vld [vmem:[%s2 + $0x40] sm:$0xff]
      %v389 = vld [vmem:[%s2 + $0x48] sm:$0xff]
      %v390 = vld [vmem:[%s2 + $0x50] sm:$0xff]
      %v391 = vld [vmem:[%s2 + $0x58] sm:$0xff]
      %v392 = vld [vmem:[%s2 + $0x60] sm:$0xff]
      %v393 = vld [vmem:[%s2 + $0x68] sm:$0xff]
      %v394 = vld [vmem:[%s2 + $0x70] sm:$0xff]
      %v395 = vld [vmem:[%s2 + $0x78] sm:$0xff]
      %v396 = vld [vmem:[%s3] sm:$0xff]
      %v397 = vld [vmem:[%s3 + $0x8] sm:$0xff]
      %v398 = vld [vmem:[%s3 + $0x10] sm:$0xff]
      %v399 = vld [vmem:[%s3 + $0x18] sm:$0xff]
      %v400 = vld [vmem:[%s3 + $0x20] sm:$0xff]
      %v401 = vld [vmem:[%s3 + $0x28] sm:$0xff]
      %v402 = vld [vmem:[%s3 + $0x30] sm:$0xff]
      %v403 = vld [vmem:[%s3 + $0x38] sm:$0xff]
      %v404 = vld [vmem:[%s4] sm:$0xff]
      %v405 = vld [vmem:[%s4 + $0x8] sm:$0xff]
      %v406 = vld [vmem:[%s5] sm:$0xf]
      %v407 = vld [vmem:[%s5 + $0x4] sm:$0xf]
      %v408 = vld [vmem:[%s5 + $0x8] sm:$0xf]
      %v409 = vld [vmem:[%s5 + $0xc] sm:$0xf]
      %v410 = vld [vmem:[%s5 + $0x10] sm:$0xf]
      %v411 = vld [vmem:[%s5 + $0x14] sm:$0xf]
      %v412 = vld [vmem:[%s5 + $0x18] sm:$0xf]
      %v413 = vld [vmem:[%s5 + $0x1c] sm:$0xf]
      %v414 = vld [vmem:[%s5 + $0x20] sm:$0xf]
      %v415 = vld [vmem:[%s5 + $0x24] sm:$0xf]
      %v416 = vld [vmem:[%s5 + $0x28] sm:$0xf]
      %v417 = vld [vmem:[%s5 + $0x2c] sm:$0xf]
      %v418 = vld [vmem:[%s5 + $0x30] sm:$0xf]
      %v419 = vld [vmem:[%s5 + $0x34] sm:$0xf]
      %v420 = vld [vmem:[%s5 + $0x38] sm:$0xf]
      %v421 = vld [vmem:[%s5 + $0x3c] sm:$0xf]
      %v422 = vld [vmem:[%s5 + $0x40] sm:$0xf]
      %v423 = vld [vmem:[%s5 + $0x44] sm:$0xf]
      %v424 = vld [vmem:[%s5 + $0x48] sm:$0xf]
      %v425 = vld [vmem:[%s5 + $0x4c] sm:$0xf]
      %v426 = vld [vmem:[%s5 + $0x50] sm:$0xf]
      %v427 = vld [vmem:[%s5 + $0x54] sm:$0xf]
      %v428 = vld [vmem:[%s5 + $0x58] sm:$0xf]
      %v429 = vld [vmem:[%s5 + $0x5c] sm:$0xf]
      %v430 = vld [vmem:[%s5 + $0x60] sm:$0xf]
      %v431 = vld [vmem:[%s5 + $0x64] sm:$0xf]
      %v432 = vld [vmem:[%s5 + $0x68] sm:$0xf]
      %v433 = vld [vmem:[%s5 + $0x6c] sm:$0xf]
      %v434 = vld [vmem:[%s5 + $0x70] sm:$0xf]
      %v435 = vld [vmem:[%s5 + $0x74] sm:$0xf]
      %v436 = vld [vmem:[%s5 + $0x78] sm:$0xf]
      %v437 = vld [vmem:[%s5 + $0x7c] sm:$0xf]
      %v438 = vld [vmem:[%s5 + $0x80] sm:$0xf]
      %v439 = vld [vmem:[%s5 + $0x84] sm:$0xf]
      %v440 = vld [vmem:[%s5 + $0x88] sm:$0xf]
      %v441 = vld [vmem:[%s5 + $0x8c] sm:$0xf]
      %v442 = vld [vmem:[%s5 + $0x90] sm:$0xf]
      %v443 = vld [vmem:[%s5 + $0x94] sm:$0xf]
      %v444 = vld [vmem:[%s5 + $0x98] sm:$0xf]
      %v445 = vld [vmem:[%s5 + $0x9c] sm:$0xf]
      %v446 = vld [vmem:[%s5 + $0xa0] sm:$0xf]
      %v447 = vld [vmem:[%s5 + $0xa4] sm:$0xf]
      %v448 = vld [vmem:[%s5 + $0xa8] sm:$0xf]
      %v449 = vld [vmem:[%s5 + $0xac] sm:$0xf]
      %v450 = vld [vmem:[%s5 + $0xb0] sm:$0xf]
      %v451 = vld [vmem:[%s5 + $0xb4] sm:$0xf]
      %v452 = vld [vmem:[%s5 + $0xb8] sm:$0xf]
      %v453 = vld [vmem:[%s5 + $0xbc] sm:$0xf]
      %v454 = vld [vmem:[%s5 + $0xc0] sm:$0xf]
      %v455 = vld [vmem:[%s5 + $0xc4] sm:$0xf]
      %v456 = vld [vmem:[%s5 + $0xc8] sm:$0xf]
      %v457 = vld [vmem:[%s5 + $0xcc] sm:$0xf]
      %v458 = vld [vmem:[%s5 + $0xd0] sm:$0xf]
      %v459 = vld [vmem:[%s5 + $0xd4] sm:$0xf]
      %v460 = vld [vmem:[%s5 + $0xd8] sm:$0xf]
      %v461 = vld [vmem:[%s5 + $0xdc] sm:$0xf]
      %v462 = vld [vmem:[%s5 + $0xe0] sm:$0xf]
      %v463 = vld [vmem:[%s5 + $0xe4] sm:$0xf]
      %v464 = vld [vmem:[%s5 + $0xe8] sm:$0xf]
      %v465 = vld [vmem:[%s5 + $0xec] sm:$0xf]
      %v466 = vld [vmem:[%s5 + $0xf0] sm:$0xf]
      %v467 = vld [vmem:[%s5 + $0xf4] sm:$0xf]
      %v468 = vld [vmem:[%s5 + $0xf8] sm:$0xf]
      %v469 = vld [vmem:[%s5 + $0xfc] sm:$0xf]
      %v470 = vld [vmem:[%s6] sm:$0xff]
      %v471 = vld [vmem:[%s7] sm:$0xf]
      %v472 = vld [vmem:[%s7 + $0x4] sm:$0xf]
      %v473 = vld [vmem:[%s7 + $0x8] sm:$0xf]
      %v474 = vld [vmem:[%s7 + $0xc] sm:$0xf]
      %v475 = vld [vmem:[%s7 + $0x10] sm:$0xf]
      %v476 = vld [vmem:[%s7 + $0x14] sm:$0xf]
      %v477 = vld [vmem:[%s7 + $0x18] sm:$0xf]
      %v478 = vld [vmem:[%s7 + $0x1c] sm:$0xf]
      %v479 = vld [vmem:[%s7 + $0x20] sm:$0xf]
      %v480 = vld [vmem:[%s7 + $0x24] sm:$0xf]
      %v481 = vld [vmem:[%s7 + $0x28] sm:$0xf]
      %v482 = vld [vmem:[%s7 + $0x2c] sm:$0xf]
      %v483 = vld [vmem:[%s7 + $0x30] sm:$0xf]
      %v484 = vld [vmem:[%s7 + $0x34] sm:$0xf]
      %v485 = vld [vmem:[%s7 + $0x38] sm:$0xf]
      %v486 = vld [vmem:[%s7 + $0x3c] sm:$0xf]
      %v487 = vld [vmem:[%s7 + $0x40] sm:$0xf]
      %v488 = vld [vmem:[%s7 + $0x44] sm:$0xf]
      %v489 = vld [vmem:[%s7 + $0x48] sm:$0xf]
      %v490 = vld [vmem:[%s7 + $0x4c] sm:$0xf]
      %v491 = vld [vmem:[%s7 + $0x50] sm:$0xf]
      %v492 = vld [vmem:[%s7 + $0x54] sm:$0xf]
      %v493 = vld [vmem:[%s7 + $0x58] sm:$0xf]
      %v494 = vld [vmem:[%s7 + $0x5c] sm:$0xf]
      %v495 = vld [vmem:[%s7 + $0x60] sm:$0xf]
      %v496 = vld [vmem:[%s7 + $0x64] sm:$0xf]
      %v497 = vld [vmem:[%s7 + $0x68] sm:$0xf]
      %v498 = vld [vmem:[%s7 + $0x6c] sm:$0xf]
      %v499 = vld [vmem:[%s7 + $0x70] sm:$0xf]
      %v500 = vld [vmem:[%s7 + $0x74] sm:$0xf]
      %v501 = vld [vmem:[%s7 + $0x78] sm:$0xf]
      %v502 = vld [vmem:[%s7 + $0x7c] sm:$0xf]
      %v503 = vld [vmem:[#allocation2] sm:$0xff]
      %v504 = vld [vmem:[#allocation2 + $0x8] sm:$0xff]
      %v505 = vld [vmem:[%s357] sm:$0xff]
      %v506 = vld [vmem:[%s357 + $0x8] sm:$0xff]
      %v507 = vunpack.c.l.bf16 %v505
      %v508 = vunpack.c.l.bf16 %v506
      %v509 = vpack.c.bf16 %v504, %v503
      %v512 = vunpack.c.l.b16 %v505
      %v513 = vunpack.c.l.b16 %v506
      %v514 = vpack.c.b16 %v513, %v512
      %515 = vrot.lane.b32.xlu0 %v514, 32
      %v516 = vpop.permute.xlu0 %515
      %vm517 = vcmask 130048
      %v519 = vsel %vm517, %v516, 0
      %521 = vmatpush.bf16.msra.mxu0 0
      %522 = vmatpush.bf16.msra.mxu0 0
      %523 = vmatpush.bf16.msra.mxu0 0
      %524 = vmatpush.bf16.msra.mxu0 0
      %525 = vmatpush.bf16.msra.mxu0 0
      %526 = vmatpush.bf16.msra.mxu0 0
      %527 = vmatpush.bf16.msra.mxu0 0
      %528 = vmatpush.bf16.msra.mxu0 %v509
      %529 = vmatmul.bf16.gmra.mxu0 %v519
      %v530 = vpop.f32.mrf.mxu0
      %v531 = vadd.f32 0.0, %v530
      %v532 = vpop.f32.mrf.mxu0
      %v533 = vadd.f32 0.0, %v532
      %534 = vdwg.mxu0
      %v535 = vpack.c.bf16 %v533, %v531
      %v544 = vunpack.c.l.b16 %v388
      %v545 = vunpack.c.h.b16 %v388
      %v546 = vunpack.c.l.b16 %v389
      %v547 = vunpack.c.h.b16 %v389
      %v548 = vunpack.c.l.b16 %v390
      %v549 = vunpack.c.h.b16 %v390
      %v550 = vunpack.c.l.b16 %v391
      %v551 = vunpack.c.h.b16 %v391
      %v552 = vunpack.c.l.b16 %v392
      %v553 = vunpack.c.h.b16 %v392
      %v554 = vunpack.c.l.b16 %v393
      %v555 = vunpack.c.h.b16 %v393
      %v556 = vunpack.c.l.b16 %v394
      %v557 = vunpack.c.h.b16 %v394
      %v558 = vunpack.c.l.b16 %v395
      %v559 = vunpack.c.h.b16 %v395
      %v560 = vpack.c.b16 %v548, %v544
      %v561 = vpack.c.b16 %v549, %v545
      %v562 = vpack.c.b16 %v550, %v546
      %v563 = vpack.c.b16 %v551, %v547
      %v564 = vpack.c.b16 %v556, %v552
      %v565 = vpack.c.b16 %v557, %v553
      %v566 = vpack.c.b16 %v558, %v554
      %v567 = vpack.c.b16 %v559, %v555
      %vm576 = vcmask 261120
      %v578 = vsel %vm576, %v535, 0
      %580 = vmatpush.bf16.msra.mxu0 0
      %581 = vmatpush.bf16.msra.mxu0 0
      %582 = vmatpush.bf16.msra.mxu0 0
      %583 = vmatpush.bf16.msra.mxu0 0
      %584 = vmatpush.bf16.msra.mxu0 0
      %585 = vmatpush.bf16.msra.mxu0 0
      %586 = vmatpush.bf16.msra.mxu0 %v564
      %587 = vmatpush.bf16.msra.mxu0 %v560
      %588 = vmatmul.bf16.gmra.mxu0 %v578
      %v589 = vpop.f32.mrf.mxu0
      %v590 = vadd.f32 0.0, %v589
      %v591 = vpop.f32.mrf.mxu0
      %v592 = vadd.f32 0.0, %v591
      %593 = vdwg.mxu0
      %594 = vmatpush.bf16.msra.mxu0 0
      %595 = vmatpush.bf16.msra.mxu0 0
      %596 = vmatpush.bf16.msra.mxu0 0
      %597 = vmatpush.bf16.msra.mxu0 0
      %598 = vmatpush.bf16.msra.mxu0 0
      %599 = vmatpush.bf16.msra.mxu0 0
      %600 = vmatpush.bf16.msra.mxu0 %v565
      %601 = vmatpush.bf16.msra.mxu0 %v561
      %602 = vmatmul.bf16.gmra.mxu0 %v578
      %v603 = vpop.f32.mrf.mxu0
      %v604 = vadd.f32 0.0, %v603
      %v605 = vpop.f32.mrf.mxu0
      %v606 = vadd.f32 0.0, %v605
      %607 = vdwg.mxu0
      %608 = vmatpush.bf16.msra.mxu0 0
      %609 = vmatpush.bf16.msra.mxu0 0
      %610 = vmatpush.bf16.msra.mxu0 0
      %611 = vmatpush.bf16.msra.mxu0 0
      %612 = vmatpush.bf16.msra.mxu0 0
      %613 = vmatpush.bf16.msra.mxu0 0
      %614 = vmatpush.bf16.msra.mxu0 %v566
      %615 = vmatpush.bf16.msra.mxu0 %v562
      %616 = vmatmul.bf16.gmra.mxu0 %v578
      %v617 = vpop.f32.mrf.mxu0
      %v618 = vadd.f32 0.0, %v617
      %v619 = vpop.f32.mrf.mxu0
      %v620 = vadd.f32 0.0, %v619
      %621 = vdwg.mxu0
      %622 = vmatpush.bf16.msra.mxu0 0
      %623 = vmatpush.bf16.msra.mxu0 0
      %624 = vmatpush.bf16.msra.mxu0 0
      %625 = vmatpush.bf16.msra.mxu0 0
      %626 = vmatpush.bf16.msra.mxu0 0
      %627 = vmatpush.bf16.msra.mxu0 0
      %628 = vmatpush.bf16.msra.mxu0 %v567
      %629 = vmatpush.bf16.msra.mxu0 %v563
      %630 = vmatmul.bf16.gmra.mxu0 %v578
      %v631 = vpop.f32.mrf.mxu0
      %v632 = vadd.f32 0.0, %v631
      %v633 = vpop.f32.mrf.mxu0
      %v634 = vadd.f32 0.0, %v633
      %635 = vdwg.mxu0
      %v644 = vunpack.c.l.b16 %v380
      %v645 = vunpack.c.h.b16 %v380
      %v646 = vunpack.c.l.b16 %v381
      %v647 = vunpack.c.h.b16 %v381
      %v648 = vunpack.c.l.b16 %v382
      %v649 = vunpack.c.h.b16 %v382
      %v650 = vunpack.c.l.b16 %v383
      %v651 = vunpack.c.h.b16 %v383
      %v652 = vunpack.c.l.b16 %v384
      %v653 = vunpack.c.h.b16 %v384
      %v654 = vunpack.c.l.b16 %v385
      %v655 = vunpack.c.h.b16 %v385
      %v656 = vunpack.c.l.b16 %v386
      %v657 = vunpack.c.h.b16 %v386
      %v658 = vunpack.c.l.b16 %v387
      %v659 = vunpack.c.h.b16 %v387
      %v660 = vpack.c.b16 %v648, %v644
      %v661 = vpack.c.b16 %v649, %v645
      %v662 = vpack.c.b16 %v650, %v646
      %v663 = vpack.c.b16 %v651, %v647
      %v664 = vpack.c.b16 %v656, %v652
      %v665 = vpack.c.b16 %v657, %v653
      %v666 = vpack.c.b16 %v658, %v654
      %v667 = vpack.c.b16 %v659, %v655
      %v677 = vsel %vm576, %v509, 0
      %679 = vmatpush.bf16.msra.mxu0 0
      %680 = vmatpush.bf16.msra.mxu0 0
      %681 = vmatpush.bf16.msra.mxu0 0
      %682 = vmatpush.bf16.msra.mxu0 0
      %683 = vmatpush.bf16.msra.mxu0 0
      %684 = vmatpush.bf16.msra.mxu0 0
      %685 = vmatpush.bf16.msra.mxu0 %v664
      %686 = vmatpush.bf16.msra.mxu0 %v660
      %687 = vmatmul.bf16.gmra.mxu0 %v677
      %v688 = vpop.f32.mrf.mxu0
      %v689 = vadd.f32 %v590, %v688
      %v690 = vpop.f32.mrf.mxu0
      %v691 = vadd.f32 %v592, %v690
      %692 = vdwg.mxu0
      %693 = vmatpush.bf16.msra.mxu0 0
      %694 = vmatpush.bf16.msra.mxu0 0
      %695 = vmatpush.bf16.msra.mxu0 0
      %696 = vmatpush.bf16.msra.mxu0 0
      %697 = vmatpush.bf16.msra.mxu0 0
      %698 = vmatpush.bf16.msra.mxu0 0
      %699 = vmatpush.bf16.msra.mxu0 %v665
      %700 = vmatpush.bf16.msra.mxu0 %v661
      %701 = vmatmul.bf16.gmra.mxu0 %v677
      %v702 = vpop.f32.mrf.mxu0
      %v703 = vadd.f32 %v604, %v702
      %v704 = vpop.f32.mrf.mxu0
      %v705 = vadd.f32 %v606, %v704
      %706 = vdwg.mxu0
      %707 = vmatpush.bf16.msra.mxu0 0
      %708 = vmatpush.bf16.msra.mxu0 0
      %709 = vmatpush.bf16.msra.mxu0 0
      %710 = vmatpush.bf16.msra.mxu0 0
      %711 = vmatpush.bf16.msra.mxu0 0
      %712 = vmatpush.bf16.msra.mxu0 0
      %713 = vmatpush.bf16.msra.mxu0 %v666
      %714 = vmatpush.bf16.msra.mxu0 %v662
      %715 = vmatmul.bf16.gmra.mxu0 %v677
      %v716 = vpop.f32.mrf.mxu0
      %v717 = vadd.f32 %v618, %v716
      %v718 = vpop.f32.mrf.mxu0
      %v719 = vadd.f32 %v620, %v718
      %720 = vdwg.mxu0
      %721 = vmatpush.bf16.msra.mxu0 0
      %722 = vmatpush.bf16.msra.mxu0 0
      %723 = vmatpush.bf16.msra.mxu0 0
      %724 = vmatpush.bf16.msra.mxu0 0
      %725 = vmatpush.bf16.msra.mxu0 0
      %726 = vmatpush.bf16.msra.mxu0 0
      %727 = vmatpush.bf16.msra.mxu0 %v667
      %728 = vmatpush.bf16.msra.mxu0 %v663
      %729 = vmatmul.bf16.gmra.mxu0 %v677
      %v730 = vpop.f32.mrf.mxu0
      %v731 = vadd.f32 %v632, %v730
      %v732 = vpop.f32.mrf.mxu0
      %v733 = vadd.f32 %v634, %v732
      %734 = vdwg.mxu0
      %v735 = vunpack.c.h.b16 %v505
      %v736 = vunpack.c.h.b16 %v506
      %v737 = vpack.c.b16 %v736, %v735
      %v740 = vunpack.c.l.b16 %v404
      %v741 = vunpack.c.h.b16 %v404
      %v742 = vunpack.c.l.b16 %v405
      %v743 = vunpack.c.h.b16 %v405
      %v744 = vpack.c.b16 %v740, %v740
      %v745 = vpack.c.b16 %v741, %v741
      %v746 = vpack.c.b16 %v742, %v742
      %v747 = vpack.c.b16 %v743, %v743
      %vm748 = vcmask 64512
      %v750 = vsel %vm748, %v737, 0
      %vm752 = vcmask 1043456
      %v754 = vsel %vm752, %v744, 0
      %v757 = vsel %vm752, %v745, 0
      %v760 = vsel %vm752, %v746, 0
      %v763 = vsel %vm752, %v747, 0
      %765 = vmatpush.bf16.msra.mxu0 0
      %766 = vmatpush.bf16.msra.mxu0 0
      %767 = vmatpush.bf16.msra.mxu0 0
      %768 = vmatpush.bf16.msra.mxu0 0
      %769 = vmatpush.bf16.msra.mxu0 0
      %770 = vmatpush.bf16.msra.mxu0 0
      %771 = vmatpush.bf16.msra.mxu0 0
      %772 = vmatpush.bf16.msra.mxu0 %v754
      %773 = vmatmul.bf16.gmra.mxu0 %v750
      %v774 = vpop.f32.mrf.mxu0
      %v775 = vadd.f32 0.0, %v774
      %v776 = vpop.f32.mrf.mxu0
      %v777 = vadd.f32 0.0, %v776
      %778 = vdwg.mxu0
      %779 = vmatpush.bf16.msra.mxu0 0
      %780 = vmatpush.bf16.msra.mxu0 0
      %781 = vmatpush.bf16.msra.mxu0 0
      %782 = vmatpush.bf16.msra.mxu0 0
      %783 = vmatpush.bf16.msra.mxu0 0
      %784 = vmatpush.bf16.msra.mxu0 0
      %785 = vmatpush.bf16.msra.mxu0 0
      %786 = vmatpush.bf16.msra.mxu0 %v757
      %787 = vmatmul.bf16.gmra.mxu0 %v750
      %v788 = vpop.f32.mrf.mxu0
      %v789 = vadd.f32 0.0, %v788
      %v790 = vpop.f32.mrf.mxu0
      %v791 = vadd.f32 0.0, %v790
      %792 = vdwg.mxu0
      %793 = vmatpush.bf16.msra.mxu0 0
      %794 = vmatpush.bf16.msra.mxu0 0
      %795 = vmatpush.bf16.msra.mxu0 0
      %796 = vmatpush.bf16.msra.mxu0 0
      %797 = vmatpush.bf16.msra.mxu0 0
      %798 = vmatpush.bf16.msra.mxu0 0
      %799 = vmatpush.bf16.msra.mxu0 0
      %800 = vmatpush.bf16.msra.mxu0 %v760
      %801 = vmatmul.bf16.gmra.mxu0 %v750
      %v802 = vpop.f32.mrf.mxu0
      %v803 = vadd.f32 0.0, %v802
      %v804 = vpop.f32.mrf.mxu0
      %v805 = vadd.f32 0.0, %v804
      %806 = vdwg.mxu0
      %807 = vmatpush.bf16.msra.mxu0 0
      %808 = vmatpush.bf16.msra.mxu0 0
      %809 = vmatpush.bf16.msra.mxu0 0
      %810 = vmatpush.bf16.msra.mxu0 0
      %811 = vmatpush.bf16.msra.mxu0 0
      %812 = vmatpush.bf16.msra.mxu0 0
      %813 = vmatpush.bf16.msra.mxu0 0
      %814 = vmatpush.bf16.msra.mxu0 %v763
      %815 = vmatmul.bf16.gmra.mxu0 %v750
      %v816 = vpop.f32.mrf.mxu0
      %v817 = vadd.f32 0.0, %v816
      %v818 = vpop.f32.mrf.mxu0
      %v819 = vadd.f32 0.0, %v818
      %820 = vdwg.mxu0
      %v821 = vmul.f32 %v689, %v775
      %v822 = vmul.f32 %v703, %v789
      %v823 = vmul.f32 %v717, %v803
      %v824 = vmul.f32 %v731, %v817
      %v825 = vmul.f32 %v691, %v777
      %v826 = vmul.f32 %v705, %v791
      %v827 = vmul.f32 %v719, %v805
      %v828 = vmul.f32 %v733, %v819
      %v829 = vpack.c.bf16 %v825, %v821
      %v830 = vpack.c.bf16 %v826, %v822
      %v831 = vpack.c.bf16 %v827, %v823
      %v832 = vpack.c.bf16 %v828, %v824
      %v897 = vunpack.c.l.b16 %v406
      %v898 = vunpack.c.l.b16 %v407
      %v899 = vunpack.c.l.b16 %v408
      %v900 = vunpack.c.l.b16 %v409
      %v901 = vunpack.c.l.b16 %v410
      %v902 = vunpack.c.l.b16 %v411
      %v903 = vunpack.c.l.b16 %v412
      %v904 = vunpack.c.l.b16 %v413
      %v905 = vunpack.c.l.b16 %v414
      %v906 = vunpack.c.l.b16 %v415
      %v907 = vunpack.c.l.b16 %v416
      %v908 = vunpack.c.l.b16 %v417
      %v909 = vunpack.c.l.b16 %v418
      %v910 = vunpack.c.l.b16 %v419
      %v911 = vunpack.c.l.b16 %v420
      %v912 = vunpack.c.l.b16 %v421
      %v913 = vunpack.c.l.b16 %v422
      %v914 = vunpack.c.l.b16 %v423
      %v915 = vunpack.c.l.b16 %v424
      %v916 = vunpack.c.l.b16 %v425
      %v917 = vunpack.c.l.b16 %v426
      %v918 = vunpack.c.l.b16 %v427
      %v919 = vunpack.c.l.b16 %v428
      %v920 = vunpack.c.l.b16 %v429
      %v921 = vunpack.c.l.b16 %v430
      %v922 = vunpack.c.l.b16 %v431
      %v923 = vunpack.c.l.b16 %v432
      %v924 = vunpack.c.l.b16 %v433
      %v925 = vunpack.c.l.b16 %v434
      %v926 = vunpack.c.l.b16 %v435
      %v927 = vunpack.c.l.b16 %v436
      %v928 = vunpack.c.l.b16 %v437
      %v929 = vunpack.c.l.b16 %v438
      %v930 = vunpack.c.l.b16 %v439
      %v931 = vunpack.c.l.b16 %v440
      %v932 = vunpack.c.l.b16 %v441
      %v933 = vunpack.c.l.b16 %v442
      %v934 = vunpack.c.l.b16 %v443
      %v935 = vunpack.c.l.b16 %v444
      %v936 = vunpack.c.l.b16 %v445
      %v937 = vunpack.c.l.b16 %v446
      %v938 = vunpack.c.l.b16 %v447
      %v939 = vunpack.c.l.b16 %v448
      %v940 = vunpack.c.l.b16 %v449
      %v941 = vunpack.c.l.b16 %v450
      %v942 = vunpack.c.l.b16 %v451
      %v943 = vunpack.c.l.b16 %v452
      %v944 = vunpack.c.l.b16 %v453
      %v945 = vunpack.c.l.b16 %v454
      %v946 = vunpack.c.l.b16 %v455
      %v947 = vunpack.c.l.b16 %v456
      %v948 = vunpack.c.l.b16 %v457
      %v949 = vunpack.c.l.b16 %v458
      %v950 = vunpack.c.l.b16 %v459
      %v951 = vunpack.c.l.b16 %v460
      %v952 = vunpack.c.l.b16 %v461
      %v953 = vunpack.c.l.b16 %v462
      %v954 = vunpack.c.l.b16 %v463
      %v955 = vunpack.c.l.b16 %v464
      %v956 = vunpack.c.l.b16 %v465
      %v957 = vunpack.c.l.b16 %v466
      %v958 = vunpack.c.l.b16 %v467
      %v959 = vunpack.c.l.b16 %v468
      %v960 = vunpack.c.l.b16 %v469
      %v961 = vpack.c.b16 %v898, %v897
      %v962 = vpack.c.b16 %v900, %v899
      %v963 = vpack.c.b16 %v902, %v901
      %v964 = vpack.c.b16 %v904, %v903
      %v965 = vpack.c.b16 %v906, %v905
      %v966 = vpack.c.b16 %v908, %v907
      %v967 = vpack.c.b16 %v910, %v909
      %v968 = vpack.c.b16 %v912, %v911
      %v969 = vpack.c.b16 %v914, %v913
      %v970 = vpack.c.b16 %v916, %v915
      %v971 = vpack.c.b16 %v918, %v917
      %v972 = vpack.c.b16 %v920, %v919
      %v973 = vpack.c.b16 %v922, %v921
      %v974 = vpack.c.b16 %v924, %v923
      %v975 = vpack.c.b16 %v926, %v925
      %v976 = vpack.c.b16 %v928, %v927
      %v977 = vpack.c.b16 %v930, %v929
      %v978 = vpack.c.b16 %v932, %v931
      %v979 = vpack.c.b16 %v934, %v933
      %v980 = vpack.c.b16 %v936, %v935
      %v981 = vpack.c.b16 %v938, %v937
      %v982 = vpack.c.b16 %v940, %v939
      %v983 = vpack.c.b16 %v942, %v941
      %v984 = vpack.c.b16 %v944, %v943
      %v985 = vpack.c.b16 %v946, %v945
      %v986 = vpack.c.b16 %v948, %v947
      %v987 = vpack.c.b16 %v950, %v949
      %v988 = vpack.c.b16 %v952, %v951
      %v989 = vpack.c.b16 %v954, %v953
      %v990 = vpack.c.b16 %v956, %v955
      %v991 = vpack.c.b16 %v958, %v957
      %v992 = vpack.c.b16 %v960, %v959
      %1025 = vmatpush.bf16.msra.mxu0 %v968
      %1026 = vmatpush.bf16.msra.mxu0 %v967
      %1027 = vmatpush.bf16.msra.mxu0 %v966
      %1028 = vmatpush.bf16.msra.mxu0 %v965
      %1029 = vmatpush.bf16.msra.mxu0 %v964
      %1030 = vmatpush.bf16.msra.mxu0 %v963
      %1031 = vmatpush.bf16.msra.mxu0 %v962
      %1032 = vmatpush.bf16.msra.mxu0 %v961
      %1033 = vmatmul.bf16.gmra.mxu0 %v829
      %v1034 = vpop.f32.mrf.mxu0
      %v1035 = vadd.f32 0.0, %v1034
      %v1036 = vpop.f32.mrf.mxu0
      %v1037 = vadd.f32 0.0, %v1036
      %1038 = vdwg.mxu0
      %1039 = vmatpush.bf16.msra.mxu0 %v976
      %1040 = vmatpush.bf16.msra.mxu0 %v975
      %1041 = vmatpush.bf16.msra.mxu0 %v974
      %1042 = vmatpush.bf16.msra.mxu0 %v973
      %1043 = vmatpush.bf16.msra.mxu0 %v972
      %1044 = vmatpush.bf16.msra.mxu0 %v971
      %1045 = vmatpush.bf16.msra.mxu0 %v970
      %1046 = vmatpush.bf16.msra.mxu0 %v969
      %1047 = vmatmul.bf16.gmra.mxu0 %v830
      %v1048 = vpop.f32.mrf.mxu0
      %v1049 = vadd.f32 %v1035, %v1048
      %v1050 = vpop.f32.mrf.mxu0
      %v1051 = vadd.f32 %v1037, %v1050
      %1052 = vdwg.mxu0
      %1053 = vmatpush.bf16.msra.mxu0 %v984
      %1054 = vmatpush.bf16.msra.mxu0 %v983
      %1055 = vmatpush.bf16.msra.mxu0 %v982
      %1056 = vmatpush.bf16.msra.mxu0 %v981
      %1057 = vmatpush.bf16.msra.mxu0 %v980
      %1058 = vmatpush.bf16.msra.mxu0 %v979
      %1059 = vmatpush.bf16.msra.mxu0 %v978
      %1060 = vmatpush.bf16.msra.mxu0 %v977
      %1061 = vmatmul.bf16.gmra.mxu0 %v831
      %v1062 = vpop.f32.mrf.mxu0
      %v1063 = vadd.f32 %v1049, %v1062
      %v1064 = vpop.f32.mrf.mxu0
      %v1065 = vadd.f32 %v1051, %v1064
      %1066 = vdwg.mxu0
      %1067 = vmatpush.bf16.msra.mxu0 %v992
      %1068 = vmatpush.bf16.msra.mxu0 %v991
      %1069 = vmatpush.bf16.msra.mxu0 %v990
      %1070 = vmatpush.bf16.msra.mxu0 %v989
      %1071 = vmatpush.bf16.msra.mxu0 %v988
      %1072 = vmatpush.bf16.msra.mxu0 %v987
      %1073 = vmatpush.bf16.msra.mxu0 %v986
      %1074 = vmatpush.bf16.msra.mxu0 %v985
      %1075 = vmatmul.bf16.gmra.mxu0 %v832
      %v1076 = vpop.f32.mrf.mxu0
      %v1077 = vadd.f32 %v1063, %v1076
      %v1078 = vpop.f32.mrf.mxu0
      %v1079 = vadd.f32 %v1065, %v1078
      %1080 = vdwg.mxu0
      %v1081 = vadd.f32 %v507, %v1077
      %v1082 = vadd.f32 %v508, %v1079
      %v1083 = vxor.u32 %v1081, 2147483648
      %v1084 = vxor.u32 %v1082, 2147483648
      %v1085 = vmul.f32 %v1083, 1.442695
      %v1086 = vpow.pop %v1085
      %v1087 = vmul.f32 %v1084, 1.442695
      %v1088 = vpow.pop %v1087
      %v1089 = vadd.f32 %v1086, 1.0
      %v1090 = vadd.f32 %v1088, 1.0
      %v1091 = vrcp.pop %v1089
      %v1092 = vmul.f32 %v1089, %v1091
      %v1093 = vsub.f32 1.0, %v1092
      %v1094 = vmul.f32 %v1091, %v1093
      %v1095 = vadd.f32 %v1091, %v1094
      %vm1096 = vweird.f32 %v1089
      %vm1097 = vweird.f32 %v1091
      %vm1098 = vmor %vm1096, %vm1097
      %v1099 = vsel %vm1098, %v1091, %v1095
      %v1100 = vand.u32 2147483647, %v1089
      %vm1101 = vcmp.eq.f32.partialorder %v1100, 8.507059e+37
      %v1102 = vand.u32 %v1089, 2147483648
      %v1103 = vor.u32 1.1754944e-38, %v1102
      %v1104 = vsel %vm1101, %v1103, %v1099
      %v1105 = vmul.f32 1.0, %v1104
      %v1106 = vrcp.pop %v1090
      %v1107 = vmul.f32 %v1090, %v1106
      %v1108 = vsub.f32 1.0, %v1107
      %v1109 = vmul.f32 %v1106, %v1108
      %v1110 = vadd.f32 %v1106, %v1109
      %vm1111 = vweird.f32 %v1090
      %vm1112 = vweird.f32 %v1106
      %vm1113 = vmor %vm1111, %vm1112
      %v1114 = vsel %vm1113, %v1106, %v1110
      %v1115 = vand.u32 2147483647, %v1090
      %vm1116 = vcmp.eq.f32.partialorder %v1115, 8.507059e+37
      %v1117 = vand.u32 %v1090, 2147483648
      %v1118 = vor.u32 1.1754944e-38, %v1117
      %v1119 = vsel %vm1116, %v1118, %v1114
      %v1120 = vmul.f32 1.0, %v1119
      %v1121 = vmul.f32 %v1105, %v503
      %v1122 = vmul.f32 %v1120, %v504
      %v1123 = vpack.c.bf16 %v1122, %v1121
      %1124 = vrot.lane.b32.xlu0 %v514, 16
      %v1125 = vpop.permute.xlu0 %1124
      %v1127 = vsel %vm517, %v1125, 0
      %1129 = vmatpush.bf16.msra.mxu0 0
      %1130 = vmatpush.bf16.msra.mxu0 0
      %1131 = vmatpush.bf16.msra.mxu0 0
      %1132 = vmatpush.bf16.msra.mxu0 0
      %1133 = vmatpush.bf16.msra.mxu0 0
      %1134 = vmatpush.bf16.msra.mxu0 0
      %1135 = vmatpush.bf16.msra.mxu0 0
      %1136 = vmatpush.bf16.msra.mxu0 %v1123
      %1137 = vmatmul.bf16.gmra.mxu0 %v1127
      %v1138 = vpop.f32.mrf.mxu0
      %v1139 = vadd.f32 0.0, %v1138
      %v1140 = vpop.f32.mrf.mxu0
      %v1141 = vadd.f32 0.0, %v1140
      %1142 = vdwg.mxu0
      %v1143 = vpack.c.bf16 %v1141, %v1139
      %v1148 = vunpack.c.l.b16 %v400
      %v1149 = vunpack.c.h.b16 %v400
      %v1150 = vunpack.c.l.b16 %v401
      %v1151 = vunpack.c.h.b16 %v401
      %v1152 = vunpack.c.l.b16 %v402
      %v1153 = vunpack.c.h.b16 %v402
      %v1154 = vunpack.c.l.b16 %v403
      %v1155 = vunpack.c.h.b16 %v403
      %v1156 = vpack.c.b16 %v1150, %v1148
      %v1157 = vpack.c.b16 %v1151, %v1149
      %v1158 = vpack.c.b16 %v1154, %v1152
      %v1159 = vpack.c.b16 %v1155, %v1153
      %v1165 = vsel %vm576, %v1143, 0
      %1167 = vmatpush.bf16.msra.mxu0 0
      %1168 = vmatpush.bf16.msra.mxu0 0
      %1169 = vmatpush.bf16.msra.mxu0 0
      %1170 = vmatpush.bf16.msra.mxu0 0
      %1171 = vmatpush.bf16.msra.mxu0 0
      %1172 = vmatpush.bf16.msra.mxu0 0
      %1173 = vmatpush.bf16.msra.mxu0 %v1158
      %1174 = vmatpush.bf16.msra.mxu0 %v1156
      %1175 = vmatmul.bf16.gmra.mxu0 %v1165
      %v1176 = vpop.f32.mrf.mxu0
      %v1177 = vadd.f32 0.0, %v1176
      %v1178 = vpop.f32.mrf.mxu0
      %v1179 = vadd.f32 0.0, %v1178
      %1180 = vdwg.mxu0
      %1181 = vmatpush.bf16.msra.mxu0 0
      %1182 = vmatpush.bf16.msra.mxu0 0
      %1183 = vmatpush.bf16.msra.mxu0 0
      %1184 = vmatpush.bf16.msra.mxu0 0
      %1185 = vmatpush.bf16.msra.mxu0 0
      %1186 = vmatpush.bf16.msra.mxu0 0
      %1187 = vmatpush.bf16.msra.mxu0 %v1159
      %1188 = vmatpush.bf16.msra.mxu0 %v1157
      %1189 = vmatmul.bf16.gmra.mxu0 %v1165
      %v1190 = vpop.f32.mrf.mxu0
      %v1191 = vadd.f32 0.0, %v1190
      %v1192 = vpop.f32.mrf.mxu0
      %v1193 = vadd.f32 0.0, %v1192
      %1194 = vdwg.mxu0
      %v1199 = vunpack.c.l.b16 %v396
      %v1200 = vunpack.c.h.b16 %v396
      %v1201 = vunpack.c.l.b16 %v397
      %v1202 = vunpack.c.h.b16 %v397
      %v1203 = vunpack.c.l.b16 %v398
      %v1204 = vunpack.c.h.b16 %v398
      %v1205 = vunpack.c.l.b16 %v399
      %v1206 = vunpack.c.h.b16 %v399
      %v1207 = vpack.c.b16 %v1201, %v1199
      %v1208 = vpack.c.b16 %v1202, %v1200
      %v1209 = vpack.c.b16 %v1205, %v1203
      %v1210 = vpack.c.b16 %v1206, %v1204
      %v1216 = vsel %vm576, %v1123, 0
      %1218 = vmatpush.bf16.msra.mxu0 0
      %1219 = vmatpush.bf16.msra.mxu0 0
      %1220 = vmatpush.bf16.msra.mxu0 0
      %1221 = vmatpush.bf16.msra.mxu0 0
      %1222 = vmatpush.bf16.msra.mxu0 0
      %1223 = vmatpush.bf16.msra.mxu0 0
      %1224 = vmatpush.bf16.msra.mxu0 %v1209
      %1225 = vmatpush.bf16.msra.mxu0 %v1207
      %1226 = vmatmul.bf16.gmra.mxu0 %v1216
      %v1227 = vpop.f32.mrf.mxu0
      %v1228 = vadd.f32 %v1177, %v1227
      %v1229 = vpop.f32.mrf.mxu0
      %v1230 = vadd.f32 %v1179, %v1229
      %1231 = vdwg.mxu0
      %1232 = vmatpush.bf16.msra.mxu0 0
      %1233 = vmatpush.bf16.msra.mxu0 0
      %1234 = vmatpush.bf16.msra.mxu0 0
      %1235 = vmatpush.bf16.msra.mxu0 0
      %1236 = vmatpush.bf16.msra.mxu0 0
      %1237 = vmatpush.bf16.msra.mxu0 0
      %1238 = vmatpush.bf16.msra.mxu0 %v1210
      %1239 = vmatpush.bf16.msra.mxu0 %v1208
      %1240 = vmatmul.bf16.gmra.mxu0 %v1216
      %v1241 = vpop.f32.mrf.mxu0
      %v1242 = vadd.f32 %v1191, %v1241
      %v1243 = vpop.f32.mrf.mxu0
      %v1244 = vadd.f32 %v1193, %v1243
      %1245 = vdwg.mxu0
      %1246 = vrot.lane.b32.xlu0 %v737, 120
      %v1247 = vpop.permute.xlu0 %1246
      %v1249 = vunpack.c.l.b16 %v470
      %v1250 = vunpack.c.h.b16 %v470
      %v1251 = vpack.c.b16 %v1249, %v1249
      %v1252 = vpack.c.b16 %v1250, %v1250
      %v1254 = vsel %vm748, %v1247, 0
      %v1257 = vsel %vm752, %v1251, 0
      %v1260 = vsel %vm752, %v1252, 0
      %1262 = vmatpush.bf16.msra.mxu0 0
      %1263 = vmatpush.bf16.msra.mxu0 0
      %1264 = vmatpush.bf16.msra.mxu0 0
      %1265 = vmatpush.bf16.msra.mxu0 0
      %1266 = vmatpush.bf16.msra.mxu0 0
      %1267 = vmatpush.bf16.msra.mxu0 0
      %1268 = vmatpush.bf16.msra.mxu0 0
      %1269 = vmatpush.bf16.msra.mxu0 %v1257
      %1270 = vmatmul.bf16.gmra.mxu0 %v1254
      %v1271 = vpop.f32.mrf.mxu0
      %v1272 = vadd.f32 0.0, %v1271
      %v1273 = vpop.f32.mrf.mxu0
      %v1274 = vadd.f32 0.0, %v1273
      %1275 = vdwg.mxu0
      %1276 = vmatpush.bf16.msra.mxu0 0
      %1277 = vmatpush.bf16.msra.mxu0 0
      %1278 = vmatpush.bf16.msra.mxu0 0
      %1279 = vmatpush.bf16.msra.mxu0 0
      %1280 = vmatpush.bf16.msra.mxu0 0
      %1281 = vmatpush.bf16.msra.mxu0 0
      %1282 = vmatpush.bf16.msra.mxu0 0
      %1283 = vmatpush.bf16.msra.mxu0 %v1260
      %1284 = vmatmul.bf16.gmra.mxu0 %v1254
      %v1285 = vpop.f32.mrf.mxu0
      %v1286 = vadd.f32 0.0, %v1285
      %v1287 = vpop.f32.mrf.mxu0
      %v1288 = vadd.f32 0.0, %v1287
      %1289 = vdwg.mxu0
      %v1290 = vmul.f32 %v1228, %v1272
      %v1291 = vmul.f32 %v1242, %v1286
      %v1292 = vmul.f32 %v1230, %v1274
      %v1293 = vmul.f32 %v1244, %v1288
      %v1294 = vpack.c.bf16 %v1292, %v1290
      %v1295 = vpack.c.bf16 %v1293, %v1291
      %v1328 = vunpack.c.l.b16 %v471
      %v1329 = vunpack.c.l.b16 %v472
      %v1330 = vunpack.c.l.b16 %v473
      %v1331 = vunpack.c.l.b16 %v474
      %v1332 = vunpack.c.l.b16 %v475
      %v1333 = vunpack.c.l.b16 %v476
      %v1334 = vunpack.c.l.b16 %v477
      %v1335 = vunpack.c.l.b16 %v478
      %v1336 = vunpack.c.l.b16 %v479
      %v1337 = vunpack.c.l.b16 %v480
      %v1338 = vunpack.c.l.b16 %v481
      %v1339 = vunpack.c.l.b16 %v482
      %v1340 = vunpack.c.l.b16 %v483
      %v1341 = vunpack.c.l.b16 %v484
      %v1342 = vunpack.c.l.b16 %v485
      %v1343 = vunpack.c.l.b16 %v486
      %v1344 = vunpack.c.l.b16 %v487
      %v1345 = vunpack.c.l.b16 %v488
      %v1346 = vunpack.c.l.b16 %v489
      %v1347 = vunpack.c.l.b16 %v490
      %v1348 = vunpack.c.l.b16 %v491
      %v1349 = vunpack.c.l.b16 %v492
      %v1350 = vunpack.c.l.b16 %v493
      %v1351 = vunpack.c.l.b16 %v494
      %v1352 = vunpack.c.l.b16 %v495
      %v1353 = vunpack.c.l.b16 %v496
      %v1354 = vunpack.c.l.b16 %v497
      %v1355 = vunpack.c.l.b16 %v498
      %v1356 = vunpack.c.l.b16 %v499
      %v1357 = vunpack.c.l.b16 %v500
      %v1358 = vunpack.c.l.b16 %v501
      %v1359 = vunpack.c.l.b16 %v502
      %v1360 = vpack.c.b16 %v1329, %v1328
      %v1361 = vpack.c.b16 %v1331, %v1330
      %v1362 = vpack.c.b16 %v1333, %v1332
      %v1363 = vpack.c.b16 %v1335, %v1334
      %v1364 = vpack.c.b16 %v1337, %v1336
      %v1365 = vpack.c.b16 %v1339, %v1338
      %v1366 = vpack.c.b16 %v1341, %v1340
      %v1367 = vpack.c.b16 %v1343, %v1342
      %v1368 = vpack.c.b16 %v1345, %v1344
      %v1369 = vpack.c.b16 %v1347, %v1346
      %v1370 = vpack.c.b16 %v1349, %v1348
      %v1371 = vpack.c.b16 %v1351, %v1350
      %v1372 = vpack.c.b16 %v1353, %v1352
      %v1373 = vpack.c.b16 %v1355, %v1354
      %v1374 = vpack.c.b16 %v1357, %v1356
      %v1375 = vpack.c.b16 %v1359, %v1358
      %1392 = vmatpush.bf16.msra.mxu0 %v1367
      %1393 = vmatpush.bf16.msra.mxu0 %v1366
      %1394 = vmatpush.bf16.msra.mxu0 %v1365
      %1395 = vmatpush.bf16.msra.mxu0 %v1364
      %1396 = vmatpush.bf16.msra.mxu0 %v1363
      %1397 = vmatpush.bf16.msra.mxu0 %v1362
      %1398 = vmatpush.bf16.msra.mxu0 %v1361
      %1399 = vmatpush.bf16.msra.mxu0 %v1360
      %1400 = vmatmul.bf16.gmra.mxu0 %v1294
      %v1401 = vpop.f32.mrf.mxu0
      %v1402 = vadd.f32 0.0, %v1401
      %v1403 = vpop.f32.mrf.mxu0
      %v1404 = vadd.f32 0.0, %v1403
      %1405 = vdwg.mxu0
      %1406 = vmatpush.bf16.msra.mxu0 %v1375
      %1407 = vmatpush.bf16.msra.mxu0 %v1374
      %1408 = vmatpush.bf16.msra.mxu0 %v1373
      %1409 = vmatpush.bf16.msra.mxu0 %v1372
      %1410 = vmatpush.bf16.msra.mxu0 %v1371
      %1411 = vmatpush.bf16.msra.mxu0 %v1370
      %1412 = vmatpush.bf16.msra.mxu0 %v1369
      %1413 = vmatpush.bf16.msra.mxu0 %v1368
      %1414 = vmatmul.bf16.gmra.mxu0 %v1295
      %v1415 = vpop.f32.mrf.mxu0
      %v1416 = vadd.f32 %v1402, %v1415
      %v1417 = vpop.f32.mrf.mxu0
      %v1418 = vadd.f32 %v1404, %v1417
      %1419 = vdwg.mxu0
      %1422 = vrot.lane.b32.xlu0 %v1416, 64
      %v1423 = vpop.permute.xlu0 %1422
      %1424 = vrot.lane.b32.xlu0 %v1418, 64
      %v1425 = vpop.permute.xlu0 %1424
      %v1428 = vadd.f32 %v507, %v1423
      %v1429 = vadd.f32 %v508, %v1425
      %v1430 = vtanh.pop %v1428
      %v1431 = vtanh.pop %v1429
      %1434 = vrot.lane.b32.xlu0 %v503, 32
      %v1435 = vpop.permute.xlu0 %1434
      %1436 = vrot.lane.b32.xlu0 %v504, 32
      %v1437 = vpop.permute.xlu0 %1436
      %v1440 = vmul.f32 %v1105, %v1435
      %v1441 = vmul.f32 %v1120, %v1437
      %v1442 = vsub.f32 1.0, %v1105
      %v1443 = vsub.f32 1.0, %v1120
      %1446 = vrot.lane.b32.xlu0 %v1430, 96
      %v1447 = vpop.permute.xlu0 %1446
      %1448 = vrot.lane.b32.xlu0 %v1431, 96
      %v1449 = vpop.permute.xlu0 %1448
      %v1452 = vmul.f32 %v1442, %v1447
      %v1453 = vmul.f32 %v1443, %v1449
      %v1454 = vadd.f32 %v1440, %v1452
      %v1455 = vadd.f32 %v1441, %v1453
      %1458 = vrot.lane.b32.xlu0 %v1454, 96
      %v1459 = vpop.permute.xlu0 %1458
      %1460 = vrot.lane.b32.xlu0 %v1455, 96
      %v1461 = vpop.permute.xlu0 %1460
      %1464 = vst.msk [vmem:[%s368] sm:$0xff] %vm576, %v1459
      %1465 = vst.msk [vmem:[%s368 + $0x8] sm:$0xff] %vm576, %v1461
      %s1466 = scalar_lea.vmem %s357, 16
      %v1467 = vld [vmem:[%s1466] sm:$0xff]
      %v1468 = vld [vmem:[%s1466 + $0x8] sm:$0xff]
      %v1469 = vunpack.c.l.bf16 %v1467
      %v1470 = vunpack.c.l.bf16 %v1468
      %v1471 = vpack.c.bf16 %v1455, %v1454
      %v1474 = vunpack.c.l.b16 %v1467
      %v1475 = vunpack.c.l.b16 %v1468
      %v1476 = vpack.c.b16 %v1475, %v1474
      %1477 = vrot.lane.b32.xlu0 %v1476, 32
      %v1478 = vpop.permute.xlu0 %1477
      %1480 = vrot.lane.b32.xlu0 %v1471, 96
      %v1481 = vpop.permute.xlu0 %1480
      %v1484 = vsel %vm517, %v1478, 0
      %1486 = vmatpush.bf16.msra.mxu0 0
      %1487 = vmatpush.bf16.msra.mxu0 0
      %1488 = vmatpush.bf16.msra.mxu0 0
      %1489 = vmatpush.bf16.msra.mxu0 0
      %1490 = vmatpush.bf16.msra.mxu0 0
      %1491 = vmatpush.bf16.msra.mxu0 0
      %1492 = vmatpush.bf16.msra.mxu0 0
      %1493 = vmatpush.bf16.msra.mxu0 %v1481
      %1494 = vmatmul.bf16.gmra.mxu0 %v1484
      %v1495 = vpop.f32.mrf.mxu0
      %v1496 = vadd.f32 0.0, %v1495
      %v1497 = vpop.f32.mrf.mxu0
      %v1498 = vadd.f32 0.0, %v1497
      %1499 = vdwg.mxu0
      %v1500 = vpack.c.bf16 %v1498, %v1496
      %v1502 = vsel %vm576, %v1500, 0
      %1504 = vmatpush.bf16.msra.mxu0 0
      %1505 = vmatpush.bf16.msra.mxu0 0
      %1506 = vmatpush.bf16.msra.mxu0 0
      %1507 = vmatpush.bf16.msra.mxu0 0
      %1508 = vmatpush.bf16.msra.mxu0 0
      %1509 = vmatpush.bf16.msra.mxu0 0
      %1510 = vmatpush.bf16.msra.mxu0 %v564
      %1511 = vmatpush.bf16.msra.mxu0 %v560
      %1512 = vmatmul.bf16.gmra.mxu0 %v1502
      %v1513 = vpop.f32.mrf.mxu0
      %v1514 = vadd.f32 0.0, %v1513
      %v1515 = vpop.f32.mrf.mxu0
      %v1516 = vadd.f32 0.0, %v1515
      %1517 = vdwg.mxu0
      %1518 = vmatpush.bf16.msra.mxu0 0
      %1519 = vmatpush.bf16.msra.mxu0 0
      %1520 = vmatpush.bf16.msra.mxu0 0
      %1521 = vmatpush.bf16.msra.mxu0 0
      %1522 = vmatpush.bf16.msra.mxu0 0
      %1523 = vmatpush.bf16.msra.mxu0 0
      %1524 = vmatpush.bf16.msra.mxu0 %v565
      %1525 = vmatpush.bf16.msra.mxu0 %v561
      %1526 = vmatmul.bf16.gmra.mxu0 %v1502
      %v1527 = vpop.f32.mrf.mxu0
      %v1528 = vadd.f32 0.0, %v1527
      %v1529 = vpop.f32.mrf.mxu0
      %v1530 = vadd.f32 0.0, %v1529
      %1531 = vdwg.mxu0
      %1532 = vmatpush.bf16.msra.mxu0 0
      %1533 = vmatpush.bf16.msra.mxu0 0
      %1534 = vmatpush.bf16.msra.mxu0 0
      %1535 = vmatpush.bf16.msra.mxu0 0
      %1536 = vmatpush.bf16.msra.mxu0 0
      %1537 = vmatpush.bf16.msra.mxu0 0
      %1538 = vmatpush.bf16.msra.mxu0 %v566
      %1539 = vmatpush.bf16.msra.mxu0 %v562
      %1540 = vmatmul.bf16.gmra.mxu0 %v1502
      %v1541 = vpop.f32.mrf.mxu0
      %v1542 = vadd.f32 0.0, %v1541
      %v1543 = vpop.f32.mrf.mxu0
      %v1544 = vadd.f32 0.0, %v1543
      %1545 = vdwg.mxu0
      %1546 = vmatpush.bf16.msra.mxu0 0
      %1547 = vmatpush.bf16.msra.mxu0 0
      %1548 = vmatpush.bf16.msra.mxu0 0
      %1549 = vmatpush.bf16.msra.mxu0 0
      %1550 = vmatpush.bf16.msra.mxu0 0
      %1551 = vmatpush.bf16.msra.mxu0 0
      %1552 = vmatpush.bf16.msra.mxu0 %v567
      %1553 = vmatpush.bf16.msra.mxu0 %v563
      %1554 = vmatmul.bf16.gmra.mxu0 %v1502
      %v1555 = vpop.f32.mrf.mxu0
      %v1556 = vadd.f32 0.0, %v1555
      %v1557 = vpop.f32.mrf.mxu0
      %v1558 = vadd.f32 0.0, %v1557
      %1559 = vdwg.mxu0
      %v1561 = vsel %vm576, %v1481, 0
      %1563 = vmatpush.bf16.msra.mxu0 0
      %1564 = vmatpush.bf16.msra.mxu0 0
      %1565 = vmatpush.bf16.msra.mxu0 0
      %1566 = vmatpush.bf16.msra.mxu0 0
      %1567 = vmatpush.bf16.msra.mxu0 0
      %1568 = vmatpush.bf16.msra.mxu0 0
      %1569 = vmatpush.bf16.msra.mxu0 %v664
      %1570 = vmatpush.bf16.msra.mxu0 %v660
      %1571 = vmatmul.bf16.gmra.mxu0 %v1561
      %v1572 = vpop.f32.mrf.mxu0
      %v1573 = vadd.f32 %v1514, %v1572
      %v1574 = vpop.f32.mrf.mxu0
      %v1575 = vadd.f32 %v1516, %v1574
      %1576 = vdwg.mxu0
      %1577 = vmatpush.bf16.msra.mxu0 0
      %1578 = vmatpush.bf16.msra.mxu0 0
      %1579 = vmatpush.bf16.msra.mxu0 0
      %1580 = vmatpush.bf16.msra.mxu0 0
      %1581 = vmatpush.bf16.msra.mxu0 0
      %1582 = vmatpush.bf16.msra.mxu0 0
      %1583 = vmatpush.bf16.msra.mxu0 %v665
      %1584 = vmatpush.bf16.msra.mxu0 %v661
      %1585 = vmatmul.bf16.gmra.mxu0 %v1561
      %v1586 = vpop.f32.mrf.mxu0
      %v1587 = vadd.f32 %v1528, %v1586
      %v1588 = vpop.f32.mrf.mxu0
      %v1589 = vadd.f32 %v1530, %v1588
      %1590 = vdwg.mxu0
      %1591 = vmatpush.bf16.msra.mxu0 0
      %1592 = vmatpush.bf16.msra.mxu0 0
      %1593 = vmatpush.bf16.msra.mxu0 0
      %1594 = vmatpush.bf16.msra.mxu0 0
      %1595 = vmatpush.bf16.msra.mxu0 0
      %1596 = vmatpush.bf16.msra.mxu0 0
      %1597 = vmatpush.bf16.msra.mxu0 %v666
      %1598 = vmatpush.bf16.msra.mxu0 %v662
      %1599 = vmatmul.bf16.gmra.mxu0 %v1561
      %v1600 = vpop.f32.mrf.mxu0
      %v1601 = vadd.f32 %v1542, %v1600
      %v1602 = vpop.f32.mrf.mxu0
      %v1603 = vadd.f32 %v1544, %v1602
      %1604 = vdwg.mxu0
      %1605 = vmatpush.bf16.msra.mxu0 0
      %1606 = vmatpush.bf16.msra.mxu0 0
      %1607 = vmatpush.bf16.msra.mxu0 0
      %1608 = vmatpush.bf16.msra.mxu0 0
      %1609 = vmatpush.bf16.msra.mxu0 0
      %1610 = vmatpush.bf16.msra.mxu0 0
      %1611 = vmatpush.bf16.msra.mxu0 %v667
      %1612 = vmatpush.bf16.msra.mxu0 %v663
      %1613 = vmatmul.bf16.gmra.mxu0 %v1561
      %v1614 = vpop.f32.mrf.mxu0
      %v1615 = vadd.f32 %v1556, %v1614
      %v1616 = vpop.f32.mrf.mxu0
      %v1617 = vadd.f32 %v1558, %v1616
      %1618 = vdwg.mxu0
      %v1619 = vunpack.c.h.b16 %v1467
      %v1620 = vunpack.c.h.b16 %v1468
      %v1621 = vpack.c.b16 %v1620, %v1619
      %v1623 = vsel %vm748, %v1621, 0
      %1625 = vmatpush.bf16.msra.mxu0 0
      %1626 = vmatpush.bf16.msra.mxu0 0
      %1627 = vmatpush.bf16.msra.mxu0 0
      %1628 = vmatpush.bf16.msra.mxu0 0
      %1629 = vmatpush.bf16.msra.mxu0 0
      %1630 = vmatpush.bf16.msra.mxu0 0
      %1631 = vmatpush.bf16.msra.mxu0 0
      %1632 = vmatpush.bf16.msra.mxu0 %v754
      %1633 = vmatmul.bf16.gmra.mxu0 %v1623
      %v1634 = vpop.f32.mrf.mxu0
      %v1635 = vadd.f32 0.0, %v1634
      %v1636 = vpop.f32.mrf.mxu0
      %v1637 = vadd.f32 0.0, %v1636
      %1638 = vdwg.mxu0
      %1639 = vmatpush.bf16.msra.mxu0 0
      %1640 = vmatpush.bf16.msra.mxu0 0
      %1641 = vmatpush.bf16.msra.mxu0 0
      %1642 = vmatpush.bf16.msra.mxu0 0
      %1643 = vmatpush.bf16.msra.mxu0 0
      %1644 = vmatpush.bf16.msra.mxu0 0
      %1645 = vmatpush.bf16.msra.mxu0 0
      %1646 = vmatpush.bf16.msra.mxu0 %v757
      %1647 = vmatmul.bf16.gmra.mxu0 %v1623
      %v1648 = vpop.f32.mrf.mxu0
      %v1649 = vadd.f32 0.0, %v1648
      %v1650 = vpop.f32.mrf.mxu0
      %v1651 = vadd.f32 0.0, %v1650
      %1652 = vdwg.mxu0
      %1653 = vmatpush.bf16.msra.mxu0 0
      %1654 = vmatpush.bf16.msra.mxu0 0
      %1655 = vmatpush.bf16.msra.mxu0 0
      %1656 = vmatpush.bf16.msra.mxu0 0
      %1657 = vmatpush.bf16.msra.mxu0 0
      %1658 = vmatpush.bf16.msra.mxu0 0
      %1659 = vmatpush.bf16.msra.mxu0 0
      %1660 = vmatpush.bf16.msra.mxu0 %v760
      %1661 = vmatmul.bf16.gmra.mxu0 %v1623
      %v1662 = vpop.f32.mrf.mxu0
      %v1663 = vadd.f32 0.0, %v1662
      %v1664 = vpop.f32.mrf.mxu0
      %v1665 = vadd.f32 0.0, %v1664
      %1666 = vdwg.mxu0
      %1667 = vmatpush.bf16.msra.mxu0 0
      %1668 = vmatpush.bf16.msra.mxu0 0
      %1669 = vmatpush.bf16.msra.mxu0 0
      %1670 = vmatpush.bf16.msra.mxu0 0
      %1671 = vmatpush.bf16.msra.mxu0 0
      %1672 = vmatpush.bf16.msra.mxu0 0
      %1673 = vmatpush.bf16.msra.mxu0 0
      %1674 = vmatpush.bf16.msra.mxu0 %v763
      %1675 = vmatmul.bf16.gmra.mxu0 %v1623
      %v1676 = vpop.f32.mrf.mxu0
      %v1677 = vadd.f32 0.0, %v1676
      %v1678 = vpop.f32.mrf.mxu0
      %v1679 = vadd.f32 0.0, %v1678
      %1680 = vdwg.mxu0
      %v1681 = vmul.f32 %v1573, %v1635
      %v1682 = vmul.f32 %v1587, %v1649
      %v1683 = vmul.f32 %v1601, %v1663
      %v1684 = vmul.f32 %v1615, %v1677
      %v1685 = vmul.f32 %v1575, %v1637
      %v1686 = vmul.f32 %v1589, %v1651
      %v1687 = vmul.f32 %v1603, %v1665
      %v1688 = vmul.f32 %v1617, %v1679
      %v1689 = vpack.c.bf16 %v1685, %v1681
      %v1690 = vpack.c.bf16 %v1686, %v1682
      %v1691 = vpack.c.bf16 %v1687, %v1683
      %v1692 = vpack.c.bf16 %v1688, %v1684
      %1693 = vmatpush.bf16.msra.mxu0 %v968
      %1694 = vmatpush.bf16.msra.mxu0 %v967
      %1695 = vmatpush.bf16.msra.mxu0 %v966
      %1696 = vmatpush.bf16.msra.mxu0 %v965
      %1697 = vmatpush.bf16.msra.mxu0 %v964
      %1698 = vmatpush.bf16.msra.mxu0 %v963
      %1699 = vmatpush.bf16.msra.mxu0 %v962
      %1700 = vmatpush.bf16.msra.mxu0 %v961
      %1701 = vmatmul.bf16.gmra.mxu0 %v1689
      %v1702 = vpop.f32.mrf.mxu0
      %v1703 = vadd.f32 0.0, %v1702
      %v1704 = vpop.f32.mrf.mxu0
      %v1705 = vadd.f32 0.0, %v1704
      %1706 = vdwg.mxu0
      %1707 = vmatpush.bf16.msra.mxu0 %v976
      %1708 = vmatpush.bf16.msra.mxu0 %v975
      %1709 = vmatpush.bf16.msra.mxu0 %v974
      %1710 = vmatpush.bf16.msra.mxu0 %v973
      %1711 = vmatpush.bf16.msra.mxu0 %v972
      %1712 = vmatpush.bf16.msra.mxu0 %v971
      %1713 = vmatpush.bf16.msra.mxu0 %v970
      %1714 = vmatpush.bf16.msra.mxu0 %v969
      %1715 = vmatmul.bf16.gmra.mxu0 %v1690
      %v1716 = vpop.f32.mrf.mxu0
      %v1717 = vadd.f32 %v1703, %v1716
      %v1718 = vpop.f32.mrf.mxu0
      %v1719 = vadd.f32 %v1705, %v1718
      %1720 = vdwg.mxu0
      %1721 = vmatpush.bf16.msra.mxu0 %v984
      %1722 = vmatpush.bf16.msra.mxu0 %v983
      %1723 = vmatpush.bf16.msra.mxu0 %v982
      %1724 = vmatpush.bf16.msra.mxu0 %v981
      %1725 = vmatpush.bf16.msra.mxu0 %v980
      %1726 = vmatpush.bf16.msra.mxu0 %v979
      %1727 = vmatpush.bf16.msra.mxu0 %v978
      %1728 = vmatpush.bf16.msra.mxu0 %v977
      %1729 = vmatmul.bf16.gmra.mxu0 %v1691
      %v1730 = vpop.f32.mrf.mxu0
      %v1731 = vadd.f32 %v1717, %v1730
      %v1732 = vpop.f32.mrf.mxu0
      %v1733 = vadd.f32 %v1719, %v1732
      %1734 = vdwg.mxu0
      %1735 = vmatpush.bf16.msra.mxu0 %v992
      %1736 = vmatpush.bf16.msra.mxu0 %v991
      %1737 = vmatpush.bf16.msra.mxu0 %v990
      %1738 = vmatpush.bf16.msra.mxu0 %v989
      %1739 = vmatpush.bf16.msra.mxu0 %v988
      %1740 = vmatpush.bf16.msra.mxu0 %v987
      %1741 = vmatpush.bf16.msra.mxu0 %v986
      %1742 = vmatpush.bf16.msra.mxu0 %v985
      %1743 = vmatmul.bf16.gmra.mxu0 %v1692
      %v1744 = vpop.f32.mrf.mxu0
      %v1745 = vadd.f32 %v1731, %v1744
      %v1746 = vpop.f32.mrf.mxu0
      %v1747 = vadd.f32 %v1733, %v1746
      %1748 = vdwg.mxu0
      %v1749 = vadd.f32 %v1469, %v1745
      %v1750 = vadd.f32 %v1470, %v1747
      %v1751 = vxor.u32 %v1749, 2147483648
      %v1752 = vxor.u32 %v1750, 2147483648
      %v1753 = vmul.f32 %v1751, 1.442695
      %v1754 = vpow.pop %v1753
      %v1755 = vmul.f32 %v1752, 1.442695
      %v1756 = vpow.pop %v1755
      %v1757 = vadd.f32 %v1754, 1.0
      %v1758 = vadd.f32 %v1756, 1.0
      %v1759 = vrcp.pop %v1757
      %v1760 = vmul.f32 %v1757, %v1759
      %v1761 = vsub.f32 1.0, %v1760
      %v1762 = vmul.f32 %v1759, %v1761
      %v1763 = vadd.f32 %v1759, %v1762
      %vm1764 = vweird.f32 %v1757
      %vm1765 = vweird.f32 %v1759
      %vm1766 = vmor %vm1764, %vm1765
      %v1767 = vsel %vm1766, %v1759, %v1763
      %v1768 = vand.u32 2147483647, %v1757
      %vm1769 = vcmp.eq.f32.partialorder %v1768, 8.507059e+37
      %v1770 = vand.u32 %v1757, 2147483648
      %v1771 = vor.u32 1.1754944e-38, %v1770
      %v1772 = vsel %vm1769, %v1771, %v1767
      %v1773 = vmul.f32 1.0, %v1772
      %v1774 = vrcp.pop %v1758
      %v1775 = vmul.f32 %v1758, %v1774
      %v1776 = vsub.f32 1.0, %v1775
      %v1777 = vmul.f32 %v1774, %v1776
      %v1778 = vadd.f32 %v1774, %v1777
      %vm1779 = vweird.f32 %v1758
      %vm1780 = vweird.f32 %v1774
      %vm1781 = vmor %vm1779, %vm1780
      %v1782 = vsel %vm1781, %v1774, %v1778
      %v1783 = vand.u32 2147483647, %v1758
      %vm1784 = vcmp.eq.f32.partialorder %v1783, 8.507059e+37
      %v1785 = vand.u32 %v1758, 2147483648
      %v1786 = vor.u32 1.1754944e-38, %v1785
      %v1787 = vsel %vm1784, %v1786, %v1782
      %v1788 = vmul.f32 1.0, %v1787
      %v1789 = vmul.f32 %v1773, %v1459
      %v1790 = vmul.f32 %v1788, %v1461
      %v1791 = vpack.c.bf16 %v1790, %v1789
      %1792 = vrot.lane.b32.xlu0 %v1476, 16
      %v1793 = vpop.permute.xlu0 %1792
      %v1795 = vsel %vm517, %v1793, 0
      %1797 = vmatpush.bf16.msra.mxu0 0
      %1798 = vmatpush.bf16.msra.mxu0 0
      %1799 = vmatpush.bf16.msra.mxu0 0
      %1800 = vmatpush.bf16.msra.mxu0 0
      %1801 = vmatpush.bf16.msra.mxu0 0
      %1802 = vmatpush.bf16.msra.mxu0 0
      %1803 = vmatpush.bf16.msra.mxu0 0
      %1804 = vmatpush.bf16.msra.mxu0 %v1791
      %1805 = vmatmul.bf16.gmra.mxu0 %v1795
      %v1806 = vpop.f32.mrf.mxu0
      %v1807 = vadd.f32 0.0, %v1806
      %v1808 = vpop.f32.mrf.mxu0
      %v1809 = vadd.f32 0.0, %v1808
      %1810 = vdwg.mxu0
      %v1811 = vpack.c.bf16 %v1809, %v1807
      %v1813 = vsel %vm576, %v1811, 0
      %1815 = vmatpush.bf16.msra.mxu0 0
      %1816 = vmatpush.bf16.msra.mxu0 0
      %1817 = vmatpush.bf16.msra.mxu0 0
      %1818 = vmatpush.bf16.msra.mxu0 0
      %1819 = vmatpush.bf16.msra.mxu0 0
      %1820 = vmatpush.bf16.msra.mxu0 0
      %1821 = vmatpush.bf16.msra.mxu0 %v1158
      %1822 = vmatpush.bf16.msra.mxu0 %v1156
      %1823 = vmatmul.bf16.gmra.mxu0 %v1813
      %v1824 = vpop.f32.mrf.mxu0
      %v1825 = vadd.f32 0.0, %v1824
      %v1826 = vpop.f32.mrf.mxu0
      %v1827 = vadd.f32 0.0, %v1826
      %1828 = vdwg.mxu0
      %1829 = vmatpush.bf16.msra.mxu0 0
      %1830 = vmatpush.bf16.msra.mxu0 0
      %1831 = vmatpush.bf16.msra.mxu0 0
      %1832 = vmatpush.bf16.msra.mxu0 0
      %1833 = vmatpush.bf16.msra.mxu0 0
      %1834 = vmatpush.bf16.msra.mxu0 0
      %1835 = vmatpush.bf16.msra.mxu0 %v1159
      %1836 = vmatpush.bf16.msra.mxu0 %v1157
      %1837 = vmatmul.bf16.gmra.mxu0 %v1813
      %v1838 = vpop.f32.mrf.mxu0
      %v1839 = vadd.f32 0.0, %v1838
      %v1840 = vpop.f32.mrf.mxu0
      %v1841 = vadd.f32 0.0, %v1840
      %1842 = vdwg.mxu0
      %v1844 = vsel %vm576, %v1791, 0
      %1846 = vmatpush.bf16.msra.mxu0 0
      %1847 = vmatpush.bf16.msra.mxu0 0
      %1848 = vmatpush.bf16.msra.mxu0 0
      %1849 = vmatpush.bf16.msra.mxu0 0
      %1850 = vmatpush.bf16.msra.mxu0 0
      %1851 = vmatpush.bf16.msra.mxu0 0
      %1852 = vmatpush.bf16.msra.mxu0 %v1209
      %1853 = vmatpush.bf16.msra.mxu0 %v1207
      %1854 = vmatmul.bf16.gmra.mxu0 %v1844
      %v1855 = vpop.f32.mrf.mxu0
      %v1856 = vadd.f32 %v1825, %v1855
      %v1857 = vpop.f32.mrf.mxu0
      %v1858 = vadd.f32 %v1827, %v1857
      %1859 = vdwg.mxu0
      %1860 = vmatpush.bf16.msra.mxu0 0
      %1861 = vmatpush.bf16.msra.mxu0 0
      %1862 = vmatpush.bf16.msra.mxu0 0
      %1863 = vmatpush.bf16.msra.mxu0 0
      %1864 = vmatpush.bf16.msra.mxu0 0
      %1865 = vmatpush.bf16.msra.mxu0 0
      %1866 = vmatpush.bf16.msra.mxu0 %v1210
      %1867 = vmatpush.bf16.msra.mxu0 %v1208
      %1868 = vmatmul.bf16.gmra.mxu0 %v1844
      %v1869 = vpop.f32.mrf.mxu0
      %v1870 = vadd.f32 %v1839, %v1869
      %v1871 = vpop.f32.mrf.mxu0
      %v1872 = vadd.f32 %v1841, %v1871
      %1873 = vdwg.mxu0
      %1874 = vrot.lane.b32.xlu0 %v1621, 120
      %v1875 = vpop.permute.xlu0 %1874
      %v1877 = vsel %vm748, %v1875, 0
      %1879 = vmatpush.bf16.msra.mxu0 0
      %1880 = vmatpush.bf16.msra.mxu0 0
      %1881 = vmatpush.bf16.msra.mxu0 0
      %1882 = vmatpush.bf16.msra.mxu0 0
      %1883 = vmatpush.bf16.msra.mxu0 0
      %1884 = vmatpush.bf16.msra.mxu0 0
      %1885 = vmatpush.bf16.msra.mxu0 0
      %1886 = vmatpush.bf16.msra.mxu0 %v1257
      %1887 = vmatmul.bf16.gmra.mxu0 %v1877
      %v1888 = vpop.f32.mrf.mxu0
      %v1889 = vadd.f32 0.0, %v1888
      %v1890 = vpop.f32.mrf.mxu0
      %v1891 = vadd.f32 0.0, %v1890
      %1892 = vdwg.mxu0
      %1893 = vmatpush.bf16.msra.mxu0 0
      %1894 = vmatpush.bf16.msra.mxu0 0
      %1895 = vmatpush.bf16.msra.mxu0 0
      %1896 = vmatpush.bf16.msra.mxu0 0
      %1897 = vmatpush.bf16.msra.mxu0 0
      %1898 = vmatpush.bf16.msra.mxu0 0
      %1899 = vmatpush.bf16.msra.mxu0 0
      %1900 = vmatpush.bf16.msra.mxu0 %v1260
      %1901 = vmatmul.bf16.gmra.mxu0 %v1877
      %v1902 = vpop.f32.mrf.mxu0
      %v1903 = vadd.f32 0.0, %v1902
      %v1904 = vpop.f32.mrf.mxu0
      %v1905 = vadd.f32 0.0, %v1904
      %1906 = vdwg.mxu0
      %v1907 = vmul.f32 %v1856, %v1889
      %v1908 = vmul.f32 %v1870, %v1903
      %v1909 = vmul.f32 %v1858, %v1891
      %v1910 = vmul.f32 %v1872, %v1905
      %v1911 = vpack.c.bf16 %v1909, %v1907
      %v1912 = vpack.c.bf16 %v1910, %v1908
      %1913 = vmatpush.bf16.msra.mxu0 %v1367
      %1914 = vmatpush.bf16.msra.mxu0 %v1366
      %1915 = vmatpush.bf16.msra.mxu0 %v1365
      %1916 = vmatpush.bf16.msra.mxu0 %v1364
      %1917 = vmatpush.bf16.msra.mxu0 %v1363
      %1918 = vmatpush.bf16.msra.mxu0 %v1362
      %1919 = vmatpush.bf16.msra.mxu0 %v1361
      %1920 = vmatpush.bf16.msra.mxu0 %v1360
      %1921 = vmatmul.bf16.gmra.mxu0 %v1911
      %v1922 = vpop.f32.mrf.mxu0
      %v1923 = vadd.f32 0.0, %v1922
      %v1924 = vpop.f32.mrf.mxu0
      %v1925 = vadd.f32 0.0, %v1924
      %1926 = vdwg.mxu0
      %1927 = vmatpush.bf16.msra.mxu0 %v1375
      %1928 = vmatpush.bf16.msra.mxu0 %v1374
      %1929 = vmatpush.bf16.msra.mxu0 %v1373
      %1930 = vmatpush.bf16.msra.mxu0 %v1372
      %1931 = vmatpush.bf16.msra.mxu0 %v1371
      %1932 = vmatpush.bf16.msra.mxu0 %v1370
      %1933 = vmatpush.bf16.msra.mxu0 %v1369
      %1934 = vmatpush.bf16.msra.mxu0 %v1368
      %1935 = vmatmul.bf16.gmra.mxu0 %v1912
      %v1936 = vpop.f32.mrf.mxu0
      %v1937 = vadd.f32 %v1923, %v1936
      %v1938 = vpop.f32.mrf.mxu0
      %v1939 = vadd.f32 %v1925, %v1938
      %1940 = vdwg.mxu0
      %1943 = vrot.lane.b32.xlu0 %v1937, 64
      %v1944 = vpop.permute.xlu0 %1943
      %1945 = vrot.lane.b32.xlu0 %v1939, 64
      %v1946 = vpop.permute.xlu0 %1945
      %v1949 = vadd.f32 %v1469, %v1944
      %v1950 = vadd.f32 %v1470, %v1946
      %v1951 = vtanh.pop %v1949
      %v1952 = vtanh.pop %v1950
      %v1953 = vmul.f32 %v1773, %v1454
      %v1954 = vmul.f32 %v1788, %v1455
      %v1955 = vsub.f32 1.0, %v1773
      %v1956 = vsub.f32 1.0, %v1788
      %1959 = vrot.lane.b32.xlu0 %v1951, 96
      %v1960 = vpop.permute.xlu0 %1959
      %1961 = vrot.lane.b32.xlu0 %v1952, 96
      %v1962 = vpop.permute.xlu0 %1961
      %v1965 = vmul.f32 %v1955, %v1960
      %v1966 = vmul.f32 %v1956, %v1962
      %v1967 = vadd.f32 %v1953, %v1965
      %v1968 = vadd.f32 %v1954, %v1966
      %1971 = vrot.lane.b32.xlu0 %v1967, 96
      %v1972 = vpop.permute.xlu0 %1971
      %1973 = vrot.lane.b32.xlu0 %v1968, 96
      %v1974 = vpop.permute.xlu0 %1973
      %s1977 = scalar_lea.vmem %s368, 16
      %1978 = vst.msk [vmem:[%s1977] sm:$0xff] %vm576, %v1972
      %1979 = vst.msk [vmem:[%s1977 + $0x8] sm:$0xff] %vm576, %v1974
      %s1980 = scalar_lea.vmem %s357, 32
      %v1981 = vld [vmem:[%s1980] sm:$0xff]
      %v1982 = vld [vmem:[%s1980 + $0x8] sm:$0xff]
      %v1983 = vunpack.c.l.bf16 %v1981
      %v1984 = vunpack.c.l.bf16 %v1982
      %v1985 = vpack.c.bf16 %v1968, %v1967
      %v1988 = vunpack.c.l.b16 %v1981
      %v1989 = vunpack.c.l.b16 %v1982
      %v1990 = vpack.c.b16 %v1989, %v1988
      %1991 = vrot.lane.b32.xlu0 %v1990, 32
      %v1992 = vpop.permute.xlu0 %1991
      %1994 = vrot.lane.b32.xlu0 %v1985, 96
      %v1995 = vpop.permute.xlu0 %1994
      %v1998 = vsel %vm517, %v1992, 0
      %2000 = vmatpush.bf16.msra.mxu0 0
      %2001 = vmatpush.bf16.msra.mxu0 0
      %2002 = vmatpush.bf16.msra.mxu0 0
      %2003 = vmatpush.bf16.msra.mxu0 0
      %2004 = vmatpush.bf16.msra.mxu0 0
      %2005 = vmatpush.bf16.msra.mxu0 0
      %2006 = vmatpush.bf16.msra.mxu0 0
      %2007 = vmatpush.bf16.msra.mxu0 %v1995
      %2008 = vmatmul.bf16.gmra.mxu0 %v1998
      %v2009 = vpop.f32.mrf.mxu0
      %v2010 = vadd.f32 0.0, %v2009
      %v2011 = vpop.f32.mrf.mxu0
      %v2012 = vadd.f32 0.0, %v2011
      %2013 = vdwg.mxu0
      %v2014 = vpack.c.bf16 %v2012, %v2010
      %v2016 = vsel %vm576, %v2014, 0
      %2018 = vmatpush.bf16.msra.mxu0 0
      %2019 = vmatpush.bf16.msra.mxu0 0
      %2020 = vmatpush.bf16.msra.mxu0 0
      %2021 = vmatpush.bf16.msra.mxu0 0
      %2022 = vmatpush.bf16.msra.mxu0 0
      %2023 = vmatpush.bf16.msra.mxu0 0
      %2024 = vmatpush.bf16.msra.mxu0 %v564
      %2025 = vmatpush.bf16.msra.mxu0 %v560
      %2026 = vmatmul.bf16.gmra.mxu0 %v2016
      %v2027 = vpop.f32.mrf.mxu0
      %v2028 = vadd.f32 0.0, %v2027
      %v2029 = vpop.f32.mrf.mxu0
      %v2030 = vadd.f32 0.0, %v2029
      %2031 = vdwg.mxu0
      %2032 = vmatpush.bf16.msra.mxu0 0
      %2033 = vmatpush.bf16.msra.mxu0 0
      %2034 = vmatpush.bf16.msra.mxu0 0
      %2035 = vmatpush.bf16.msra.mxu0 0
      %2036 = vmatpush.bf16.msra.mxu0 0
      %2037 = vmatpush.bf16.msra.mxu0 0
      %2038 = vmatpush.bf16.msra.mxu0 %v565
      %2039 = vmatpush.bf16.msra.mxu0 %v561
      %2040 = vmatmul.bf16.gmra.mxu0 %v2016
      %v2041 = vpop.f32.mrf.mxu0
      %v2042 = vadd.f32 0.0, %v2041
      %v2043 = vpop.f32.mrf.mxu0
      %v2044 = vadd.f32 0.0, %v2043
      %2045 = vdwg.mxu0
      %2046 = vmatpush.bf16.msra.mxu0 0
      %2047 = vmatpush.bf16.msra.mxu0 0
      %2048 = vmatpush.bf16.msra.mxu0 0
      %2049 = vmatpush.bf16.msra.mxu0 0
      %2050 = vmatpush.bf16.msra.mxu0 0
      %2051 = vmatpush.bf16.msra.mxu0 0
      %2052 = vmatpush.bf16.msra.mxu0 %v566
      %2053 = vmatpush.bf16.msra.mxu0 %v562
      %2054 = vmatmul.bf16.gmra.mxu0 %v2016
      %v2055 = vpop.f32.mrf.mxu0
      %v2056 = vadd.f32 0.0, %v2055
      %v2057 = vpop.f32.mrf.mxu0
      %v2058 = vadd.f32 0.0, %v2057
      %2059 = vdwg.mxu0
      %2060 = vmatpush.bf16.msra.mxu0 0
      %2061 = vmatpush.bf16.msra.mxu0 0
      %2062 = vmatpush.bf16.msra.mxu0 0
      %2063 = vmatpush.bf16.msra.mxu0 0
      %2064 = vmatpush.bf16.msra.mxu0 0
      %2065 = vmatpush.bf16.msra.mxu0 0
      %2066 = vmatpush.bf16.msra.mxu0 %v567
      %2067 = vmatpush.bf16.msra.mxu0 %v563
      %2068 = vmatmul.bf16.gmra.mxu0 %v2016
      %v2069 = vpop.f32.mrf.mxu0
      %v2070 = vadd.f32 0.0, %v2069
      %v2071 = vpop.f32.mrf.mxu0
      %v2072 = vadd.f32 0.0, %v2071
      %2073 = vdwg.mxu0
      %v2075 = vsel %vm576, %v1995, 0
      %2077 = vmatpush.bf16.msra.mxu0 0
      %2078 = vmatpush.bf16.msra.mxu0 0
      %2079 = vmatpush.bf16.msra.mxu0 0
      %2080 = vmatpush.bf16.msra.mxu0 0
      %2081 = vmatpush.bf16.msra.mxu0 0
      %2082 = vmatpush.bf16.msra.mxu0 0
      %2083 = vmatpush.bf16.msra.mxu0 %v664
      %2084 = vmatpush.bf16.msra.mxu0 %v660
      %2085 = vmatmul.bf16.gmra.mxu0 %v2075
      %v2086 = vpop.f32.mrf.mxu0
      %v2087 = vadd.f32 %v2028, %v2086
      %v2088 = vpop.f32.mrf.mxu0
      %v2089 = vadd.f32 %v2030, %v2088
      %2090 = vdwg.mxu0
      %2091 = vmatpush.bf16.msra.mxu0 0
      %2092 = vmatpush.bf16.msra.mxu0 0
      %2093 = vmatpush.bf16.msra.mxu0 0
      %2094 = vmatpush.bf16.msra.mxu0 0
      %2095 = vmatpush.bf16.msra.mxu0 0
      %2096 = vmatpush.bf16.msra.mxu0 0
      %2097 = vmatpush.bf16.msra.mxu0 %v665
      %2098 = vmatpush.bf16.msra.mxu0 %v661
      %2099 = vmatmul.bf16.gmra.mxu0 %v2075
      %v2100 = vpop.f32.mrf.mxu0
      %v2101 = vadd.f32 %v2042, %v2100
      %v2102 = vpop.f32.mrf.mxu0
      %v2103 = vadd.f32 %v2044, %v2102
      %2104 = vdwg.mxu0
      %2105 = vmatpush.bf16.msra.mxu0 0
      %2106 = vmatpush.bf16.msra.mxu0 0
      %2107 = vmatpush.bf16.msra.mxu0 0
      %2108 = vmatpush.bf16.msra.mxu0 0
      %2109 = vmatpush.bf16.msra.mxu0 0
      %2110 = vmatpush.bf16.msra.mxu0 0
      %2111 = vmatpush.bf16.msra.mxu0 %v666
      %2112 = vmatpush.bf16.msra.mxu0 %v662
      %2113 = vmatmul.bf16.gmra.mxu0 %v2075
      %v2114 = vpop.f32.mrf.mxu0
      %v2115 = vadd.f32 %v2056, %v2114
      %v2116 = vpop.f32.mrf.mxu0
      %v2117 = vadd.f32 %v2058, %v2116
      %2118 = vdwg.mxu0
      %2119 = vmatpush.bf16.msra.mxu0 0
      %2120 = vmatpush.bf16.msra.mxu0 0
      %2121 = vmatpush.bf16.msra.mxu0 0
      %2122 = vmatpush.bf16.msra.mxu0 0
      %2123 = vmatpush.bf16.msra.mxu0 0
      %2124 = vmatpush.bf16.msra.mxu0 0
      %2125 = vmatpush.bf16.msra.mxu0 %v667
      %2126 = vmatpush.bf16.msra.mxu0 %v663
      %2127 = vmatmul.bf16.gmra.mxu0 %v2075
      %v2128 = vpop.f32.mrf.mxu0
      %v2129 = vadd.f32 %v2070, %v2128
      %v2130 = vpop.f32.mrf.mxu0
      %v2131 = vadd.f32 %v2072, %v2130
      %2132 = vdwg.mxu0
      %v2133 = vunpack.c.h.b16 %v1981
      %v2134 = vunpack.c.h.b16 %v1982
      %v2135 = vpack.c.b16 %v2134, %v2133
      %v2137 = vsel %vm748, %v2135, 0
      %2139 = vmatpush.bf16.msra.mxu0 0
      %2140 = vmatpush.bf16.msra.mxu0 0
      %2141 = vmatpush.bf16.msra.mxu0 0
      %2142 = vmatpush.bf16.msra.mxu0 0
      %2143 = vmatpush.bf16.msra.mxu0 0
      %2144 = vmatpush.bf16.msra.mxu0 0
      %2145 = vmatpush.bf16.msra.mxu0 0
      %2146 = vmatpush.bf16.msra.mxu0 %v754
      %2147 = vmatmul.bf16.gmra.mxu0 %v2137
      %v2148 = vpop.f32.mrf.mxu0
      %v2149 = vadd.f32 0.0, %v2148
      %v2150 = vpop.f32.mrf.mxu0
      %v2151 = vadd.f32 0.0, %v2150
      %2152 = vdwg.mxu0
      %2153 = vmatpush.bf16.msra.mxu0 0
      %2154 = vmatpush.bf16.msra.mxu0 0
      %2155 = vmatpush.bf16.msra.mxu0 0
      %2156 = vmatpush.bf16.msra.mxu0 0
      %2157 = vmatpush.bf16.msra.mxu0 0
      %2158 = vmatpush.bf16.msra.mxu0 0
      %2159 = vmatpush.bf16.msra.mxu0 0
      %2160 = vmatpush.bf16.msra.mxu0 %v757
      %2161 = vmatmul.bf16.gmra.mxu0 %v2137
      %v2162 = vpop.f32.mrf.mxu0
      %v2163 = vadd.f32 0.0, %v2162
      %v2164 = vpop.f32.mrf.mxu0
      %v2165 = vadd.f32 0.0, %v2164
      %2166 = vdwg.mxu0
      %2167 = vmatpush.bf16.msra.mxu0 0
      %2168 = vmatpush.bf16.msra.mxu0 0
      %2169 = vmatpush.bf16.msra.mxu0 0
      %2170 = vmatpush.bf16.msra.mxu0 0
      %2171 = vmatpush.bf16.msra.mxu0 0
      %2172 = vmatpush.bf16.msra.mxu0 0
      %2173 = vmatpush.bf16.msra.mxu0 0
      %2174 = vmatpush.bf16.msra.mxu0 %v760
      %2175 = vmatmul.bf16.gmra.mxu0 %v2137
      %v2176 = vpop.f32.mrf.mxu0
      %v2177 = vadd.f32 0.0, %v2176
      %v2178 = vpop.f32.mrf.mxu0
      %v2179 = vadd.f32 0.0, %v2178
      %2180 = vdwg.mxu0
      %2181 = vmatpush.bf16.msra.mxu0 0
      %2182 = vmatpush.bf16.msra.mxu0 0
      %2183 = vmatpush.bf16.msra.mxu0 0
      %2184 = vmatpush.bf16.msra.mxu0 0
      %2185 = vmatpush.bf16.msra.mxu0 0
      %2186 = vmatpush.bf16.msra.mxu0 0
      %2187 = vmatpush.bf16.msra.mxu0 0
      %2188 = vmatpush.bf16.msra.mxu0 %v763
      %2189 = vmatmul.bf16.gmra.mxu0 %v2137
      %v2190 = vpop.f32.mrf.mxu0
      %v2191 = vadd.f32 0.0, %v2190
      %v2192 = vpop.f32.mrf.mxu0
      %v2193 = vadd.f32 0.0, %v2192
      %2194 = vdwg.mxu0
      %v2195 = vmul.f32 %v2087, %v2149
      %v2196 = vmul.f32 %v2101, %v2163
      %v2197 = vmul.f32 %v2115, %v2177
      %v2198 = vmul.f32 %v2129, %v2191
      %v2199 = vmul.f32 %v2089, %v2151
      %v2200 = vmul.f32 %v2103, %v2165
      %v2201 = vmul.f32 %v2117, %v2179
      %v2202 = vmul.f32 %v2131, %v2193
      %v2203 = vpack.c.bf16 %v2199, %v2195
      %v2204 = vpack.c.bf16 %v2200, %v2196
      %v2205 = vpack.c.bf16 %v2201, %v2197
      %v2206 = vpack.c.bf16 %v2202, %v2198
      %2207 = vmatpush.bf16.msra.mxu0 %v968
      %2208 = vmatpush.bf16.msra.mxu0 %v967
      %2209 = vmatpush.bf16.msra.mxu0 %v966
      %2210 = vmatpush.bf16.msra.mxu0 %v965
      %2211 = vmatpush.bf16.msra.mxu0 %v964
      %2212 = vmatpush.bf16.msra.mxu0 %v963
      %2213 = vmatpush.bf16.msra.mxu0 %v962
      %2214 = vmatpush.bf16.msra.mxu0 %v961
      %2215 = vmatmul.bf16.gmra.mxu0 %v2203
      %v2216 = vpop.f32.mrf.mxu0
      %v2217 = vadd.f32 0.0, %v2216
      %v2218 = vpop.f32.mrf.mxu0
      %v2219 = vadd.f32 0.0, %v2218
      %2220 = vdwg.mxu0
      %2221 = vmatpush.bf16.msra.mxu0 %v976
      %2222 = vmatpush.bf16.msra.mxu0 %v975
      %2223 = vmatpush.bf16.msra.mxu0 %v974
      %2224 = vmatpush.bf16.msra.mxu0 %v973
      %2225 = vmatpush.bf16.msra.mxu0 %v972
      %2226 = vmatpush.bf16.msra.mxu0 %v971
      %2227 = vmatpush.bf16.msra.mxu0 %v970
      %2228 = vmatpush.bf16.msra.mxu0 %v969
      %2229 = vmatmul.bf16.gmra.mxu0 %v2204
      %v2230 = vpop.f32.mrf.mxu0
      %v2231 = vadd.f32 %v2217, %v2230
      %v2232 = vpop.f32.mrf.mxu0
      %v2233 = vadd.f32 %v2219, %v2232
      %2234 = vdwg.mxu0
      %2235 = vmatpush.bf16.msra.mxu0 %v984
      %2236 = vmatpush.bf16.msra.mxu0 %v983
      %2237 = vmatpush.bf16.msra.mxu0 %v982
      %2238 = vmatpush.bf16.msra.mxu0 %v981
      %2239 = vmatpush.bf16.msra.mxu0 %v980
      %2240 = vmatpush.bf16.msra.mxu0 %v979
      %2241 = vmatpush.bf16.msra.mxu0 %v978
      %2242 = vmatpush.bf16.msra.mxu0 %v977
      %2243 = vmatmul.bf16.gmra.mxu0 %v2205
      %v2244 = vpop.f32.mrf.mxu0
      %v2245 = vadd.f32 %v2231, %v2244
      %v2246 = vpop.f32.mrf.mxu0
      %v2247 = vadd.f32 %v2233, %v2246
      %2248 = vdwg.mxu0
      %2249 = vmatpush.bf16.msra.mxu0 %v992
      %2250 = vmatpush.bf16.msra.mxu0 %v991
      %2251 = vmatpush.bf16.msra.mxu0 %v990
      %2252 = vmatpush.bf16.msra.mxu0 %v989
      %2253 = vmatpush.bf16.msra.mxu0 %v988
      %2254 = vmatpush.bf16.msra.mxu0 %v987
      %2255 = vmatpush.bf16.msra.mxu0 %v986
      %2256 = vmatpush.bf16.msra.mxu0 %v985
      %2257 = vmatmul.bf16.gmra.mxu0 %v2206
      %v2258 = vpop.f32.mrf.mxu0
      %v2259 = vadd.f32 %v2245, %v2258
      %v2260 = vpop.f32.mrf.mxu0
      %v2261 = vadd.f32 %v2247, %v2260
      %2262 = vdwg.mxu0
      %v2263 = vadd.f32 %v1983, %v2259
      %v2264 = vadd.f32 %v1984, %v2261
      %v2265 = vxor.u32 %v2263, 2147483648
      %v2266 = vxor.u32 %v2264, 2147483648
      %v2267 = vmul.f32 %v2265, 1.442695
      %v2268 = vpow.pop %v2267
      %v2269 = vmul.f32 %v2266, 1.442695
      %v2270 = vpow.pop %v2269
      %v2271 = vadd.f32 %v2268, 1.0
      %v2272 = vadd.f32 %v2270, 1.0
      %v2273 = vrcp.pop %v2271
      %v2274 = vmul.f32 %v2271, %v2273
      %v2275 = vsub.f32 1.0, %v2274
      %v2276 = vmul.f32 %v2273, %v2275
      %v2277 = vadd.f32 %v2273, %v2276
      %vm2278 = vweird.f32 %v2271
      %vm2279 = vweird.f32 %v2273
      %vm2280 = vmor %vm2278, %vm2279
      %v2281 = vsel %vm2280, %v2273, %v2277
      %v2282 = vand.u32 2147483647, %v2271
      %vm2283 = vcmp.eq.f32.partialorder %v2282, 8.507059e+37
      %v2284 = vand.u32 %v2271, 2147483648
      %v2285 = vor.u32 1.1754944e-38, %v2284
      %v2286 = vsel %vm2283, %v2285, %v2281
      %v2287 = vmul.f32 1.0, %v2286
      %v2288 = vrcp.pop %v2272
      %v2289 = vmul.f32 %v2272, %v2288
      %v2290 = vsub.f32 1.0, %v2289
      %v2291 = vmul.f32 %v2288, %v2290
      %v2292 = vadd.f32 %v2288, %v2291
      %vm2293 = vweird.f32 %v2272
      %vm2294 = vweird.f32 %v2288
      %vm2295 = vmor %vm2293, %vm2294
      %v2296 = vsel %vm2295, %v2288, %v2292
      %v2297 = vand.u32 2147483647, %v2272
      %vm2298 = vcmp.eq.f32.partialorder %v2297, 8.507059e+37
      %v2299 = vand.u32 %v2272, 2147483648
      %v2300 = vor.u32 1.1754944e-38, %v2299
      %v2301 = vsel %vm2298, %v2300, %v2296
      %v2302 = vmul.f32 1.0, %v2301
      %v2303 = vmul.f32 %v2287, %v1972
      %v2304 = vmul.f32 %v2302, %v1974
      %v2305 = vpack.c.bf16 %v2304, %v2303
      %2306 = vrot.lane.b32.xlu0 %v1990, 16
      %v2307 = vpop.permute.xlu0 %2306
      %v2309 = vsel %vm517, %v2307, 0
      %2311 = vmatpush.bf16.msra.mxu0 0
      %2312 = vmatpush.bf16.msra.mxu0 0
      %2313 = vmatpush.bf16.msra.mxu0 0
      %2314 = vmatpush.bf16.msra.mxu0 0
      %2315 = vmatpush.bf16.msra.mxu0 0
      %2316 = vmatpush.bf16.msra.mxu0 0
      %2317 = vmatpush.bf16.msra.mxu0 0
      %2318 = vmatpush.bf16.msra.mxu0 %v2305
      %2319 = vmatmul.bf16.gmra.mxu0 %v2309
      %v2320 = vpop.f32.mrf.mxu0
      %v2321 = vadd.f32 0.0, %v2320
      %v2322 = vpop.f32.mrf.mxu0
      %v2323 = vadd.f32 0.0, %v2322
      %2324 = vdwg.mxu0
      %v2325 = vpack.c.bf16 %v2323, %v2321
      %v2327 = vsel %vm576, %v2325, 0
      %2329 = vmatpush.bf16.msra.mxu0 0
      %2330 = vmatpush.bf16.msra.mxu0 0
      %2331 = vmatpush.bf16.msra.mxu0 0
      %2332 = vmatpush.bf16.msra.mxu0 0
      %2333 = vmatpush.bf16.msra.mxu0 0
      %2334 = vmatpush.bf16.msra.mxu0 0
      %2335 = vmatpush.bf16.msra.mxu0 %v1158
      %2336 = vmatpush.bf16.msra.mxu0 %v1156
      %2337 = vmatmul.bf16.gmra.mxu0 %v2327
      %v2338 = vpop.f32.mrf.mxu0
      %v2339 = vadd.f32 0.0, %v2338
      %v2340 = vpop.f32.mrf.mxu0
      %v2341 = vadd.f32 0.0, %v2340
      %2342 = vdwg.mxu0
      %2343 = vmatpush.bf16.msra.mxu0 0
      %2344 = vmatpush.bf16.msra.mxu0 0
      %2345 = vmatpush.bf16.msra.mxu0 0
      %2346 = vmatpush.bf16.msra.mxu0 0
      %2347 = vmatpush.bf16.msra.mxu0 0
      %2348 = vmatpush.bf16.msra.mxu0 0
      %2349 = vmatpush.bf16.msra.mxu0 %v1159
      %2350 = vmatpush.bf16.msra.mxu0 %v1157
      %2351 = vmatmul.bf16.gmra.mxu0 %v2327
      %v2352 = vpop.f32.mrf.mxu0
      %v2353 = vadd.f32 0.0, %v2352
      %v2354 = vpop.f32.mrf.mxu0
      %v2355 = vadd.f32 0.0, %v2354
      %2356 = vdwg.mxu0
      %v2358 = vsel %vm576, %v2305, 0
      %2360 = vmatpush.bf16.msra.mxu0 0
      %2361 = vmatpush.bf16.msra.mxu0 0
      %2362 = vmatpush.bf16.msra.mxu0 0
      %2363 = vmatpush.bf16.msra.mxu0 0
      %2364 = vmatpush.bf16.msra.mxu0 0
      %2365 = vmatpush.bf16.msra.mxu0 0
      %2366 = vmatpush.bf16.msra.mxu0 %v1209
      %2367 = vmatpush.bf16.msra.mxu0 %v1207
      %2368 = vmatmul.bf16.gmra.mxu0 %v2358
      %v2369 = vpop.f32.mrf.mxu0
      %v2370 = vadd.f32 %v2339, %v2369
      %v2371 = vpop.f32.mrf.mxu0
      %v2372 = vadd.f32 %v2341, %v2371
      %2373 = vdwg.mxu0
      %2374 = vmatpush.bf16.msra.mxu0 0
      %2375 = vmatpush.bf16.msra.mxu0 0
      %2376 = vmatpush.bf16.msra.mxu0 0
      %2377 = vmatpush.bf16.msra.mxu0 0
      %2378 = vmatpush.bf16.msra.mxu0 0
      %2379 = vmatpush.bf16.msra.mxu0 0
      %2380 = vmatpush.bf16.msra.mxu0 %v1210
      %2381 = vmatpush.bf16.msra.mxu0 %v1208
      %2382 = vmatmul.bf16.gmra.mxu0 %v2358
      %v2383 = vpop.f32.mrf.mxu0
      %v2384 = vadd.f32 %v2353, %v2383
      %v2385 = vpop.f32.mrf.mxu0
      %v2386 = vadd.f32 %v2355, %v2385
      %2387 = vdwg.mxu0
      %2388 = vrot.lane.b32.xlu0 %v2135, 120
      %v2389 = vpop.permute.xlu0 %2388
      %v2391 = vsel %vm748, %v2389, 0
      %2393 = vmatpush.bf16.msra.mxu0 0
      %2394 = vmatpush.bf16.msra.mxu0 0
      %2395 = vmatpush.bf16.msra.mxu0 0
      %2396 = vmatpush.bf16.msra.mxu0 0
      %2397 = vmatpush.bf16.msra.mxu0 0
      %2398 = vmatpush.bf16.msra.mxu0 0
      %2399 = vmatpush.bf16.msra.mxu0 0
      %2400 = vmatpush.bf16.msra.mxu0 %v1257
      %2401 = vmatmul.bf16.gmra.mxu0 %v2391
      %v2402 = vpop.f32.mrf.mxu0
      %v2403 = vadd.f32 0.0, %v2402
      %v2404 = vpop.f32.mrf.mxu0
      %v2405 = vadd.f32 0.0, %v2404
      %2406 = vdwg.mxu0
      %2407 = vmatpush.bf16.msra.mxu0 0
      %2408 = vmatpush.bf16.msra.mxu0 0
      %2409 = vmatpush.bf16.msra.mxu0 0
      %2410 = vmatpush.bf16.msra.mxu0 0
      %2411 = vmatpush.bf16.msra.mxu0 0
      %2412 = vmatpush.bf16.msra.mxu0 0
      %2413 = vmatpush.bf16.msra.mxu0 0
      %2414 = vmatpush.bf16.msra.mxu0 %v1260
      %2415 = vmatmul.bf16.gmra.mxu0 %v2391
      %v2416 = vpop.f32.mrf.mxu0
      %v2417 = vadd.f32 0.0, %v2416
      %v2418 = vpop.f32.mrf.mxu0
      %v2419 = vadd.f32 0.0, %v2418
      %2420 = vdwg.mxu0
      %v2421 = vmul.f32 %v2370, %v2403
      %v2422 = vmul.f32 %v2384, %v2417
      %v2423 = vmul.f32 %v2372, %v2405
      %v2424 = vmul.f32 %v2386, %v2419
      %v2425 = vpack.c.bf16 %v2423, %v2421
      %v2426 = vpack.c.bf16 %v2424, %v2422
      %2427 = vmatpush.bf16.msra.mxu0 %v1367
      %2428 = vmatpush.bf16.msra.mxu0 %v1366
      %2429 = vmatpush.bf16.msra.mxu0 %v1365
      %2430 = vmatpush.bf16.msra.mxu0 %v1364
      %2431 = vmatpush.bf16.msra.mxu0 %v1363
      %2432 = vmatpush.bf16.msra.mxu0 %v1362
      %2433 = vmatpush.bf16.msra.mxu0 %v1361
      %2434 = vmatpush.bf16.msra.mxu0 %v1360
      %2435 = vmatmul.bf16.gmra.mxu0 %v2425
      %v2436 = vpop.f32.mrf.mxu0
      %v2437 = vadd.f32 0.0, %v2436
      %v2438 = vpop.f32.mrf.mxu0
      %v2439 = vadd.f32 0.0, %v2438
      %2440 = vdwg.mxu0
      %2441 = vmatpush.bf16.msra.mxu0 %v1375
      %2442 = vmatpush.bf16.msra.mxu0 %v1374
      %2443 = vmatpush.bf16.msra.mxu0 %v1373
      %2444 = vmatpush.bf16.msra.mxu0 %v1372
      %2445 = vmatpush.bf16.msra.mxu0 %v1371
      %2446 = vmatpush.bf16.msra.mxu0 %v1370
      %2447 = vmatpush.bf16.msra.mxu0 %v1369
      %2448 = vmatpush.bf16.msra.mxu0 %v1368
      %2449 = vmatmul.bf16.gmra.mxu0 %v2426
      %v2450 = vpop.f32.mrf.mxu0
      %v2451 = vadd.f32 %v2437, %v2450
      %v2452 = vpop.f32.mrf.mxu0
      %v2453 = vadd.f32 %v2439, %v2452
      %2454 = vdwg.mxu0
      %2457 = vrot.lane.b32.xlu0 %v2451, 64
      %v2458 = vpop.permute.xlu0 %2457
      %2459 = vrot.lane.b32.xlu0 %v2453, 64
      %v2460 = vpop.permute.xlu0 %2459
      %v2463 = vadd.f32 %v1983, %v2458
      %v2464 = vadd.f32 %v1984, %v2460
      %v2465 = vtanh.pop %v2463
      %v2466 = vtanh.pop %v2464
      %v2467 = vmul.f32 %v2287, %v1967
      %v2468 = vmul.f32 %v2302, %v1968
      %v2469 = vsub.f32 1.0, %v2287
      %v2470 = vsub.f32 1.0, %v2302
      %2473 = vrot.lane.b32.xlu0 %v2465, 96
      %v2474 = vpop.permute.xlu0 %2473
      %2475 = vrot.lane.b32.xlu0 %v2466, 96
      %v2476 = vpop.permute.xlu0 %2475
      %v2479 = vmul.f32 %v2469, %v2474
      %v2480 = vmul.f32 %v2470, %v2476
      %v2481 = vadd.f32 %v2467, %v2479
      %v2482 = vadd.f32 %v2468, %v2480
      %2485 = vrot.lane.b32.xlu0 %v2481, 96
      %v2486 = vpop.permute.xlu0 %2485
      %2487 = vrot.lane.b32.xlu0 %v2482, 96
      %v2488 = vpop.permute.xlu0 %2487
      %s2491 = scalar_lea.vmem %s368, 32
      %2492 = vst.msk [vmem:[%s2491] sm:$0xff] %vm576, %v2486
      %2493 = vst.msk [vmem:[%s2491 + $0x8] sm:$0xff] %vm576, %v2488
      %s2494 = scalar_lea.vmem %s357, 48
      %v2495 = vld [vmem:[%s2494] sm:$0xff]
      %v2496 = vld [vmem:[%s2494 + $0x8] sm:$0xff]
      %v2497 = vunpack.c.l.bf16 %v2495
      %v2498 = vunpack.c.l.bf16 %v2496
      %v2499 = vpack.c.bf16 %v2482, %v2481
      %v2502 = vunpack.c.l.b16 %v2495
      %v2503 = vunpack.c.l.b16 %v2496
      %v2504 = vpack.c.b16 %v2503, %v2502
      %2505 = vrot.lane.b32.xlu0 %v2504, 32
      %v2506 = vpop.permute.xlu0 %2505
      %2508 = vrot.lane.b32.xlu0 %v2499, 96
      %v2509 = vpop.permute.xlu0 %2508
      %v2512 = vsel %vm517, %v2506, 0
      %2514 = vmatpush.bf16.msra.mxu0 0
      %2515 = vmatpush.bf16.msra.mxu0 0
      %2516 = vmatpush.bf16.msra.mxu0 0
      %2517 = vmatpush.bf16.msra.mxu0 0
      %2518 = vmatpush.bf16.msra.mxu0 0
      %2519 = vmatpush.bf16.msra.mxu0 0
      %2520 = vmatpush.bf16.msra.mxu0 0
      %2521 = vmatpush.bf16.msra.mxu0 %v2509
      %2522 = vmatmul.bf16.gmra.mxu0 %v2512
      %v2523 = vpop.f32.mrf.mxu0
      %v2524 = vadd.f32 0.0, %v2523
      %v2525 = vpop.f32.mrf.mxu0
      %v2526 = vadd.f32 0.0, %v2525
      %2527 = vdwg.mxu0
      %v2528 = vpack.c.bf16 %v2526, %v2524
      %v2530 = vsel %vm576, %v2528, 0
      %2532 = vmatpush.bf16.msra.mxu0 0
      %2533 = vmatpush.bf16.msra.mxu0 0
      %2534 = vmatpush.bf16.msra.mxu0 0
      %2535 = vmatpush.bf16.msra.mxu0 0
      %2536 = vmatpush.bf16.msra.mxu0 0
      %2537 = vmatpush.bf16.msra.mxu0 0
      %2538 = vmatpush.bf16.msra.mxu0 %v564
      %2539 = vmatpush.bf16.msra.mxu0 %v560
      %2540 = vmatmul.bf16.gmra.mxu0 %v2530
      %v2541 = vpop.f32.mrf.mxu0
      %v2542 = vadd.f32 0.0, %v2541
      %v2543 = vpop.f32.mrf.mxu0
      %v2544 = vadd.f32 0.0, %v2543
      %2545 = vdwg.mxu0
      %2546 = vmatpush.bf16.msra.mxu0 0
      %2547 = vmatpush.bf16.msra.mxu0 0
      %2548 = vmatpush.bf16.msra.mxu0 0
      %2549 = vmatpush.bf16.msra.mxu0 0
      %2550 = vmatpush.bf16.msra.mxu0 0
      %2551 = vmatpush.bf16.msra.mxu0 0
      %2552 = vmatpush.bf16.msra.mxu0 %v565
      %2553 = vmatpush.bf16.msra.mxu0 %v561
      %2554 = vmatmul.bf16.gmra.mxu0 %v2530
      %v2555 = vpop.f32.mrf.mxu0
      %v2556 = vadd.f32 0.0, %v2555
      %v2557 = vpop.f32.mrf.mxu0
      %v2558 = vadd.f32 0.0, %v2557
      %2559 = vdwg.mxu0
      %2560 = vmatpush.bf16.msra.mxu0 0
      %2561 = vmatpush.bf16.msra.mxu0 0
      %2562 = vmatpush.bf16.msra.mxu0 0
      %2563 = vmatpush.bf16.msra.mxu0 0
      %2564 = vmatpush.bf16.msra.mxu0 0
      %2565 = vmatpush.bf16.msra.mxu0 0
      %2566 = vmatpush.bf16.msra.mxu0 %v566
      %2567 = vmatpush.bf16.msra.mxu0 %v562
      %2568 = vmatmul.bf16.gmra.mxu0 %v2530
      %v2569 = vpop.f32.mrf.mxu0
      %v2570 = vadd.f32 0.0, %v2569
      %v2571 = vpop.f32.mrf.mxu0
      %v2572 = vadd.f32 0.0, %v2571
      %2573 = vdwg.mxu0
      %2574 = vmatpush.bf16.msra.mxu0 0
      %2575 = vmatpush.bf16.msra.mxu0 0
      %2576 = vmatpush.bf16.msra.mxu0 0
      %2577 = vmatpush.bf16.msra.mxu0 0
      %2578 = vmatpush.bf16.msra.mxu0 0
      %2579 = vmatpush.bf16.msra.mxu0 0
      %2580 = vmatpush.bf16.msra.mxu0 %v567
      %2581 = vmatpush.bf16.msra.mxu0 %v563
      %2582 = vmatmul.bf16.gmra.mxu0 %v2530
      %v2583 = vpop.f32.mrf.mxu0
      %v2584 = vadd.f32 0.0, %v2583
      %v2585 = vpop.f32.mrf.mxu0
      %v2586 = vadd.f32 0.0, %v2585
      %2587 = vdwg.mxu0
      %v2589 = vsel %vm576, %v2509, 0
      %2591 = vmatpush.bf16.msra.mxu0 0
      %2592 = vmatpush.bf16.msra.mxu0 0
      %2593 = vmatpush.bf16.msra.mxu0 0
      %2594 = vmatpush.bf16.msra.mxu0 0
      %2595 = vmatpush.bf16.msra.mxu0 0
      %2596 = vmatpush.bf16.msra.mxu0 0
      %2597 = vmatpush.bf16.msra.mxu0 %v664
      %2598 = vmatpush.bf16.msra.mxu0 %v660
      %2599 = vmatmul.bf16.gmra.mxu0 %v2589
      %v2600 = vpop.f32.mrf.mxu0
      %v2601 = vadd.f32 %v2542, %v2600
      %v2602 = vpop.f32.mrf.mxu0
      %v2603 = vadd.f32 %v2544, %v2602
      %2604 = vdwg.mxu0
      %2605 = vmatpush.bf16.msra.mxu0 0
      %2606 = vmatpush.bf16.msra.mxu0 0
      %2607 = vmatpush.bf16.msra.mxu0 0
      %2608 = vmatpush.bf16.msra.mxu0 0
      %2609 = vmatpush.bf16.msra.mxu0 0
      %2610 = vmatpush.bf16.msra.mxu0 0
      %2611 = vmatpush.bf16.msra.mxu0 %v665
      %2612 = vmatpush.bf16.msra.mxu0 %v661
      %2613 = vmatmul.bf16.gmra.mxu0 %v2589
      %v2614 = vpop.f32.mrf.mxu0
      %v2615 = vadd.f32 %v2556, %v2614
      %v2616 = vpop.f32.mrf.mxu0
      %v2617 = vadd.f32 %v2558, %v2616
      %2618 = vdwg.mxu0
      %2619 = vmatpush.bf16.msra.mxu0 0
      %2620 = vmatpush.bf16.msra.mxu0 0
      %2621 = vmatpush.bf16.msra.mxu0 0
      %2622 = vmatpush.bf16.msra.mxu0 0
      %2623 = vmatpush.bf16.msra.mxu0 0
      %2624 = vmatpush.bf16.msra.mxu0 0
      %2625 = vmatpush.bf16.msra.mxu0 %v666
      %2626 = vmatpush.bf16.msra.mxu0 %v662
      %2627 = vmatmul.bf16.gmra.mxu0 %v2589
      %v2628 = vpop.f32.mrf.mxu0
      %v2629 = vadd.f32 %v2570, %v2628
      %v2630 = vpop.f32.mrf.mxu0
      %v2631 = vadd.f32 %v2572, %v2630
      %2632 = vdwg.mxu0
      %2633 = vmatpush.bf16.msra.mxu0 0
      %2634 = vmatpush.bf16.msra.mxu0 0
      %2635 = vmatpush.bf16.msra.mxu0 0
      %2636 = vmatpush.bf16.msra.mxu0 0
      %2637 = vmatpush.bf16.msra.mxu0 0
      %2638 = vmatpush.bf16.msra.mxu0 0
      %2639 = vmatpush.bf16.msra.mxu0 %v667
      %2640 = vmatpush.bf16.msra.mxu0 %v663
      %2641 = vmatmul.bf16.gmra.mxu0 %v2589
      %v2642 = vpop.f32.mrf.mxu0
      %v2643 = vadd.f32 %v2584, %v2642
      %v2644 = vpop.f32.mrf.mxu0
      %v2645 = vadd.f32 %v2586, %v2644
      %2646 = vdwg.mxu0
      %v2647 = vunpack.c.h.b16 %v2495
      %v2648 = vunpack.c.h.b16 %v2496
      %v2649 = vpack.c.b16 %v2648, %v2647
      %v2651 = vsel %vm748, %v2649, 0
      %2653 = vmatpush.bf16.msra.mxu0 0
      %2654 = vmatpush.bf16.msra.mxu0 0
      %2655 = vmatpush.bf16.msra.mxu0 0
      %2656 = vmatpush.bf16.msra.mxu0 0
      %2657 = vmatpush.bf16.msra.mxu0 0
      %2658 = vmatpush.bf16.msra.mxu0 0
      %2659 = vmatpush.bf16.msra.mxu0 0
      %2660 = vmatpush.bf16.msra.mxu0 %v754
      %2661 = vmatmul.bf16.gmra.mxu0 %v2651
      %v2662 = vpop.f32.mrf.mxu0
      %v2663 = vadd.f32 0.0, %v2662
      %v2664 = vpop.f32.mrf.mxu0
      %v2665 = vadd.f32 0.0, %v2664
      %2666 = vdwg.mxu0
      %2667 = vmatpush.bf16.msra.mxu0 0
      %2668 = vmatpush.bf16.msra.mxu0 0
      %2669 = vmatpush.bf16.msra.mxu0 0
      %2670 = vmatpush.bf16.msra.mxu0 0
      %2671 = vmatpush.bf16.msra.mxu0 0
      %2672 = vmatpush.bf16.msra.mxu0 0
      %2673 = vmatpush.bf16.msra.mxu0 0
      %2674 = vmatpush.bf16.msra.mxu0 %v757
      %2675 = vmatmul.bf16.gmra.mxu0 %v2651
      %v2676 = vpop.f32.mrf.mxu0
      %v2677 = vadd.f32 0.0, %v2676
      %v2678 = vpop.f32.mrf.mxu0
      %v2679 = vadd.f32 0.0, %v2678
      %2680 = vdwg.mxu0
      %2681 = vmatpush.bf16.msra.mxu0 0
      %2682 = vmatpush.bf16.msra.mxu0 0
      %2683 = vmatpush.bf16.msra.mxu0 0
      %2684 = vmatpush.bf16.msra.mxu0 0
      %2685 = vmatpush.bf16.msra.mxu0 0
      %2686 = vmatpush.bf16.msra.mxu0 0
      %2687 = vmatpush.bf16.msra.mxu0 0
      %2688 = vmatpush.bf16.msra.mxu0 %v760
      %2689 = vmatmul.bf16.gmra.mxu0 %v2651
      %v2690 = vpop.f32.mrf.mxu0
      %v2691 = vadd.f32 0.0, %v2690
      %v2692 = vpop.f32.mrf.mxu0
      %v2693 = vadd.f32 0.0, %v2692
      %2694 = vdwg.mxu0
      %2695 = vmatpush.bf16.msra.mxu0 0
      %2696 = vmatpush.bf16.msra.mxu0 0
      %2697 = vmatpush.bf16.msra.mxu0 0
      %2698 = vmatpush.bf16.msra.mxu0 0
      %2699 = vmatpush.bf16.msra.mxu0 0
      %2700 = vmatpush.bf16.msra.mxu0 0
      %2701 = vmatpush.bf16.msra.mxu0 0
      %2702 = vmatpush.bf16.msra.mxu0 %v763
      %2703 = vmatmul.bf16.gmra.mxu0 %v2651
      %v2704 = vpop.f32.mrf.mxu0
      %v2705 = vadd.f32 0.0, %v2704
      %v2706 = vpop.f32.mrf.mxu0
      %v2707 = vadd.f32 0.0, %v2706
      %2708 = vdwg.mxu0
      %v2709 = vmul.f32 %v2601, %v2663
      %v2710 = vmul.f32 %v2615, %v2677
      %v2711 = vmul.f32 %v2629, %v2691
      %v2712 = vmul.f32 %v2643, %v2705
      %v2713 = vmul.f32 %v2603, %v2665
      %v2714 = vmul.f32 %v2617, %v2679
      %v2715 = vmul.f32 %v2631, %v2693
      %v2716 = vmul.f32 %v2645, %v2707
      %v2717 = vpack.c.bf16 %v2713, %v2709
      %v2718 = vpack.c.bf16 %v2714, %v2710
      %v2719 = vpack.c.bf16 %v2715, %v2711
      %v2720 = vpack.c.bf16 %v2716, %v2712
      %2721 = vmatpush.bf16.msra.mxu0 %v968
      %2722 = vmatpush.bf16.msra.mxu0 %v967
      %2723 = vmatpush.bf16.msra.mxu0 %v966
      %2724 = vmatpush.bf16.msra.mxu0 %v965
      %2725 = vmatpush.bf16.msra.mxu0 %v964
      %2726 = vmatpush.bf16.msra.mxu0 %v963
      %2727 = vmatpush.bf16.msra.mxu0 %v962
      %2728 = vmatpush.bf16.msra.mxu0 %v961
      %2729 = vmatmul.bf16.gmra.mxu0 %v2717
      %v2730 = vpop.f32.mrf.mxu0
      %v2731 = vadd.f32 0.0, %v2730
      %v2732 = vpop.f32.mrf.mxu0
      %v2733 = vadd.f32 0.0, %v2732
      %2734 = vdwg.mxu0
      %2735 = vmatpush.bf16.msra.mxu0 %v976
      %2736 = vmatpush.bf16.msra.mxu0 %v975
      %2737 = vmatpush.bf16.msra.mxu0 %v974
      %2738 = vmatpush.bf16.msra.mxu0 %v973
      %2739 = vmatpush.bf16.msra.mxu0 %v972
      %2740 = vmatpush.bf16.msra.mxu0 %v971
      %2741 = vmatpush.bf16.msra.mxu0 %v970
      %2742 = vmatpush.bf16.msra.mxu0 %v969
      %2743 = vmatmul.bf16.gmra.mxu0 %v2718
      %v2744 = vpop.f32.mrf.mxu0
      %v2745 = vadd.f32 %v2731, %v2744
      %v2746 = vpop.f32.mrf.mxu0
      %v2747 = vadd.f32 %v2733, %v2746
      %2748 = vdwg.mxu0
      %2749 = vmatpush.bf16.msra.mxu0 %v984
      %2750 = vmatpush.bf16.msra.mxu0 %v983
      %2751 = vmatpush.bf16.msra.mxu0 %v982
      %2752 = vmatpush.bf16.msra.mxu0 %v981
      %2753 = vmatpush.bf16.msra.mxu0 %v980
      %2754 = vmatpush.bf16.msra.mxu0 %v979
      %2755 = vmatpush.bf16.msra.mxu0 %v978
      %2756 = vmatpush.bf16.msra.mxu0 %v977
      %2757 = vmatmul.bf16.gmra.mxu0 %v2719
      %v2758 = vpop.f32.mrf.mxu0
      %v2759 = vadd.f32 %v2745, %v2758
      %v2760 = vpop.f32.mrf.mxu0
      %v2761 = vadd.f32 %v2747, %v2760
      %2762 = vdwg.mxu0
      %2763 = vmatpush.bf16.msra.mxu0 %v992
      %2764 = vmatpush.bf16.msra.mxu0 %v991
      %2765 = vmatpush.bf16.msra.mxu0 %v990
      %2766 = vmatpush.bf16.msra.mxu0 %v989
      %2767 = vmatpush.bf16.msra.mxu0 %v988
      %2768 = vmatpush.bf16.msra.mxu0 %v987
      %2769 = vmatpush.bf16.msra.mxu0 %v986
      %2770 = vmatpush.bf16.msra.mxu0 %v985
      %2771 = vmatmul.bf16.gmra.mxu0 %v2720
      %v2772 = vpop.f32.mrf.mxu0
      %v2773 = vadd.f32 %v2759, %v2772
      %v2774 = vpop.f32.mrf.mxu0
      %v2775 = vadd.f32 %v2761, %v2774
      %2776 = vdwg.mxu0
      %v2777 = vadd.f32 %v2497, %v2773
      %v2778 = vadd.f32 %v2498, %v2775
      %v2779 = vxor.u32 %v2777, 2147483648
      %v2780 = vxor.u32 %v2778, 2147483648
      %v2781 = vmul.f32 %v2779, 1.442695
      %v2782 = vpow.pop %v2781
      %v2783 = vmul.f32 %v2780, 1.442695
      %v2784 = vpow.pop %v2783
      %v2785 = vadd.f32 %v2782, 1.0
      %v2786 = vadd.f32 %v2784, 1.0
      %v2787 = vrcp.pop %v2785
      %v2788 = vmul.f32 %v2785, %v2787
      %v2789 = vsub.f32 1.0, %v2788
      %v2790 = vmul.f32 %v2787, %v2789
      %v2791 = vadd.f32 %v2787, %v2790
      %vm2792 = vweird.f32 %v2785
      %vm2793 = vweird.f32 %v2787
      %vm2794 = vmor %vm2792, %vm2793
      %v2795 = vsel %vm2794, %v2787, %v2791
      %v2796 = vand.u32 2147483647, %v2785
      %vm2797 = vcmp.eq.f32.partialorder %v2796, 8.507059e+37
      %v2798 = vand.u32 %v2785, 2147483648
      %v2799 = vor.u32 1.1754944e-38, %v2798
      %v2800 = vsel %vm2797, %v2799, %v2795
      %v2801 = vmul.f32 1.0, %v2800
      %v2802 = vrcp.pop %v2786
      %v2803 = vmul.f32 %v2786, %v2802
      %v2804 = vsub.f32 1.0, %v2803
      %v2805 = vmul.f32 %v2802, %v2804
      %v2806 = vadd.f32 %v2802, %v2805
      %vm2807 = vweird.f32 %v2786
      %vm2808 = vweird.f32 %v2802
      %vm2809 = vmor %vm2807, %vm2808
      %v2810 = vsel %vm2809, %v2802, %v2806
      %v2811 = vand.u32 2147483647, %v2786
      %vm2812 = vcmp.eq.f32.partialorder %v2811, 8.507059e+37
      %v2813 = vand.u32 %v2786, 2147483648
      %v2814 = vor.u32 1.1754944e-38, %v2813
      %v2815 = vsel %vm2812, %v2814, %v2810
      %v2816 = vmul.f32 1.0, %v2815
      %v2817 = vmul.f32 %v2801, %v2486
      %v2818 = vmul.f32 %v2816, %v2488
      %v2819 = vpack.c.bf16 %v2818, %v2817
      %2820 = vrot.lane.b32.xlu0 %v2504, 16
      %v2821 = vpop.permute.xlu0 %2820
      %v2823 = vsel %vm517, %v2821, 0
      %2825 = vmatpush.bf16.msra.mxu0 0
      %2826 = vmatpush.bf16.msra.mxu0 0
      %2827 = vmatpush.bf16.msra.mxu0 0
      %2828 = vmatpush.bf16.msra.mxu0 0
      %2829 = vmatpush.bf16.msra.mxu0 0
      %2830 = vmatpush.bf16.msra.mxu0 0
      %2831 = vmatpush.bf16.msra.mxu0 0
      %2832 = vmatpush.bf16.msra.mxu0 %v2819
      %2833 = vmatmul.bf16.gmra.mxu0 %v2823
      %v2834 = vpop.f32.mrf.mxu0
      %v2835 = vadd.f32 0.0, %v2834
      %v2836 = vpop.f32.mrf.mxu0
      %v2837 = vadd.f32 0.0, %v2836
      %2838 = vdwg.mxu0
      %v2839 = vpack.c.bf16 %v2837, %v2835
      %v2841 = vsel %vm576, %v2839, 0
      %2843 = vmatpush.bf16.msra.mxu0 0
      %2844 = vmatpush.bf16.msra.mxu0 0
      %2845 = vmatpush.bf16.msra.mxu0 0
      %2846 = vmatpush.bf16.msra.mxu0 0
      %2847 = vmatpush.bf16.msra.mxu0 0
      %2848 = vmatpush.bf16.msra.mxu0 0
      %2849 = vmatpush.bf16.msra.mxu0 %v1158
      %2850 = vmatpush.bf16.msra.mxu0 %v1156
      %2851 = vmatmul.bf16.gmra.mxu0 %v2841
      %v2852 = vpop.f32.mrf.mxu0
      %v2853 = vadd.f32 0.0, %v2852
      %v2854 = vpop.f32.mrf.mxu0
      %v2855 = vadd.f32 0.0, %v2854
      %2856 = vdwg.mxu0
      %2857 = vmatpush.bf16.msra.mxu0 0
      %2858 = vmatpush.bf16.msra.mxu0 0
      %2859 = vmatpush.bf16.msra.mxu0 0
      %2860 = vmatpush.bf16.msra.mxu0 0
      %2861 = vmatpush.bf16.msra.mxu0 0
      %2862 = vmatpush.bf16.msra.mxu0 0
      %2863 = vmatpush.bf16.msra.mxu0 %v1159
      %2864 = vmatpush.bf16.msra.mxu0 %v1157
      %2865 = vmatmul.bf16.gmra.mxu0 %v2841
      %v2866 = vpop.f32.mrf.mxu0
      %v2867 = vadd.f32 0.0, %v2866
      %v2868 = vpop.f32.mrf.mxu0
      %v2869 = vadd.f32 0.0, %v2868
      %2870 = vdwg.mxu0
      %v2872 = vsel %vm576, %v2819, 0
      %2874 = vmatpush.bf16.msra.mxu0 0
      %2875 = vmatpush.bf16.msra.mxu0 0
      %2876 = vmatpush.bf16.msra.mxu0 0
      %2877 = vmatpush.bf16.msra.mxu0 0
      %2878 = vmatpush.bf16.msra.mxu0 0
      %2879 = vmatpush.bf16.msra.mxu0 0
      %2880 = vmatpush.bf16.msra.mxu0 %v1209
      %2881 = vmatpush.bf16.msra.mxu0 %v1207
      %2882 = vmatmul.bf16.gmra.mxu0 %v2872
      %v2883 = vpop.f32.mrf.mxu0
      %v2884 = vadd.f32 %v2853, %v2883
      %v2885 = vpop.f32.mrf.mxu0
      %v2886 = vadd.f32 %v2855, %v2885
      %2887 = vdwg.mxu0
      %2888 = vmatpush.bf16.msra.mxu0 0
      %2889 = vmatpush.bf16.msra.mxu0 0
      %2890 = vmatpush.bf16.msra.mxu0 0
      %2891 = vmatpush.bf16.msra.mxu0 0
      %2892 = vmatpush.bf16.msra.mxu0 0
      %2893 = vmatpush.bf16.msra.mxu0 0
      %2894 = vmatpush.bf16.msra.mxu0 %v1210
      %2895 = vmatpush.bf16.msra.mxu0 %v1208
      %2896 = vmatmul.bf16.gmra.mxu0 %v2872
      %v2897 = vpop.f32.mrf.mxu0
      %v2898 = vadd.f32 %v2867, %v2897
      %v2899 = vpop.f32.mrf.mxu0
      %v2900 = vadd.f32 %v2869, %v2899
      %2901 = vdwg.mxu0
      %2902 = vrot.lane.b32.xlu0 %v2649, 120
      %v2903 = vpop.permute.xlu0 %2902
      %v2905 = vsel %vm748, %v2903, 0
      %2907 = vmatpush.bf16.msra.mxu0 0
      %2908 = vmatpush.bf16.msra.mxu0 0
      %2909 = vmatpush.bf16.msra.mxu0 0
      %2910 = vmatpush.bf16.msra.mxu0 0
      %2911 = vmatpush.bf16.msra.mxu0 0
      %2912 = vmatpush.bf16.msra.mxu0 0
      %2913 = vmatpush.bf16.msra.mxu0 0
      %2914 = vmatpush.bf16.msra.mxu0 %v1257
      %2915 = vmatmul.bf16.gmra.mxu0 %v2905
      %v2916 = vpop.f32.mrf.mxu0
      %v2917 = vadd.f32 0.0, %v2916
      %v2918 = vpop.f32.mrf.mxu0
      %v2919 = vadd.f32 0.0, %v2918
      %2920 = vdwg.mxu0
      %2921 = vmatpush.bf16.msra.mxu0 0
      %2922 = vmatpush.bf16.msra.mxu0 0
      %2923 = vmatpush.bf16.msra.mxu0 0
      %2924 = vmatpush.bf16.msra.mxu0 0
      %2925 = vmatpush.bf16.msra.mxu0 0
      %2926 = vmatpush.bf16.msra.mxu0 0
      %2927 = vmatpush.bf16.msra.mxu0 0
      %2928 = vmatpush.bf16.msra.mxu0 %v1260
      %2929 = vmatmul.bf16.gmra.mxu0 %v2905
      %v2930 = vpop.f32.mrf.mxu0
      %v2931 = vadd.f32 0.0, %v2930
      %v2932 = vpop.f32.mrf.mxu0
      %v2933 = vadd.f32 0.0, %v2932
      %2934 = vdwg.mxu0
      %v2935 = vmul.f32 %v2884, %v2917
      %v2936 = vmul.f32 %v2898, %v2931
      %v2937 = vmul.f32 %v2886, %v2919
      %v2938 = vmul.f32 %v2900, %v2933
      %v2939 = vpack.c.bf16 %v2937, %v2935
      %v2940 = vpack.c.bf16 %v2938, %v2936
      %2941 = vmatpush.bf16.msra.mxu0 %v1367
      %2942 = vmatpush.bf16.msra.mxu0 %v1366
      %2943 = vmatpush.bf16.msra.mxu0 %v1365
      %2944 = vmatpush.bf16.msra.mxu0 %v1364
      %2945 = vmatpush.bf16.msra.mxu0 %v1363
      %2946 = vmatpush.bf16.msra.mxu0 %v1362
      %2947 = vmatpush.bf16.msra.mxu0 %v1361
      %2948 = vmatpush.bf16.msra.mxu0 %v1360
      %2949 = vmatmul.bf16.gmra.mxu0 %v2939
      %v2950 = vpop.f32.mrf.mxu0
      %v2951 = vadd.f32 0.0, %v2950
      %v2952 = vpop.f32.mrf.mxu0
      %v2953 = vadd.f32 0.0, %v2952
      %2954 = vdwg.mxu0
      %2955 = vmatpush.bf16.msra.mxu0 %v1375
      %2956 = vmatpush.bf16.msra.mxu0 %v1374
      %2957 = vmatpush.bf16.msra.mxu0 %v1373
      %2958 = vmatpush.bf16.msra.mxu0 %v1372
      %2959 = vmatpush.bf16.msra.mxu0 %v1371
      %2960 = vmatpush.bf16.msra.mxu0 %v1370
      %2961 = vmatpush.bf16.msra.mxu0 %v1369
      %2962 = vmatpush.bf16.msra.mxu0 %v1368
      %2963 = vmatmul.bf16.gmra.mxu0 %v2940
      %v2964 = vpop.f32.mrf.mxu0
      %v2965 = vadd.f32 %v2951, %v2964
      %v2966 = vpop.f32.mrf.mxu0
      %v2967 = vadd.f32 %v2953, %v2966
      %2968 = vdwg.mxu0
      %2971 = vrot.lane.b32.xlu0 %v2965, 64
      %v2972 = vpop.permute.xlu0 %2971
      %2973 = vrot.lane.b32.xlu0 %v2967, 64
      %v2974 = vpop.permute.xlu0 %2973
      %v2977 = vadd.f32 %v2497, %v2972
      %v2978 = vadd.f32 %v2498, %v2974
      %v2979 = vtanh.pop %v2977
      %v2980 = vtanh.pop %v2978
      %v2981 = vmul.f32 %v2801, %v2481
      %v2982 = vmul.f32 %v2816, %v2482
      %v2983 = vsub.f32 1.0, %v2801
      %v2984 = vsub.f32 1.0, %v2816
      %2987 = vrot.lane.b32.xlu0 %v2979, 96
      %v2988 = vpop.permute.xlu0 %2987
      %2989 = vrot.lane.b32.xlu0 %v2980, 96
      %v2990 = vpop.permute.xlu0 %2989
      %v2993 = vmul.f32 %v2983, %v2988
      %v2994 = vmul.f32 %v2984, %v2990
      %v2995 = vadd.f32 %v2981, %v2993
      %v2996 = vadd.f32 %v2982, %v2994
      %2999 = vrot.lane.b32.xlu0 %v2995, 96
      %v3000 = vpop.permute.xlu0 %2999
      %3001 = vrot.lane.b32.xlu0 %v2996, 96
      %v3002 = vpop.permute.xlu0 %3001
      %s3005 = scalar_lea.vmem %s368, 48
      %3006 = vst.msk [vmem:[%s3005] sm:$0xff] %vm576, %v3000
      %3007 = vst.msk [vmem:[%s3005 + $0x8] sm:$0xff] %vm576, %v3002
      %s3008 = scalar_lea.vmem %s357, 64
      %v3009 = vld [vmem:[%s3008] sm:$0xff]
      %v3010 = vld [vmem:[%s3008 + $0x8] sm:$0xff]
      %v3011 = vunpack.c.l.bf16 %v3009
      %v3012 = vunpack.c.l.bf16 %v3010
      %v3013 = vpack.c.bf16 %v2996, %v2995
      %v3016 = vunpack.c.l.b16 %v3009
      %v3017 = vunpack.c.l.b16 %v3010
      %v3018 = vpack.c.b16 %v3017, %v3016
      %3019 = vrot.lane.b32.xlu0 %v3018, 32
      %v3020 = vpop.permute.xlu0 %3019
      %3022 = vrot.lane.b32.xlu0 %v3013, 96
      %v3023 = vpop.permute.xlu0 %3022
      %v3026 = vsel %vm517, %v3020, 0
      %3028 = vmatpush.bf16.msra.mxu0 0
      %3029 = vmatpush.bf16.msra.mxu0 0
      %3030 = vmatpush.bf16.msra.mxu0 0
      %3031 = vmatpush.bf16.msra.mxu0 0
      %3032 = vmatpush.bf16.msra.mxu0 0
      %3033 = vmatpush.bf16.msra.mxu0 0
      %3034 = vmatpush.bf16.msra.mxu0 0
      %3035 = vmatpush.bf16.msra.mxu0 %v3023
      %3036 = vmatmul.bf16.gmra.mxu0 %v3026
      %v3037 = vpop.f32.mrf.mxu0
      %v3038 = vadd.f32 0.0, %v3037
      %v3039 = vpop.f32.mrf.mxu0
      %v3040 = vadd.f32 0.0, %v3039
      %3041 = vdwg.mxu0
      %v3042 = vpack.c.bf16 %v3040, %v3038
      %v3044 = vsel %vm576, %v3042, 0
      %3046 = vmatpush.bf16.msra.mxu0 0
      %3047 = vmatpush.bf16.msra.mxu0 0
      %3048 = vmatpush.bf16.msra.mxu0 0
      %3049 = vmatpush.bf16.msra.mxu0 0
      %3050 = vmatpush.bf16.msra.mxu0 0
      %3051 = vmatpush.bf16.msra.mxu0 0
      %3052 = vmatpush.bf16.msra.mxu0 %v564
      %3053 = vmatpush.bf16.msra.mxu0 %v560
      %3054 = vmatmul.bf16.gmra.mxu0 %v3044
      %v3055 = vpop.f32.mrf.mxu0
      %v3056 = vadd.f32 0.0, %v3055
      %v3057 = vpop.f32.mrf.mxu0
      %v3058 = vadd.f32 0.0, %v3057
      %3059 = vdwg.mxu0
      %3060 = vmatpush.bf16.msra.mxu0 0
      %3061 = vmatpush.bf16.msra.mxu0 0
      %3062 = vmatpush.bf16.msra.mxu0 0
      %3063 = vmatpush.bf16.msra.mxu0 0
      %3064 = vmatpush.bf16.msra.mxu0 0
      %3065 = vmatpush.bf16.msra.mxu0 0
      %3066 = vmatpush.bf16.msra.mxu0 %v565
      %3067 = vmatpush.bf16.msra.mxu0 %v561
      %3068 = vmatmul.bf16.gmra.mxu0 %v3044
      %v3069 = vpop.f32.mrf.mxu0
      %v3070 = vadd.f32 0.0, %v3069
      %v3071 = vpop.f32.mrf.mxu0
      %v3072 = vadd.f32 0.0, %v3071
      %3073 = vdwg.mxu0
      %3074 = vmatpush.bf16.msra.mxu0 0
      %3075 = vmatpush.bf16.msra.mxu0 0
      %3076 = vmatpush.bf16.msra.mxu0 0
      %3077 = vmatpush.bf16.msra.mxu0 0
      %3078 = vmatpush.bf16.msra.mxu0 0
      %3079 = vmatpush.bf16.msra.mxu0 0
      %3080 = vmatpush.bf16.msra.mxu0 %v566
      %3081 = vmatpush.bf16.msra.mxu0 %v562
      %3082 = vmatmul.bf16.gmra.mxu0 %v3044
      %v3083 = vpop.f32.mrf.mxu0
      %v3084 = vadd.f32 0.0, %v3083
      %v3085 = vpop.f32.mrf.mxu0
      %v3086 = vadd.f32 0.0, %v3085
      %3087 = vdwg.mxu0
      %3088 = vmatpush.bf16.msra.mxu0 0
      %3089 = vmatpush.bf16.msra.mxu0 0
      %3090 = vmatpush.bf16.msra.mxu0 0
      %3091 = vmatpush.bf16.msra.mxu0 0
      %3092 = vmatpush.bf16.msra.mxu0 0
      %3093 = vmatpush.bf16.msra.mxu0 0
      %3094 = vmatpush.bf16.msra.mxu0 %v567
      %3095 = vmatpush.bf16.msra.mxu0 %v563
      %3096 = vmatmul.bf16.gmra.mxu0 %v3044
      %v3097 = vpop.f32.mrf.mxu0
      %v3098 = vadd.f32 0.0, %v3097
      %v3099 = vpop.f32.mrf.mxu0
      %v3100 = vadd.f32 0.0, %v3099
      %3101 = vdwg.mxu0
      %v3103 = vsel %vm576, %v3023, 0
      %3105 = vmatpush.bf16.msra.mxu0 0
      %3106 = vmatpush.bf16.msra.mxu0 0
      %3107 = vmatpush.bf16.msra.mxu0 0
      %3108 = vmatpush.bf16.msra.mxu0 0
      %3109 = vmatpush.bf16.msra.mxu0 0
      %3110 = vmatpush.bf16.msra.mxu0 0
      %3111 = vmatpush.bf16.msra.mxu0 %v664
      %3112 = vmatpush.bf16.msra.mxu0 %v660
      %3113 = vmatmul.bf16.gmra.mxu0 %v3103
      %v3114 = vpop.f32.mrf.mxu0
      %v3115 = vadd.f32 %v3056, %v3114
      %v3116 = vpop.f32.mrf.mxu0
      %v3117 = vadd.f32 %v3058, %v3116
      %3118 = vdwg.mxu0
      %3119 = vmatpush.bf16.msra.mxu0 0
      %3120 = vmatpush.bf16.msra.mxu0 0
      %3121 = vmatpush.bf16.msra.mxu0 0
      %3122 = vmatpush.bf16.msra.mxu0 0
      %3123 = vmatpush.bf16.msra.mxu0 0
      %3124 = vmatpush.bf16.msra.mxu0 0
      %3125 = vmatpush.bf16.msra.mxu0 %v665
      %3126 = vmatpush.bf16.msra.mxu0 %v661
      %3127 = vmatmul.bf16.gmra.mxu0 %v3103
      %v3128 = vpop.f32.mrf.mxu0
      %v3129 = vadd.f32 %v3070, %v3128
      %v3130 = vpop.f32.mrf.mxu0
      %v3131 = vadd.f32 %v3072, %v3130
      %3132 = vdwg.mxu0
      %3133 = vmatpush.bf16.msra.mxu0 0
      %3134 = vmatpush.bf16.msra.mxu0 0
      %3135 = vmatpush.bf16.msra.mxu0 0
      %3136 = vmatpush.bf16.msra.mxu0 0
      %3137 = vmatpush.bf16.msra.mxu0 0
      %3138 = vmatpush.bf16.msra.mxu0 0
      %3139 = vmatpush.bf16.msra.mxu0 %v666
      %3140 = vmatpush.bf16.msra.mxu0 %v662
      %3141 = vmatmul.bf16.gmra.mxu0 %v3103
      %v3142 = vpop.f32.mrf.mxu0
      %v3143 = vadd.f32 %v3084, %v3142
      %v3144 = vpop.f32.mrf.mxu0
      %v3145 = vadd.f32 %v3086, %v3144
      %3146 = vdwg.mxu0
      %3147 = vmatpush.bf16.msra.mxu0 0
      %3148 = vmatpush.bf16.msra.mxu0 0
      %3149 = vmatpush.bf16.msra.mxu0 0
      %3150 = vmatpush.bf16.msra.mxu0 0
      %3151 = vmatpush.bf16.msra.mxu0 0
      %3152 = vmatpush.bf16.msra.mxu0 0
      %3153 = vmatpush.bf16.msra.mxu0 %v667
      %3154 = vmatpush.bf16.msra.mxu0 %v663
      %3155 = vmatmul.bf16.gmra.mxu0 %v3103
      %v3156 = vpop.f32.mrf.mxu0
      %v3157 = vadd.f32 %v3098, %v3156
      %v3158 = vpop.f32.mrf.mxu0
      %v3159 = vadd.f32 %v3100, %v3158
      %3160 = vdwg.mxu0
      %v3161 = vunpack.c.h.b16 %v3009
      %v3162 = vunpack.c.h.b16 %v3010
      %v3163 = vpack.c.b16 %v3162, %v3161
      %v3165 = vsel %vm748, %v3163, 0
      %3167 = vmatpush.bf16.msra.mxu0 0
      %3168 = vmatpush.bf16.msra.mxu0 0
      %3169 = vmatpush.bf16.msra.mxu0 0
      %3170 = vmatpush.bf16.msra.mxu0 0
      %3171 = vmatpush.bf16.msra.mxu0 0
      %3172 = vmatpush.bf16.msra.mxu0 0
      %3173 = vmatpush.bf16.msra.mxu0 0
      %3174 = vmatpush.bf16.msra.mxu0 %v754
      %3175 = vmatmul.bf16.gmra.mxu0 %v3165
      %v3176 = vpop.f32.mrf.mxu0
      %v3177 = vadd.f32 0.0, %v3176
      %v3178 = vpop.f32.mrf.mxu0
      %v3179 = vadd.f32 0.0, %v3178
      %3180 = vdwg.mxu0
      %3181 = vmatpush.bf16.msra.mxu0 0
      %3182 = vmatpush.bf16.msra.mxu0 0
      %3183 = vmatpush.bf16.msra.mxu0 0
      %3184 = vmatpush.bf16.msra.mxu0 0
      %3185 = vmatpush.bf16.msra.mxu0 0
      %3186 = vmatpush.bf16.msra.mxu0 0
      %3187 = vmatpush.bf16.msra.mxu0 0
      %3188 = vmatpush.bf16.msra.mxu0 %v757
      %3189 = vmatmul.bf16.gmra.mxu0 %v3165
      %v3190 = vpop.f32.mrf.mxu0
      %v3191 = vadd.f32 0.0, %v3190
      %v3192 = vpop.f32.mrf.mxu0
      %v3193 = vadd.f32 0.0, %v3192
      %3194 = vdwg.mxu0
      %3195 = vmatpush.bf16.msra.mxu0 0
      %3196 = vmatpush.bf16.msra.mxu0 0
      %3197 = vmatpush.bf16.msra.mxu0 0
      %3198 = vmatpush.bf16.msra.mxu0 0
      %3199 = vmatpush.bf16.msra.mxu0 0
      %3200 = vmatpush.bf16.msra.mxu0 0
      %3201 = vmatpush.bf16.msra.mxu0 0
      %3202 = vmatpush.bf16.msra.mxu0 %v760
      %3203 = vmatmul.bf16.gmra.mxu0 %v3165
      %v3204 = vpop.f32.mrf.mxu0
      %v3205 = vadd.f32 0.0, %v3204
      %v3206 = vpop.f32.mrf.mxu0
      %v3207 = vadd.f32 0.0, %v3206
      %3208 = vdwg.mxu0
      %3209 = vmatpush.bf16.msra.mxu0 0
      %3210 = vmatpush.bf16.msra.mxu0 0
      %3211 = vmatpush.bf16.msra.mxu0 0
      %3212 = vmatpush.bf16.msra.mxu0 0
      %3213 = vmatpush.bf16.msra.mxu0 0
      %3214 = vmatpush.bf16.msra.mxu0 0
      %3215 = vmatpush.bf16.msra.mxu0 0
      %3216 = vmatpush.bf16.msra.mxu0 %v763
      %3217 = vmatmul.bf16.gmra.mxu0 %v3165
      %v3218 = vpop.f32.mrf.mxu0
      %v3219 = vadd.f32 0.0, %v3218
      %v3220 = vpop.f32.mrf.mxu0
      %v3221 = vadd.f32 0.0, %v3220
      %3222 = vdwg.mxu0
      %v3223 = vmul.f32 %v3115, %v3177
      %v3224 = vmul.f32 %v3129, %v3191
      %v3225 = vmul.f32 %v3143, %v3205
      %v3226 = vmul.f32 %v3157, %v3219
      %v3227 = vmul.f32 %v3117, %v3179
      %v3228 = vmul.f32 %v3131, %v3193
      %v3229 = vmul.f32 %v3145, %v3207
      %v3230 = vmul.f32 %v3159, %v3221
      %v3231 = vpack.c.bf16 %v3227, %v3223
      %v3232 = vpack.c.bf16 %v3228, %v3224
      %v3233 = vpack.c.bf16 %v3229, %v3225
      %v3234 = vpack.c.bf16 %v3230, %v3226
      %3235 = vmatpush.bf16.msra.mxu0 %v968
      %3236 = vmatpush.bf16.msra.mxu0 %v967
      %3237 = vmatpush.bf16.msra.mxu0 %v966
      %3238 = vmatpush.bf16.msra.mxu0 %v965
      %3239 = vmatpush.bf16.msra.mxu0 %v964
      %3240 = vmatpush.bf16.msra.mxu0 %v963
      %3241 = vmatpush.bf16.msra.mxu0 %v962
      %3242 = vmatpush.bf16.msra.mxu0 %v961
      %3243 = vmatmul.bf16.gmra.mxu0 %v3231
      %v3244 = vpop.f32.mrf.mxu0
      %v3245 = vadd.f32 0.0, %v3244
      %v3246 = vpop.f32.mrf.mxu0
      %v3247 = vadd.f32 0.0, %v3246
      %3248 = vdwg.mxu0
      %3249 = vmatpush.bf16.msra.mxu0 %v976
      %3250 = vmatpush.bf16.msra.mxu0 %v975
      %3251 = vmatpush.bf16.msra.mxu0 %v974
      %3252 = vmatpush.bf16.msra.mxu0 %v973
      %3253 = vmatpush.bf16.msra.mxu0 %v972
      %3254 = vmatpush.bf16.msra.mxu0 %v971
      %3255 = vmatpush.bf16.msra.mxu0 %v970
      %3256 = vmatpush.bf16.msra.mxu0 %v969
      %3257 = vmatmul.bf16.gmra.mxu0 %v3232
      %v3258 = vpop.f32.mrf.mxu0
      %v3259 = vadd.f32 %v3245, %v3258
      %v3260 = vpop.f32.mrf.mxu0
      %v3261 = vadd.f32 %v3247, %v3260
      %3262 = vdwg.mxu0
      %3263 = vmatpush.bf16.msra.mxu0 %v984
      %3264 = vmatpush.bf16.msra.mxu0 %v983
      %3265 = vmatpush.bf16.msra.mxu0 %v982
      %3266 = vmatpush.bf16.msra.mxu0 %v981
      %3267 = vmatpush.bf16.msra.mxu0 %v980
      %3268 = vmatpush.bf16.msra.mxu0 %v979
      %3269 = vmatpush.bf16.msra.mxu0 %v978
      %3270 = vmatpush.bf16.msra.mxu0 %v977
      %3271 = vmatmul.bf16.gmra.mxu0 %v3233
      %v3272 = vpop.f32.mrf.mxu0
      %v3273 = vadd.f32 %v3259, %v3272
      %v3274 = vpop.f32.mrf.mxu0
      %v3275 = vadd.f32 %v3261, %v3274
      %3276 = vdwg.mxu0
      %3277 = vmatpush.bf16.msra.mxu0 %v992
      %3278 = vmatpush.bf16.msra.mxu0 %v991
      %3279 = vmatpush.bf16.msra.mxu0 %v990
      %3280 = vmatpush.bf16.msra.mxu0 %v989
      %3281 = vmatpush.bf16.msra.mxu0 %v988
      %3282 = vmatpush.bf16.msra.mxu0 %v987
      %3283 = vmatpush.bf16.msra.mxu0 %v986
      %3284 = vmatpush.bf16.msra.mxu0 %v985
      %3285 = vmatmul.bf16.gmra.mxu0 %v3234
      %v3286 = vpop.f32.mrf.mxu0
      %v3287 = vadd.f32 %v3273, %v3286
      %v3288 = vpop.f32.mrf.mxu0
      %v3289 = vadd.f32 %v3275, %v3288
      %3290 = vdwg.mxu0
      %v3291 = vadd.f32 %v3011, %v3287
      %v3292 = vadd.f32 %v3012, %v3289
      %v3293 = vxor.u32 %v3291, 2147483648
      %v3294 = vxor.u32 %v3292, 2147483648
      %v3295 = vmul.f32 %v3293, 1.442695
      %v3296 = vpow.pop %v3295
      %v3297 = vmul.f32 %v3294, 1.442695
      %v3298 = vpow.pop %v3297
      %v3299 = vadd.f32 %v3296, 1.0
      %v3300 = vadd.f32 %v3298, 1.0
      %v3301 = vrcp.pop %v3299
      %v3302 = vmul.f32 %v3299, %v3301
      %v3303 = vsub.f32 1.0, %v3302
      %v3304 = vmul.f32 %v3301, %v3303
      %v3305 = vadd.f32 %v3301, %v3304
      %vm3306 = vweird.f32 %v3299
      %vm3307 = vweird.f32 %v3301
      %vm3308 = vmor %vm3306, %vm3307
      %v3309 = vsel %vm3308, %v3301, %v3305
      %v3310 = vand.u32 2147483647, %v3299
      %vm3311 = vcmp.eq.f32.partialorder %v3310, 8.507059e+37
      %v3312 = vand.u32 %v3299, 2147483648
      %v3313 = vor.u32 1.1754944e-38, %v3312
      %v3314 = vsel %vm3311, %v3313, %v3309
      %v3315 = vmul.f32 1.0, %v3314
      %v3316 = vrcp.pop %v3300
      %v3317 = vmul.f32 %v3300, %v3316
      %v3318 = vsub.f32 1.0, %v3317
      %v3319 = vmul.f32 %v3316, %v3318
      %v3320 = vadd.f32 %v3316, %v3319
      %vm3321 = vweird.f32 %v3300
      %vm3322 = vweird.f32 %v3316
      %vm3323 = vmor %vm3321, %vm3322
      %v3324 = vsel %vm3323, %v3316, %v3320
      %v3325 = vand.u32 2147483647, %v3300
      %vm3326 = vcmp.eq.f32.partialorder %v3325, 8.507059e+37
      %v3327 = vand.u32 %v3300, 2147483648
      %v3328 = vor.u32 1.1754944e-38, %v3327
      %v3329 = vsel %vm3326, %v3328, %v3324
      %v3330 = vmul.f32 1.0, %v3329
      %v3331 = vmul.f32 %v3315, %v3000
      %v3332 = vmul.f32 %v3330, %v3002
      %v3333 = vpack.c.bf16 %v3332, %v3331
      %3334 = vrot.lane.b32.xlu0 %v3018, 16
      %v3335 = vpop.permute.xlu0 %3334
      %v3337 = vsel %vm517, %v3335, 0
      %3339 = vmatpush.bf16.msra.mxu0 0
      %3340 = vmatpush.bf16.msra.mxu0 0
      %3341 = vmatpush.bf16.msra.mxu0 0
      %3342 = vmatpush.bf16.msra.mxu0 0
      %3343 = vmatpush.bf16.msra.mxu0 0
      %3344 = vmatpush.bf16.msra.mxu0 0
      %3345 = vmatpush.bf16.msra.mxu0 0
      %3346 = vmatpush.bf16.msra.mxu0 %v3333
      %3347 = vmatmul.bf16.gmra.mxu0 %v3337
      %v3348 = vpop.f32.mrf.mxu0
      %v3349 = vadd.f32 0.0, %v3348
      %v3350 = vpop.f32.mrf.mxu0
      %v3351 = vadd.f32 0.0, %v3350
      %3352 = vdwg.mxu0
      %v3353 = vpack.c.bf16 %v3351, %v3349
      %v3355 = vsel %vm576, %v3353, 0
      %3357 = vmatpush.bf16.msra.mxu0 0
      %3358 = vmatpush.bf16.msra.mxu0 0
      %3359 = vmatpush.bf16.msra.mxu0 0
      %3360 = vmatpush.bf16.msra.mxu0 0
      %3361 = vmatpush.bf16.msra.mxu0 0
      %3362 = vmatpush.bf16.msra.mxu0 0
      %3363 = vmatpush.bf16.msra.mxu0 %v1158
      %3364 = vmatpush.bf16.msra.mxu0 %v1156
      %3365 = vmatmul.bf16.gmra.mxu0 %v3355
      %v3366 = vpop.f32.mrf.mxu0
      %v3367 = vadd.f32 0.0, %v3366
      %v3368 = vpop.f32.mrf.mxu0
      %v3369 = vadd.f32 0.0, %v3368
      %3370 = vdwg.mxu0
      %3371 = vmatpush.bf16.msra.mxu0 0
      %3372 = vmatpush.bf16.msra.mxu0 0
      %3373 = vmatpush.bf16.msra.mxu0 0
      %3374 = vmatpush.bf16.msra.mxu0 0
      %3375 = vmatpush.bf16.msra.mxu0 0
      %3376 = vmatpush.bf16.msra.mxu0 0
      %3377 = vmatpush.bf16.msra.mxu0 %v1159
      %3378 = vmatpush.bf16.msra.mxu0 %v1157
      %3379 = vmatmul.bf16.gmra.mxu0 %v3355
      %v3380 = vpop.f32.mrf.mxu0
      %v3381 = vadd.f32 0.0, %v3380
      %v3382 = vpop.f32.mrf.mxu0
      %v3383 = vadd.f32 0.0, %v3382
      %3384 = vdwg.mxu0
      %v3386 = vsel %vm576, %v3333, 0
      %3388 = vmatpush.bf16.msra.mxu0 0
      %3389 = vmatpush.bf16.msra.mxu0 0
      %3390 = vmatpush.bf16.msra.mxu0 0
      %3391 = vmatpush.bf16.msra.mxu0 0
      %3392 = vmatpush.bf16.msra.mxu0 0
      %3393 = vmatpush.bf16.msra.mxu0 0
      %3394 = vmatpush.bf16.msra.mxu0 %v1209
      %3395 = vmatpush.bf16.msra.mxu0 %v1207
      %3396 = vmatmul.bf16.gmra.mxu0 %v3386
      %v3397 = vpop.f32.mrf.mxu0
      %v3398 = vadd.f32 %v3367, %v3397
      %v3399 = vpop.f32.mrf.mxu0
      %v3400 = vadd.f32 %v3369, %v3399
      %3401 = vdwg.mxu0
      %3402 = vmatpush.bf16.msra.mxu0 0
      %3403 = vmatpush.bf16.msra.mxu0 0
      %3404 = vmatpush.bf16.msra.mxu0 0
      %3405 = vmatpush.bf16.msra.mxu0 0
      %3406 = vmatpush.bf16.msra.mxu0 0
      %3407 = vmatpush.bf16.msra.mxu0 0
      %3408 = vmatpush.bf16.msra.mxu0 %v1210
      %3409 = vmatpush.bf16.msra.mxu0 %v1208
      %3410 = vmatmul.bf16.gmra.mxu0 %v3386
      %v3411 = vpop.f32.mrf.mxu0
      %v3412 = vadd.f32 %v3381, %v3411
      %v3413 = vpop.f32.mrf.mxu0
      %v3414 = vadd.f32 %v3383, %v3413
      %3415 = vdwg.mxu0
      %3416 = vrot.lane.b32.xlu0 %v3163, 120
      %v3417 = vpop.permute.xlu0 %3416
      %v3419 = vsel %vm748, %v3417, 0
      %3421 = vmatpush.bf16.msra.mxu0 0
      %3422 = vmatpush.bf16.msra.mxu0 0
      %3423 = vmatpush.bf16.msra.mxu0 0
      %3424 = vmatpush.bf16.msra.mxu0 0
      %3425 = vmatpush.bf16.msra.mxu0 0
      %3426 = vmatpush.bf16.msra.mxu0 0
      %3427 = vmatpush.bf16.msra.mxu0 0
      %3428 = vmatpush.bf16.msra.mxu0 %v1257
      %3429 = vmatmul.bf16.gmra.mxu0 %v3419
      %v3430 = vpop.f32.mrf.mxu0
      %v3431 = vadd.f32 0.0, %v3430
      %v3432 = vpop.f32.mrf.mxu0
      %v3433 = vadd.f32 0.0, %v3432
      %3434 = vdwg.mxu0
      %3435 = vmatpush.bf16.msra.mxu0 0
      %3436 = vmatpush.bf16.msra.mxu0 0
      %3437 = vmatpush.bf16.msra.mxu0 0
      %3438 = vmatpush.bf16.msra.mxu0 0
      %3439 = vmatpush.bf16.msra.mxu0 0
      %3440 = vmatpush.bf16.msra.mxu0 0
      %3441 = vmatpush.bf16.msra.mxu0 0
      %3442 = vmatpush.bf16.msra.mxu0 %v1260
      %3443 = vmatmul.bf16.gmra.mxu0 %v3419
      %v3444 = vpop.f32.mrf.mxu0
      %v3445 = vadd.f32 0.0, %v3444
      %v3446 = vpop.f32.mrf.mxu0
      %v3447 = vadd.f32 0.0, %v3446
      %3448 = vdwg.mxu0
      %v3449 = vmul.f32 %v3398, %v3431
      %v3450 = vmul.f32 %v3412, %v3445
      %v3451 = vmul.f32 %v3400, %v3433
      %v3452 = vmul.f32 %v3414, %v3447
      %v3453 = vpack.c.bf16 %v3451, %v3449
      %v3454 = vpack.c.bf16 %v3452, %v3450
      %3455 = vmatpush.bf16.msra.mxu0 %v1367
      %3456 = vmatpush.bf16.msra.mxu0 %v1366
      %3457 = vmatpush.bf16.msra.mxu0 %v1365
      %3458 = vmatpush.bf16.msra.mxu0 %v1364
      %3459 = vmatpush.bf16.msra.mxu0 %v1363
      %3460 = vmatpush.bf16.msra.mxu0 %v1362
      %3461 = vmatpush.bf16.msra.mxu0 %v1361
      %3462 = vmatpush.bf16.msra.mxu0 %v1360
      %3463 = vmatmul.bf16.gmra.mxu0 %v3453
      %v3464 = vpop.f32.mrf.mxu0
      %v3465 = vadd.f32 0.0, %v3464
      %v3466 = vpop.f32.mrf.mxu0
      %v3467 = vadd.f32 0.0, %v3466
      %3468 = vdwg.mxu0
      %3469 = vmatpush.bf16.msra.mxu0 %v1375
      %3470 = vmatpush.bf16.msra.mxu0 %v1374
      %3471 = vmatpush.bf16.msra.mxu0 %v1373
      %3472 = vmatpush.bf16.msra.mxu0 %v1372
      %3473 = vmatpush.bf16.msra.mxu0 %v1371
      %3474 = vmatpush.bf16.msra.mxu0 %v1370
      %3475 = vmatpush.bf16.msra.mxu0 %v1369
      %3476 = vmatpush.bf16.msra.mxu0 %v1368
      %3477 = vmatmul.bf16.gmra.mxu0 %v3454
      %v3478 = vpop.f32.mrf.mxu0
      %v3479 = vadd.f32 %v3465, %v3478
      %v3480 = vpop.f32.mrf.mxu0
      %v3481 = vadd.f32 %v3467, %v3480
      %3482 = vdwg.mxu0
      %3485 = vrot.lane.b32.xlu0 %v3479, 64
      %v3486 = vpop.permute.xlu0 %3485
      %3487 = vrot.lane.b32.xlu0 %v3481, 64
      %v3488 = vpop.permute.xlu0 %3487
      %v3491 = vadd.f32 %v3011, %v3486
      %v3492 = vadd.f32 %v3012, %v3488
      %v3493 = vtanh.pop %v3491
      %v3494 = vtanh.pop %v3492
      %v3495 = vmul.f32 %v3315, %v2995
      %v3496 = vmul.f32 %v3330, %v2996
      %v3497 = vsub.f32 1.0, %v3315
      %v3498 = vsub.f32 1.0, %v3330
      %3501 = vrot.lane.b32.xlu0 %v3493, 96
      %v3502 = vpop.permute.xlu0 %3501
      %3503 = vrot.lane.b32.xlu0 %v3494, 96
      %v3504 = vpop.permute.xlu0 %3503
      %v3507 = vmul.f32 %v3497, %v3502
      %v3508 = vmul.f32 %v3498, %v3504
      %v3509 = vadd.f32 %v3495, %v3507
      %v3510 = vadd.f32 %v3496, %v3508
      %3513 = vrot.lane.b32.xlu0 %v3509, 96
      %v3514 = vpop.permute.xlu0 %3513
      %3515 = vrot.lane.b32.xlu0 %v3510, 96
      %v3516 = vpop.permute.xlu0 %3515
      %s3519 = scalar_lea.vmem %s368, 64
      %3520 = vst.msk [vmem:[%s3519] sm:$0xff] %vm576, %v3514
      %3521 = vst.msk [vmem:[%s3519 + $0x8] sm:$0xff] %vm576, %v3516
      %s3522 = scalar_lea.vmem %s357, 80
      %v3523 = vld [vmem:[%s3522] sm:$0xff]
      %v3524 = vld [vmem:[%s3522 + $0x8] sm:$0xff]
      %v3525 = vunpack.c.l.bf16 %v3523
      %v3526 = vunpack.c.l.bf16 %v3524
      %v3527 = vpack.c.bf16 %v3510, %v3509
      %v3530 = vunpack.c.l.b16 %v3523
      %v3531 = vunpack.c.l.b16 %v3524
      %v3532 = vpack.c.b16 %v3531, %v3530
      %3533 = vrot.lane.b32.xlu0 %v3532, 32
      %v3534 = vpop.permute.xlu0 %3533
      %3536 = vrot.lane.b32.xlu0 %v3527, 96
      %v3537 = vpop.permute.xlu0 %3536
      %v3540 = vsel %vm517, %v3534, 0
      %3542 = vmatpush.bf16.msra.mxu0 0
      %3543 = vmatpush.bf16.msra.mxu0 0
      %3544 = vmatpush.bf16.msra.mxu0 0
      %3545 = vmatpush.bf16.msra.mxu0 0
      %3546 = vmatpush.bf16.msra.mxu0 0
      %3547 = vmatpush.bf16.msra.mxu0 0
      %3548 = vmatpush.bf16.msra.mxu0 0
      %3549 = vmatpush.bf16.msra.mxu0 %v3537
      %3550 = vmatmul.bf16.gmra.mxu0 %v3540
      %v3551 = vpop.f32.mrf.mxu0
      %v3552 = vadd.f32 0.0, %v3551
      %v3553 = vpop.f32.mrf.mxu0
      %v3554 = vadd.f32 0.0, %v3553
      %3555 = vdwg.mxu0
      %v3556 = vpack.c.bf16 %v3554, %v3552
      %v3558 = vsel %vm576, %v3556, 0
      %3560 = vmatpush.bf16.msra.mxu0 0
      %3561 = vmatpush.bf16.msra.mxu0 0
      %3562 = vmatpush.bf16.msra.mxu0 0
      %3563 = vmatpush.bf16.msra.mxu0 0
      %3564 = vmatpush.bf16.msra.mxu0 0
      %3565 = vmatpush.bf16.msra.mxu0 0
      %3566 = vmatpush.bf16.msra.mxu0 %v564
      %3567 = vmatpush.bf16.msra.mxu0 %v560
      %3568 = vmatmul.bf16.gmra.mxu0 %v3558
      %v3569 = vpop.f32.mrf.mxu0
      %v3570 = vadd.f32 0.0, %v3569
      %v3571 = vpop.f32.mrf.mxu0
      %v3572 = vadd.f32 0.0, %v3571
      %3573 = vdwg.mxu0
      %3574 = vmatpush.bf16.msra.mxu0 0
      %3575 = vmatpush.bf16.msra.mxu0 0
      %3576 = vmatpush.bf16.msra.mxu0 0
      %3577 = vmatpush.bf16.msra.mxu0 0
      %3578 = vmatpush.bf16.msra.mxu0 0
      %3579 = vmatpush.bf16.msra.mxu0 0
      %3580 = vmatpush.bf16.msra.mxu0 %v565
      %3581 = vmatpush.bf16.msra.mxu0 %v561
      %3582 = vmatmul.bf16.gmra.mxu0 %v3558
      %v3583 = vpop.f32.mrf.mxu0
      %v3584 = vadd.f32 0.0, %v3583
      %v3585 = vpop.f32.mrf.mxu0
      %v3586 = vadd.f32 0.0, %v3585
      %3587 = vdwg.mxu0
      %3588 = vmatpush.bf16.msra.mxu0 0
      %3589 = vmatpush.bf16.msra.mxu0 0
      %3590 = vmatpush.bf16.msra.mxu0 0
      %3591 = vmatpush.bf16.msra.mxu0 0
      %3592 = vmatpush.bf16.msra.mxu0 0
      %3593 = vmatpush.bf16.msra.mxu0 0
      %3594 = vmatpush.bf16.msra.mxu0 %v566
      %3595 = vmatpush.bf16.msra.mxu0 %v562
      %3596 = vmatmul.bf16.gmra.mxu0 %v3558
      %v3597 = vpop.f32.mrf.mxu0
      %v3598 = vadd.f32 0.0, %v3597
      %v3599 = vpop.f32.mrf.mxu0
      %v3600 = vadd.f32 0.0, %v3599
      %3601 = vdwg.mxu0
      %3602 = vmatpush.bf16.msra.mxu0 0
      %3603 = vmatpush.bf16.msra.mxu0 0
      %3604 = vmatpush.bf16.msra.mxu0 0
      %3605 = vmatpush.bf16.msra.mxu0 0
      %3606 = vmatpush.bf16.msra.mxu0 0
      %3607 = vmatpush.bf16.msra.mxu0 0
      %3608 = vmatpush.bf16.msra.mxu0 %v567
      %3609 = vmatpush.bf16.msra.mxu0 %v563
      %3610 = vmatmul.bf16.gmra.mxu0 %v3558
      %v3611 = vpop.f32.mrf.mxu0
      %v3612 = vadd.f32 0.0, %v3611
      %v3613 = vpop.f32.mrf.mxu0
      %v3614 = vadd.f32 0.0, %v3613
      %3615 = vdwg.mxu0
      %v3617 = vsel %vm576, %v3537, 0
      %3619 = vmatpush.bf16.msra.mxu0 0
      %3620 = vmatpush.bf16.msra.mxu0 0
      %3621 = vmatpush.bf16.msra.mxu0 0
      %3622 = vmatpush.bf16.msra.mxu0 0
      %3623 = vmatpush.bf16.msra.mxu0 0
      %3624 = vmatpush.bf16.msra.mxu0 0
      %3625 = vmatpush.bf16.msra.mxu0 %v664
      %3626 = vmatpush.bf16.msra.mxu0 %v660
      %3627 = vmatmul.bf16.gmra.mxu0 %v3617
      %v3628 = vpop.f32.mrf.mxu0
      %v3629 = vadd.f32 %v3570, %v3628
      %v3630 = vpop.f32.mrf.mxu0
      %v3631 = vadd.f32 %v3572, %v3630
      %3632 = vdwg.mxu0
      %3633 = vmatpush.bf16.msra.mxu0 0
      %3634 = vmatpush.bf16.msra.mxu0 0
      %3635 = vmatpush.bf16.msra.mxu0 0
      %3636 = vmatpush.bf16.msra.mxu0 0
      %3637 = vmatpush.bf16.msra.mxu0 0
      %3638 = vmatpush.bf16.msra.mxu0 0
      %3639 = vmatpush.bf16.msra.mxu0 %v665
      %3640 = vmatpush.bf16.msra.mxu0 %v661
      %3641 = vmatmul.bf16.gmra.mxu0 %v3617
      %v3642 = vpop.f32.mrf.mxu0
      %v3643 = vadd.f32 %v3584, %v3642
      %v3644 = vpop.f32.mrf.mxu0
      %v3645 = vadd.f32 %v3586, %v3644
      %3646 = vdwg.mxu0
      %3647 = vmatpush.bf16.msra.mxu0 0
      %3648 = vmatpush.bf16.msra.mxu0 0
      %3649 = vmatpush.bf16.msra.mxu0 0
      %3650 = vmatpush.bf16.msra.mxu0 0
      %3651 = vmatpush.bf16.msra.mxu0 0
      %3652 = vmatpush.bf16.msra.mxu0 0
      %3653 = vmatpush.bf16.msra.mxu0 %v666
      %3654 = vmatpush.bf16.msra.mxu0 %v662
      %3655 = vmatmul.bf16.gmra.mxu0 %v3617
      %v3656 = vpop.f32.mrf.mxu0
      %v3657 = vadd.f32 %v3598, %v3656
      %v3658 = vpop.f32.mrf.mxu0
      %v3659 = vadd.f32 %v3600, %v3658
      %3660 = vdwg.mxu0
      %3661 = vmatpush.bf16.msra.mxu0 0
      %3662 = vmatpush.bf16.msra.mxu0 0
      %3663 = vmatpush.bf16.msra.mxu0 0
      %3664 = vmatpush.bf16.msra.mxu0 0
      %3665 = vmatpush.bf16.msra.mxu0 0
      %3666 = vmatpush.bf16.msra.mxu0 0
      %3667 = vmatpush.bf16.msra.mxu0 %v667
      %3668 = vmatpush.bf16.msra.mxu0 %v663
      %3669 = vmatmul.bf16.gmra.mxu0 %v3617
      %v3670 = vpop.f32.mrf.mxu0
      %v3671 = vadd.f32 %v3612, %v3670
      %v3672 = vpop.f32.mrf.mxu0
      %v3673 = vadd.f32 %v3614, %v3672
      %3674 = vdwg.mxu0
      %v3675 = vunpack.c.h.b16 %v3523
      %v3676 = vunpack.c.h.b16 %v3524
      %v3677 = vpack.c.b16 %v3676, %v3675
      %v3679 = vsel %vm748, %v3677, 0
      %3681 = vmatpush.bf16.msra.mxu0 0
      %3682 = vmatpush.bf16.msra.mxu0 0
      %3683 = vmatpush.bf16.msra.mxu0 0
      %3684 = vmatpush.bf16.msra.mxu0 0
      %3685 = vmatpush.bf16.msra.mxu0 0
      %3686 = vmatpush.bf16.msra.mxu0 0
      %3687 = vmatpush.bf16.msra.mxu0 0
      %3688 = vmatpush.bf16.msra.mxu0 %v754
      %3689 = vmatmul.bf16.gmra.mxu0 %v3679
      %v3690 = vpop.f32.mrf.mxu0
      %v3691 = vadd.f32 0.0, %v3690
      %v3692 = vpop.f32.mrf.mxu0
      %v3693 = vadd.f32 0.0, %v3692
      %3694 = vdwg.mxu0
      %3695 = vmatpush.bf16.msra.mxu0 0
      %3696 = vmatpush.bf16.msra.mxu0 0
      %3697 = vmatpush.bf16.msra.mxu0 0
      %3698 = vmatpush.bf16.msra.mxu0 0
      %3699 = vmatpush.bf16.msra.mxu0 0
      %3700 = vmatpush.bf16.msra.mxu0 0
      %3701 = vmatpush.bf16.msra.mxu0 0
      %3702 = vmatpush.bf16.msra.mxu0 %v757
      %3703 = vmatmul.bf16.gmra.mxu0 %v3679
      %v3704 = vpop.f32.mrf.mxu0
      %v3705 = vadd.f32 0.0, %v3704
      %v3706 = vpop.f32.mrf.mxu0
      %v3707 = vadd.f32 0.0, %v3706
      %3708 = vdwg.mxu0
      %3709 = vmatpush.bf16.msra.mxu0 0
      %3710 = vmatpush.bf16.msra.mxu0 0
      %3711 = vmatpush.bf16.msra.mxu0 0
      %3712 = vmatpush.bf16.msra.mxu0 0
      %3713 = vmatpush.bf16.msra.mxu0 0
      %3714 = vmatpush.bf16.msra.mxu0 0
      %3715 = vmatpush.bf16.msra.mxu0 0
      %3716 = vmatpush.bf16.msra.mxu0 %v760
      %3717 = vmatmul.bf16.gmra.mxu0 %v3679
      %v3718 = vpop.f32.mrf.mxu0
      %v3719 = vadd.f32 0.0, %v3718
      %v3720 = vpop.f32.mrf.mxu0
      %v3721 = vadd.f32 0.0, %v3720
      %3722 = vdwg.mxu0
      %3723 = vmatpush.bf16.msra.mxu0 0
      %3724 = vmatpush.bf16.msra.mxu0 0
      %3725 = vmatpush.bf16.msra.mxu0 0
      %3726 = vmatpush.bf16.msra.mxu0 0
      %3727 = vmatpush.bf16.msra.mxu0 0
      %3728 = vmatpush.bf16.msra.mxu0 0
      %3729 = vmatpush.bf16.msra.mxu0 0
      %3730 = vmatpush.bf16.msra.mxu0 %v763
      %3731 = vmatmul.bf16.gmra.mxu0 %v3679
      %v3732 = vpop.f32.mrf.mxu0
      %v3733 = vadd.f32 0.0, %v3732
      %v3734 = vpop.f32.mrf.mxu0
      %v3735 = vadd.f32 0.0, %v3734
      %3736 = vdwg.mxu0
      %v3737 = vmul.f32 %v3629, %v3691
      %v3738 = vmul.f32 %v3643, %v3705
      %v3739 = vmul.f32 %v3657, %v3719
      %v3740 = vmul.f32 %v3671, %v3733
      %v3741 = vmul.f32 %v3631, %v3693
      %v3742 = vmul.f32 %v3645, %v3707
      %v3743 = vmul.f32 %v3659, %v3721
      %v3744 = vmul.f32 %v3673, %v3735
      %v3745 = vpack.c.bf16 %v3741, %v3737
      %v3746 = vpack.c.bf16 %v3742, %v3738
      %v3747 = vpack.c.bf16 %v3743, %v3739
      %v3748 = vpack.c.bf16 %v3744, %v3740
      %3749 = vmatpush.bf16.msra.mxu0 %v968
      %3750 = vmatpush.bf16.msra.mxu0 %v967
      %3751 = vmatpush.bf16.msra.mxu0 %v966
      %3752 = vmatpush.bf16.msra.mxu0 %v965
      %3753 = vmatpush.bf16.msra.mxu0 %v964
      %3754 = vmatpush.bf16.msra.mxu0 %v963
      %3755 = vmatpush.bf16.msra.mxu0 %v962
      %3756 = vmatpush.bf16.msra.mxu0 %v961
      %3757 = vmatmul.bf16.gmra.mxu0 %v3745
      %v3758 = vpop.f32.mrf.mxu0
      %v3759 = vadd.f32 0.0, %v3758
      %v3760 = vpop.f32.mrf.mxu0
      %v3761 = vadd.f32 0.0, %v3760
      %3762 = vdwg.mxu0
      %3763 = vmatpush.bf16.msra.mxu0 %v976
      %3764 = vmatpush.bf16.msra.mxu0 %v975
      %3765 = vmatpush.bf16.msra.mxu0 %v974
      %3766 = vmatpush.bf16.msra.mxu0 %v973
      %3767 = vmatpush.bf16.msra.mxu0 %v972
      %3768 = vmatpush.bf16.msra.mxu0 %v971
      %3769 = vmatpush.bf16.msra.mxu0 %v970
      %3770 = vmatpush.bf16.msra.mxu0 %v969
      %3771 = vmatmul.bf16.gmra.mxu0 %v3746
      %v3772 = vpop.f32.mrf.mxu0
      %v3773 = vadd.f32 %v3759, %v3772
      %v3774 = vpop.f32.mrf.mxu0
      %v3775 = vadd.f32 %v3761, %v3774
      %3776 = vdwg.mxu0
      %3777 = vmatpush.bf16.msra.mxu0 %v984
      %3778 = vmatpush.bf16.msra.mxu0 %v983
      %3779 = vmatpush.bf16.msra.mxu0 %v982
      %3780 = vmatpush.bf16.msra.mxu0 %v981
      %3781 = vmatpush.bf16.msra.mxu0 %v980
      %3782 = vmatpush.bf16.msra.mxu0 %v979
      %3783 = vmatpush.bf16.msra.mxu0 %v978
      %3784 = vmatpush.bf16.msra.mxu0 %v977
      %3785 = vmatmul.bf16.gmra.mxu0 %v3747
      %v3786 = vpop.f32.mrf.mxu0
      %v3787 = vadd.f32 %v3773, %v3786
      %v3788 = vpop.f32.mrf.mxu0
      %v3789 = vadd.f32 %v3775, %v3788
      %3790 = vdwg.mxu0
      %3791 = vmatpush.bf16.msra.mxu0 %v992
      %3792 = vmatpush.bf16.msra.mxu0 %v991
      %3793 = vmatpush.bf16.msra.mxu0 %v990
      %3794 = vmatpush.bf16.msra.mxu0 %v989
      %3795 = vmatpush.bf16.msra.mxu0 %v988
      %3796 = vmatpush.bf16.msra.mxu0 %v987
      %3797 = vmatpush.bf16.msra.mxu0 %v986
      %3798 = vmatpush.bf16.msra.mxu0 %v985
      %3799 = vmatmul.bf16.gmra.mxu0 %v3748
      %v3800 = vpop.f32.mrf.mxu0
      %v3801 = vadd.f32 %v3787, %v3800
      %v3802 = vpop.f32.mrf.mxu0
      %v3803 = vadd.f32 %v3789, %v3802
      %3804 = vdwg.mxu0
      %v3805 = vadd.f32 %v3525, %v3801
      %v3806 = vadd.f32 %v3526, %v3803
      %v3807 = vxor.u32 %v3805, 2147483648
      %v3808 = vxor.u32 %v3806, 2147483648
      %v3809 = vmul.f32 %v3807, 1.442695
      %v3810 = vpow.pop %v3809
      %v3811 = vmul.f32 %v3808, 1.442695
      %v3812 = vpow.pop %v3811
      %v3813 = vadd.f32 %v3810, 1.0
      %v3814 = vadd.f32 %v3812, 1.0
      %v3815 = vrcp.pop %v3813
      %v3816 = vmul.f32 %v3813, %v3815
      %v3817 = vsub.f32 1.0, %v3816
      %v3818 = vmul.f32 %v3815, %v3817
      %v3819 = vadd.f32 %v3815, %v3818
      %vm3820 = vweird.f32 %v3813
      %vm3821 = vweird.f32 %v3815
      %vm3822 = vmor %vm3820, %vm3821
      %v3823 = vsel %vm3822, %v3815, %v3819
      %v3824 = vand.u32 2147483647, %v3813
      %vm3825 = vcmp.eq.f32.partialorder %v3824, 8.507059e+37
      %v3826 = vand.u32 %v3813, 2147483648
      %v3827 = vor.u32 1.1754944e-38, %v3826
      %v3828 = vsel %vm3825, %v3827, %v3823
      %v3829 = vmul.f32 1.0, %v3828
      %v3830 = vrcp.pop %v3814
      %v3831 = vmul.f32 %v3814, %v3830
      %v3832 = vsub.f32 1.0, %v3831
      %v3833 = vmul.f32 %v3830, %v3832
      %v3834 = vadd.f32 %v3830, %v3833
      %vm3835 = vweird.f32 %v3814
      %vm3836 = vweird.f32 %v3830
      %vm3837 = vmor %vm3835, %vm3836
      %v3838 = vsel %vm3837, %v3830, %v3834
      %v3839 = vand.u32 2147483647, %v3814
      %vm3840 = vcmp.eq.f32.partialorder %v3839, 8.507059e+37
      %v3841 = vand.u32 %v3814, 2147483648
      %v3842 = vor.u32 1.1754944e-38, %v3841
      %v3843 = vsel %vm3840, %v3842, %v3838
      %v3844 = vmul.f32 1.0, %v3843
      %v3845 = vmul.f32 %v3829, %v3514
      %v3846 = vmul.f32 %v3844, %v3516
      %v3847 = vpack.c.bf16 %v3846, %v3845
      %3848 = vrot.lane.b32.xlu0 %v3532, 16
      %v3849 = vpop.permute.xlu0 %3848
      %v3851 = vsel %vm517, %v3849, 0
      %3853 = vmatpush.bf16.msra.mxu0 0
      %3854 = vmatpush.bf16.msra.mxu0 0
      %3855 = vmatpush.bf16.msra.mxu0 0
      %3856 = vmatpush.bf16.msra.mxu0 0
      %3857 = vmatpush.bf16.msra.mxu0 0
      %3858 = vmatpush.bf16.msra.mxu0 0
      %3859 = vmatpush.bf16.msra.mxu0 0
      %3860 = vmatpush.bf16.msra.mxu0 %v3847
      %3861 = vmatmul.bf16.gmra.mxu0 %v3851
      %v3862 = vpop.f32.mrf.mxu0
      %v3863 = vadd.f32 0.0, %v3862
      %v3864 = vpop.f32.mrf.mxu0
      %v3865 = vadd.f32 0.0, %v3864
      %3866 = vdwg.mxu0
      %v3867 = vpack.c.bf16 %v3865, %v3863
      %v3869 = vsel %vm576, %v3867, 0
      %3871 = vmatpush.bf16.msra.mxu0 0
      %3872 = vmatpush.bf16.msra.mxu0 0
      %3873 = vmatpush.bf16.msra.mxu0 0
      %3874 = vmatpush.bf16.msra.mxu0 0
      %3875 = vmatpush.bf16.msra.mxu0 0
      %3876 = vmatpush.bf16.msra.mxu0 0
      %3877 = vmatpush.bf16.msra.mxu0 %v1158
      %3878 = vmatpush.bf16.msra.mxu0 %v1156
      %3879 = vmatmul.bf16.gmra.mxu0 %v3869
      %v3880 = vpop.f32.mrf.mxu0
      %v3881 = vadd.f32 0.0, %v3880
      %v3882 = vpop.f32.mrf.mxu0
      %v3883 = vadd.f32 0.0, %v3882
      %3884 = vdwg.mxu0
      %3885 = vmatpush.bf16.msra.mxu0 0
      %3886 = vmatpush.bf16.msra.mxu0 0
      %3887 = vmatpush.bf16.msra.mxu0 0
      %3888 = vmatpush.bf16.msra.mxu0 0
      %3889 = vmatpush.bf16.msra.mxu0 0
      %3890 = vmatpush.bf16.msra.mxu0 0
      %3891 = vmatpush.bf16.msra.mxu0 %v1159
      %3892 = vmatpush.bf16.msra.mxu0 %v1157
      %3893 = vmatmul.bf16.gmra.mxu0 %v3869
      %v3894 = vpop.f32.mrf.mxu0
      %v3895 = vadd.f32 0.0, %v3894
      %v3896 = vpop.f32.mrf.mxu0
      %v3897 = vadd.f32 0.0, %v3896
      %3898 = vdwg.mxu0
      %v3900 = vsel %vm576, %v3847, 0
      %3902 = vmatpush.bf16.msra.mxu0 0
      %3903 = vmatpush.bf16.msra.mxu0 0
      %3904 = vmatpush.bf16.msra.mxu0 0
      %3905 = vmatpush.bf16.msra.mxu0 0
      %3906 = vmatpush.bf16.msra.mxu0 0
      %3907 = vmatpush.bf16.msra.mxu0 0
      %3908 = vmatpush.bf16.msra.mxu0 %v1209
      %3909 = vmatpush.bf16.msra.mxu0 %v1207
      %3910 = vmatmul.bf16.gmra.mxu0 %v3900
      %v3911 = vpop.f32.mrf.mxu0
      %v3912 = vadd.f32 %v3881, %v3911
      %v3913 = vpop.f32.mrf.mxu0
      %v3914 = vadd.f32 %v3883, %v3913
      %3915 = vdwg.mxu0
      %3916 = vmatpush.bf16.msra.mxu0 0
      %3917 = vmatpush.bf16.msra.mxu0 0
      %3918 = vmatpush.bf16.msra.mxu0 0
      %3919 = vmatpush.bf16.msra.mxu0 0
      %3920 = vmatpush.bf16.msra.mxu0 0
      %3921 = vmatpush.bf16.msra.mxu0 0
      %3922 = vmatpush.bf16.msra.mxu0 %v1210
      %3923 = vmatpush.bf16.msra.mxu0 %v1208
      %3924 = vmatmul.bf16.gmra.mxu0 %v3900
      %v3925 = vpop.f32.mrf.mxu0
      %v3926 = vadd.f32 %v3895, %v3925
      %v3927 = vpop.f32.mrf.mxu0
      %v3928 = vadd.f32 %v3897, %v3927
      %3929 = vdwg.mxu0
      %3930 = vrot.lane.b32.xlu0 %v3677, 120
      %v3931 = vpop.permute.xlu0 %3930
      %v3933 = vsel %vm748, %v3931, 0
      %3935 = vmatpush.bf16.msra.mxu0 0
      %3936 = vmatpush.bf16.msra.mxu0 0
      %3937 = vmatpush.bf16.msra.mxu0 0
      %3938 = vmatpush.bf16.msra.mxu0 0
      %3939 = vmatpush.bf16.msra.mxu0 0
      %3940 = vmatpush.bf16.msra.mxu0 0
      %3941 = vmatpush.bf16.msra.mxu0 0
      %3942 = vmatpush.bf16.msra.mxu0 %v1257
      %3943 = vmatmul.bf16.gmra.mxu0 %v3933
      %v3944 = vpop.f32.mrf.mxu0
      %v3945 = vadd.f32 0.0, %v3944
      %v3946 = vpop.f32.mrf.mxu0
      %v3947 = vadd.f32 0.0, %v3946
      %3948 = vdwg.mxu0
      %3949 = vmatpush.bf16.msra.mxu0 0
      %3950 = vmatpush.bf16.msra.mxu0 0
      %3951 = vmatpush.bf16.msra.mxu0 0
      %3952 = vmatpush.bf16.msra.mxu0 0
      %3953 = vmatpush.bf16.msra.mxu0 0
      %3954 = vmatpush.bf16.msra.mxu0 0
      %3955 = vmatpush.bf16.msra.mxu0 0
      %3956 = vmatpush.bf16.msra.mxu0 %v1260
      %3957 = vmatmul.bf16.gmra.mxu0 %v3933
      %v3958 = vpop.f32.mrf.mxu0
      %v3959 = vadd.f32 0.0, %v3958
      %v3960 = vpop.f32.mrf.mxu0
      %v3961 = vadd.f32 0.0, %v3960
      %3962 = vdwg.mxu0
      %v3963 = vmul.f32 %v3912, %v3945
      %v3964 = vmul.f32 %v3926, %v3959
      %v3965 = vmul.f32 %v3914, %v3947
      %v3966 = vmul.f32 %v3928, %v3961
      %v3967 = vpack.c.bf16 %v3965, %v3963
      %v3968 = vpack.c.bf16 %v3966, %v3964
      %3969 = vmatpush.bf16.msra.mxu0 %v1367
      %3970 = vmatpush.bf16.msra.mxu0 %v1366
      %3971 = vmatpush.bf16.msra.mxu0 %v1365
      %3972 = vmatpush.bf16.msra.mxu0 %v1364
      %3973 = vmatpush.bf16.msra.mxu0 %v1363
      %3974 = vmatpush.bf16.msra.mxu0 %v1362
      %3975 = vmatpush.bf16.msra.mxu0 %v1361
      %3976 = vmatpush.bf16.msra.mxu0 %v1360
      %3977 = vmatmul.bf16.gmra.mxu0 %v3967
      %v3978 = vpop.f32.mrf.mxu0
      %v3979 = vadd.f32 0.0, %v3978
      %v3980 = vpop.f32.mrf.mxu0
      %v3981 = vadd.f32 0.0, %v3980
      %3982 = vdwg.mxu0
      %3983 = vmatpush.bf16.msra.mxu0 %v1375
      %3984 = vmatpush.bf16.msra.mxu0 %v1374
      %3985 = vmatpush.bf16.msra.mxu0 %v1373
      %3986 = vmatpush.bf16.msra.mxu0 %v1372
      %3987 = vmatpush.bf16.msra.mxu0 %v1371
      %3988 = vmatpush.bf16.msra.mxu0 %v1370
      %3989 = vmatpush.bf16.msra.mxu0 %v1369
      %3990 = vmatpush.bf16.msra.mxu0 %v1368
      %3991 = vmatmul.bf16.gmra.mxu0 %v3968
      %v3992 = vpop.f32.mrf.mxu0
      %v3993 = vadd.f32 %v3979, %v3992
      %v3994 = vpop.f32.mrf.mxu0
      %v3995 = vadd.f32 %v3981, %v3994
      %3996 = vdwg.mxu0
      %3999 = vrot.lane.b32.xlu0 %v3993, 64
      %v4000 = vpop.permute.xlu0 %3999
      %4001 = vrot.lane.b32.xlu0 %v3995, 64
      %v4002 = vpop.permute.xlu0 %4001
      %v4005 = vadd.f32 %v3525, %v4000
      %v4006 = vadd.f32 %v3526, %v4002
      %v4007 = vtanh.pop %v4005
      %v4008 = vtanh.pop %v4006
      %v4009 = vmul.f32 %v3829, %v3509
      %v4010 = vmul.f32 %v3844, %v3510
      %v4011 = vsub.f32 1.0, %v3829
      %v4012 = vsub.f32 1.0, %v3844
      %4015 = vrot.lane.b32.xlu0 %v4007, 96
      %v4016 = vpop.permute.xlu0 %4015
      %4017 = vrot.lane.b32.xlu0 %v4008, 96
      %v4018 = vpop.permute.xlu0 %4017
      %v4021 = vmul.f32 %v4011, %v4016
      %v4022 = vmul.f32 %v4012, %v4018
      %v4023 = vadd.f32 %v4009, %v4021
      %v4024 = vadd.f32 %v4010, %v4022
      %4027 = vrot.lane.b32.xlu0 %v4023, 96
      %v4028 = vpop.permute.xlu0 %4027
      %4029 = vrot.lane.b32.xlu0 %v4024, 96
      %v4030 = vpop.permute.xlu0 %4029
      %s4033 = scalar_lea.vmem %s368, 80
      %4034 = vst.msk [vmem:[%s4033] sm:$0xff] %vm576, %v4028
      %4035 = vst.msk [vmem:[%s4033 + $0x8] sm:$0xff] %vm576, %v4030
      %s4036 = scalar_lea.vmem %s357, 96
      %v4037 = vld [vmem:[%s4036] sm:$0xff]
      %v4038 = vld [vmem:[%s4036 + $0x8] sm:$0xff]
      %v4039 = vunpack.c.l.bf16 %v4037
      %v4040 = vunpack.c.l.bf16 %v4038
      %v4041 = vpack.c.bf16 %v4024, %v4023
      %v4044 = vunpack.c.l.b16 %v4037
      %v4045 = vunpack.c.l.b16 %v4038
      %v4046 = vpack.c.b16 %v4045, %v4044
      %4047 = vrot.lane.b32.xlu0 %v4046, 32
      %v4048 = vpop.permute.xlu0 %4047
      %4050 = vrot.lane.b32.xlu0 %v4041, 96
      %v4051 = vpop.permute.xlu0 %4050
      %v4054 = vsel %vm517, %v4048, 0
      %4056 = vmatpush.bf16.msra.mxu0 0
      %4057 = vmatpush.bf16.msra.mxu0 0
      %4058 = vmatpush.bf16.msra.mxu0 0
      %4059 = vmatpush.bf16.msra.mxu0 0
      %4060 = vmatpush.bf16.msra.mxu0 0
      %4061 = vmatpush.bf16.msra.mxu0 0
      %4062 = vmatpush.bf16.msra.mxu0 0
      %4063 = vmatpush.bf16.msra.mxu0 %v4051
      %4064 = vmatmul.bf16.gmra.mxu0 %v4054
      %v4065 = vpop.f32.mrf.mxu0
      %v4066 = vadd.f32 0.0, %v4065
      %v4067 = vpop.f32.mrf.mxu0
      %v4068 = vadd.f32 0.0, %v4067
      %4069 = vdwg.mxu0
      %v4070 = vpack.c.bf16 %v4068, %v4066
      %v4072 = vsel %vm576, %v4070, 0
      %4074 = vmatpush.bf16.msra.mxu0 0
      %4075 = vmatpush.bf16.msra.mxu0 0
      %4076 = vmatpush.bf16.msra.mxu0 0
      %4077 = vmatpush.bf16.msra.mxu0 0
      %4078 = vmatpush.bf16.msra.mxu0 0
      %4079 = vmatpush.bf16.msra.mxu0 0
      %4080 = vmatpush.bf16.msra.mxu0 %v564
      %4081 = vmatpush.bf16.msra.mxu0 %v560
      %4082 = vmatmul.bf16.gmra.mxu0 %v4072
      %v4083 = vpop.f32.mrf.mxu0
      %v4084 = vadd.f32 0.0, %v4083
      %v4085 = vpop.f32.mrf.mxu0
      %v4086 = vadd.f32 0.0, %v4085
      %4087 = vdwg.mxu0
      %4088 = vmatpush.bf16.msra.mxu0 0
      %4089 = vmatpush.bf16.msra.mxu0 0
      %4090 = vmatpush.bf16.msra.mxu0 0
      %4091 = vmatpush.bf16.msra.mxu0 0
      %4092 = vmatpush.bf16.msra.mxu0 0
      %4093 = vmatpush.bf16.msra.mxu0 0
      %4094 = vmatpush.bf16.msra.mxu0 %v565
      %4095 = vmatpush.bf16.msra.mxu0 %v561
      %4096 = vmatmul.bf16.gmra.mxu0 %v4072
      %v4097 = vpop.f32.mrf.mxu0
      %v4098 = vadd.f32 0.0, %v4097
      %v4099 = vpop.f32.mrf.mxu0
      %v4100 = vadd.f32 0.0, %v4099
      %4101 = vdwg.mxu0
      %4102 = vmatpush.bf16.msra.mxu0 0
      %4103 = vmatpush.bf16.msra.mxu0 0
      %4104 = vmatpush.bf16.msra.mxu0 0
      %4105 = vmatpush.bf16.msra.mxu0 0
      %4106 = vmatpush.bf16.msra.mxu0 0
      %4107 = vmatpush.bf16.msra.mxu0 0
      %4108 = vmatpush.bf16.msra.mxu0 %v566
      %4109 = vmatpush.bf16.msra.mxu0 %v562
      %4110 = vmatmul.bf16.gmra.mxu0 %v4072
      %v4111 = vpop.f32.mrf.mxu0
      %v4112 = vadd.f32 0.0, %v4111
      %v4113 = vpop.f32.mrf.mxu0
      %v4114 = vadd.f32 0.0, %v4113
      %4115 = vdwg.mxu0
      %4116 = vmatpush.bf16.msra.mxu0 0
      %4117 = vmatpush.bf16.msra.mxu0 0
      %4118 = vmatpush.bf16.msra.mxu0 0
      %4119 = vmatpush.bf16.msra.mxu0 0
      %4120 = vmatpush.bf16.msra.mxu0 0
      %4121 = vmatpush.bf16.msra.mxu0 0
      %4122 = vmatpush.bf16.msra.mxu0 %v567
      %4123 = vmatpush.bf16.msra.mxu0 %v563
      %4124 = vmatmul.bf16.gmra.mxu0 %v4072
      %v4125 = vpop.f32.mrf.mxu0
      %v4126 = vadd.f32 0.0, %v4125
      %v4127 = vpop.f32.mrf.mxu0
      %v4128 = vadd.f32 0.0, %v4127
      %4129 = vdwg.mxu0
      %v4131 = vsel %vm576, %v4051, 0
      %4133 = vmatpush.bf16.msra.mxu0 0
      %4134 = vmatpush.bf16.msra.mxu0 0
      %4135 = vmatpush.bf16.msra.mxu0 0
      %4136 = vmatpush.bf16.msra.mxu0 0
      %4137 = vmatpush.bf16.msra.mxu0 0
      %4138 = vmatpush.bf16.msra.mxu0 0
      %4139 = vmatpush.bf16.msra.mxu0 %v664
      %4140 = vmatpush.bf16.msra.mxu0 %v660
      %4141 = vmatmul.bf16.gmra.mxu0 %v4131
      %v4142 = vpop.f32.mrf.mxu0
      %v4143 = vadd.f32 %v4084, %v4142
      %v4144 = vpop.f32.mrf.mxu0
      %v4145 = vadd.f32 %v4086, %v4144
      %4146 = vdwg.mxu0
      %4147 = vmatpush.bf16.msra.mxu0 0
      %4148 = vmatpush.bf16.msra.mxu0 0
      %4149 = vmatpush.bf16.msra.mxu0 0
      %4150 = vmatpush.bf16.msra.mxu0 0
      %4151 = vmatpush.bf16.msra.mxu0 0
      %4152 = vmatpush.bf16.msra.mxu0 0
      %4153 = vmatpush.bf16.msra.mxu0 %v665
      %4154 = vmatpush.bf16.msra.mxu0 %v661
      %4155 = vmatmul.bf16.gmra.mxu0 %v4131
      %v4156 = vpop.f32.mrf.mxu0
      %v4157 = vadd.f32 %v4098, %v4156
      %v4158 = vpop.f32.mrf.mxu0
      %v4159 = vadd.f32 %v4100, %v4158
      %4160 = vdwg.mxu0
      %4161 = vmatpush.bf16.msra.mxu0 0
      %4162 = vmatpush.bf16.msra.mxu0 0
      %4163 = vmatpush.bf16.msra.mxu0 0
      %4164 = vmatpush.bf16.msra.mxu0 0
      %4165 = vmatpush.bf16.msra.mxu0 0
      %4166 = vmatpush.bf16.msra.mxu0 0
      %4167 = vmatpush.bf16.msra.mxu0 %v666
      %4168 = vmatpush.bf16.msra.mxu0 %v662
      %4169 = vmatmul.bf16.gmra.mxu0 %v4131
      %v4170 = vpop.f32.mrf.mxu0
      %v4171 = vadd.f32 %v4112, %v4170
      %v4172 = vpop.f32.mrf.mxu0
      %v4173 = vadd.f32 %v4114, %v4172
      %4174 = vdwg.mxu0
      %4175 = vmatpush.bf16.msra.mxu0 0
      %4176 = vmatpush.bf16.msra.mxu0 0
      %4177 = vmatpush.bf16.msra.mxu0 0
      %4178 = vmatpush.bf16.msra.mxu0 0
      %4179 = vmatpush.bf16.msra.mxu0 0
      %4180 = vmatpush.bf16.msra.mxu0 0
      %4181 = vmatpush.bf16.msra.mxu0 %v667
      %4182 = vmatpush.bf16.msra.mxu0 %v663
      %4183 = vmatmul.bf16.gmra.mxu0 %v4131
      %v4184 = vpop.f32.mrf.mxu0
      %v4185 = vadd.f32 %v4126, %v4184
      %v4186 = vpop.f32.mrf.mxu0
      %v4187 = vadd.f32 %v4128, %v4186
      %4188 = vdwg.mxu0
      %v4189 = vunpack.c.h.b16 %v4037
      %v4190 = vunpack.c.h.b16 %v4038
      %v4191 = vpack.c.b16 %v4190, %v4189
      %v4193 = vsel %vm748, %v4191, 0
      %4195 = vmatpush.bf16.msra.mxu0 0
      %4196 = vmatpush.bf16.msra.mxu0 0
      %4197 = vmatpush.bf16.msra.mxu0 0
      %4198 = vmatpush.bf16.msra.mxu0 0
      %4199 = vmatpush.bf16.msra.mxu0 0
      %4200 = vmatpush.bf16.msra.mxu0 0
      %4201 = vmatpush.bf16.msra.mxu0 0
      %4202 = vmatpush.bf16.msra.mxu0 %v754
      %4203 = vmatmul.bf16.gmra.mxu0 %v4193
      %v4204 = vpop.f32.mrf.mxu0
      %v4205 = vadd.f32 0.0, %v4204
      %v4206 = vpop.f32.mrf.mxu0
      %v4207 = vadd.f32 0.0, %v4206
      %4208 = vdwg.mxu0
      %4209 = vmatpush.bf16.msra.mxu0 0
      %4210 = vmatpush.bf16.msra.mxu0 0
      %4211 = vmatpush.bf16.msra.mxu0 0
      %4212 = vmatpush.bf16.msra.mxu0 0
      %4213 = vmatpush.bf16.msra.mxu0 0
      %4214 = vmatpush.bf16.msra.mxu0 0
      %4215 = vmatpush.bf16.msra.mxu0 0
      %4216 = vmatpush.bf16.msra.mxu0 %v757
      %4217 = vmatmul.bf16.gmra.mxu0 %v4193
      %v4218 = vpop.f32.mrf.mxu0
      %v4219 = vadd.f32 0.0, %v4218
      %v4220 = vpop.f32.mrf.mxu0
      %v4221 = vadd.f32 0.0, %v4220
      %4222 = vdwg.mxu0
      %4223 = vmatpush.bf16.msra.mxu0 0
      %4224 = vmatpush.bf16.msra.mxu0 0
      %4225 = vmatpush.bf16.msra.mxu0 0
      %4226 = vmatpush.bf16.msra.mxu0 0
      %4227 = vmatpush.bf16.msra.mxu0 0
      %4228 = vmatpush.bf16.msra.mxu0 0
      %4229 = vmatpush.bf16.msra.mxu0 0
      %4230 = vmatpush.bf16.msra.mxu0 %v760
      %4231 = vmatmul.bf16.gmra.mxu0 %v4193
      %v4232 = vpop.f32.mrf.mxu0
      %v4233 = vadd.f32 0.0, %v4232
      %v4234 = vpop.f32.mrf.mxu0
      %v4235 = vadd.f32 0.0, %v4234
      %4236 = vdwg.mxu0
      %4237 = vmatpush.bf16.msra.mxu0 0
      %4238 = vmatpush.bf16.msra.mxu0 0
      %4239 = vmatpush.bf16.msra.mxu0 0
      %4240 = vmatpush.bf16.msra.mxu0 0
      %4241 = vmatpush.bf16.msra.mxu0 0
      %4242 = vmatpush.bf16.msra.mxu0 0
      %4243 = vmatpush.bf16.msra.mxu0 0
      %4244 = vmatpush.bf16.msra.mxu0 %v763
      %4245 = vmatmul.bf16.gmra.mxu0 %v4193
      %v4246 = vpop.f32.mrf.mxu0
      %v4247 = vadd.f32 0.0, %v4246
      %v4248 = vpop.f32.mrf.mxu0
      %v4249 = vadd.f32 0.0, %v4248
      %4250 = vdwg.mxu0
      %v4251 = vmul.f32 %v4143, %v4205
      %v4252 = vmul.f32 %v4157, %v4219
      %v4253 = vmul.f32 %v4171, %v4233
      %v4254 = vmul.f32 %v4185, %v4247
      %v4255 = vmul.f32 %v4145, %v4207
      %v4256 = vmul.f32 %v4159, %v4221
      %v4257 = vmul.f32 %v4173, %v4235
      %v4258 = vmul.f32 %v4187, %v4249
      %v4259 = vpack.c.bf16 %v4255, %v4251
      %v4260 = vpack.c.bf16 %v4256, %v4252
      %v4261 = vpack.c.bf16 %v4257, %v4253
      %v4262 = vpack.c.bf16 %v4258, %v4254
      %4263 = vmatpush.bf16.msra.mxu0 %v968
      %4264 = vmatpush.bf16.msra.mxu0 %v967
      %4265 = vmatpush.bf16.msra.mxu0 %v966
      %4266 = vmatpush.bf16.msra.mxu0 %v965
      %4267 = vmatpush.bf16.msra.mxu0 %v964
      %4268 = vmatpush.bf16.msra.mxu0 %v963
      %4269 = vmatpush.bf16.msra.mxu0 %v962
      %4270 = vmatpush.bf16.msra.mxu0 %v961
      %4271 = vmatmul.bf16.gmra.mxu0 %v4259
      %v4272 = vpop.f32.mrf.mxu0
      %v4273 = vadd.f32 0.0, %v4272
      %v4274 = vpop.f32.mrf.mxu0
      %v4275 = vadd.f32 0.0, %v4274
      %4276 = vdwg.mxu0
      %4277 = vmatpush.bf16.msra.mxu0 %v976
      %4278 = vmatpush.bf16.msra.mxu0 %v975
      %4279 = vmatpush.bf16.msra.mxu0 %v974
      %4280 = vmatpush.bf16.msra.mxu0 %v973
      %4281 = vmatpush.bf16.msra.mxu0 %v972
      %4282 = vmatpush.bf16.msra.mxu0 %v971
      %4283 = vmatpush.bf16.msra.mxu0 %v970
      %4284 = vmatpush.bf16.msra.mxu0 %v969
      %4285 = vmatmul.bf16.gmra.mxu0 %v4260
      %v4286 = vpop.f32.mrf.mxu0
      %v4287 = vadd.f32 %v4273, %v4286
      %v4288 = vpop.f32.mrf.mxu0
      %v4289 = vadd.f32 %v4275, %v4288
      %4290 = vdwg.mxu0
      %4291 = vmatpush.bf16.msra.mxu0 %v984
      %4292 = vmatpush.bf16.msra.mxu0 %v983
      %4293 = vmatpush.bf16.msra.mxu0 %v982
      %4294 = vmatpush.bf16.msra.mxu0 %v981
      %4295 = vmatpush.bf16.msra.mxu0 %v980
      %4296 = vmatpush.bf16.msra.mxu0 %v979
      %4297 = vmatpush.bf16.msra.mxu0 %v978
      %4298 = vmatpush.bf16.msra.mxu0 %v977
      %4299 = vmatmul.bf16.gmra.mxu0 %v4261
      %v4300 = vpop.f32.mrf.mxu0
      %v4301 = vadd.f32 %v4287, %v4300
      %v4302 = vpop.f32.mrf.mxu0
      %v4303 = vadd.f32 %v4289, %v4302
      %4304 = vdwg.mxu0
      %4305 = vmatpush.bf16.msra.mxu0 %v992
      %4306 = vmatpush.bf16.msra.mxu0 %v991
      %4307 = vmatpush.bf16.msra.mxu0 %v990
      %4308 = vmatpush.bf16.msra.mxu0 %v989
      %4309 = vmatpush.bf16.msra.mxu0 %v988
      %4310 = vmatpush.bf16.msra.mxu0 %v987
      %4311 = vmatpush.bf16.msra.mxu0 %v986
      %4312 = vmatpush.bf16.msra.mxu0 %v985
      %4313 = vmatmul.bf16.gmra.mxu0 %v4262
      %v4314 = vpop.f32.mrf.mxu0
      %v4315 = vadd.f32 %v4301, %v4314
      %v4316 = vpop.f32.mrf.mxu0
      %v4317 = vadd.f32 %v4303, %v4316
      %4318 = vdwg.mxu0
      %v4319 = vadd.f32 %v4039, %v4315
      %v4320 = vadd.f32 %v4040, %v4317
      %v4321 = vxor.u32 %v4319, 2147483648
      %v4322 = vxor.u32 %v4320, 2147483648
      %v4323 = vmul.f32 %v4321, 1.442695
      %v4324 = vpow.pop %v4323
      %v4325 = vmul.f32 %v4322, 1.442695
      %v4326 = vpow.pop %v4325
      %v4327 = vadd.f32 %v4324, 1.0
      %v4328 = vadd.f32 %v4326, 1.0
      %v4329 = vrcp.pop %v4327
      %v4330 = vmul.f32 %v4327, %v4329
      %v4331 = vsub.f32 1.0, %v4330
      %v4332 = vmul.f32 %v4329, %v4331
      %v4333 = vadd.f32 %v4329, %v4332
      %vm4334 = vweird.f32 %v4327
      %vm4335 = vweird.f32 %v4329
      %vm4336 = vmor %vm4334, %vm4335
      %v4337 = vsel %vm4336, %v4329, %v4333
      %v4338 = vand.u32 2147483647, %v4327
      %vm4339 = vcmp.eq.f32.partialorder %v4338, 8.507059e+37
      %v4340 = vand.u32 %v4327, 2147483648
      %v4341 = vor.u32 1.1754944e-38, %v4340
      %v4342 = vsel %vm4339, %v4341, %v4337
      %v4343 = vmul.f32 1.0, %v4342
      %v4344 = vrcp.pop %v4328
      %v4345 = vmul.f32 %v4328, %v4344
      %v4346 = vsub.f32 1.0, %v4345
      %v4347 = vmul.f32 %v4344, %v4346
      %v4348 = vadd.f32 %v4344, %v4347
      %vm4349 = vweird.f32 %v4328
      %vm4350 = vweird.f32 %v4344
      %vm4351 = vmor %vm4349, %vm4350
      %v4352 = vsel %vm4351, %v4344, %v4348
      %v4353 = vand.u32 2147483647, %v4328
      %vm4354 = vcmp.eq.f32.partialorder %v4353, 8.507059e+37
      %v4355 = vand.u32 %v4328, 2147483648
      %v4356 = vor.u32 1.1754944e-38, %v4355
      %v4357 = vsel %vm4354, %v4356, %v4352
      %v4358 = vmul.f32 1.0, %v4357
      %v4359 = vmul.f32 %v4343, %v4028
      %v4360 = vmul.f32 %v4358, %v4030
      %v4361 = vpack.c.bf16 %v4360, %v4359
      %4362 = vrot.lane.b32.xlu0 %v4046, 16
      %v4363 = vpop.permute.xlu0 %4362
      %v4365 = vsel %vm517, %v4363, 0
      %4367 = vmatpush.bf16.msra.mxu0 0
      %4368 = vmatpush.bf16.msra.mxu0 0
      %4369 = vmatpush.bf16.msra.mxu0 0
      %4370 = vmatpush.bf16.msra.mxu0 0
      %4371 = vmatpush.bf16.msra.mxu0 0
      %4372 = vmatpush.bf16.msra.mxu0 0
      %4373 = vmatpush.bf16.msra.mxu0 0
      %4374 = vmatpush.bf16.msra.mxu0 %v4361
      %4375 = vmatmul.bf16.gmra.mxu0 %v4365
      %v4376 = vpop.f32.mrf.mxu0
      %v4377 = vadd.f32 0.0, %v4376
      %v4378 = vpop.f32.mrf.mxu0
      %v4379 = vadd.f32 0.0, %v4378
      %4380 = vdwg.mxu0
      %v4381 = vpack.c.bf16 %v4379, %v4377
      %v4383 = vsel %vm576, %v4381, 0
      %4385 = vmatpush.bf16.msra.mxu0 0
      %4386 = vmatpush.bf16.msra.mxu0 0
      %4387 = vmatpush.bf16.msra.mxu0 0
      %4388 = vmatpush.bf16.msra.mxu0 0
      %4389 = vmatpush.bf16.msra.mxu0 0
      %4390 = vmatpush.bf16.msra.mxu0 0
      %4391 = vmatpush.bf16.msra.mxu0 %v1158
      %4392 = vmatpush.bf16.msra.mxu0 %v1156
      %4393 = vmatmul.bf16.gmra.mxu0 %v4383
      %v4394 = vpop.f32.mrf.mxu0
      %v4395 = vadd.f32 0.0, %v4394
      %v4396 = vpop.f32.mrf.mxu0
      %v4397 = vadd.f32 0.0, %v4396
      %4398 = vdwg.mxu0
      %4399 = vmatpush.bf16.msra.mxu0 0
      %4400 = vmatpush.bf16.msra.mxu0 0
      %4401 = vmatpush.bf16.msra.mxu0 0
      %4402 = vmatpush.bf16.msra.mxu0 0
      %4403 = vmatpush.bf16.msra.mxu0 0
      %4404 = vmatpush.bf16.msra.mxu0 0
      %4405 = vmatpush.bf16.msra.mxu0 %v1159
      %4406 = vmatpush.bf16.msra.mxu0 %v1157
      %4407 = vmatmul.bf16.gmra.mxu0 %v4383
      %v4408 = vpop.f32.mrf.mxu0
      %v4409 = vadd.f32 0.0, %v4408
      %v4410 = vpop.f32.mrf.mxu0
      %v4411 = vadd.f32 0.0, %v4410
      %4412 = vdwg.mxu0
      %v4414 = vsel %vm576, %v4361, 0
      %4416 = vmatpush.bf16.msra.mxu0 0
      %4417 = vmatpush.bf16.msra.mxu0 0
      %4418 = vmatpush.bf16.msra.mxu0 0
      %4419 = vmatpush.bf16.msra.mxu0 0
      %4420 = vmatpush.bf16.msra.mxu0 0
      %4421 = vmatpush.bf16.msra.mxu0 0
      %4422 = vmatpush.bf16.msra.mxu0 %v1209
      %4423 = vmatpush.bf16.msra.mxu0 %v1207
      %4424 = vmatmul.bf16.gmra.mxu0 %v4414
      %v4425 = vpop.f32.mrf.mxu0
      %v4426 = vadd.f32 %v4395, %v4425
      %v4427 = vpop.f32.mrf.mxu0
      %v4428 = vadd.f32 %v4397, %v4427
      %4429 = vdwg.mxu0
      %4430 = vmatpush.bf16.msra.mxu0 0
      %4431 = vmatpush.bf16.msra.mxu0 0
      %4432 = vmatpush.bf16.msra.mxu0 0
      %4433 = vmatpush.bf16.msra.mxu0 0
      %4434 = vmatpush.bf16.msra.mxu0 0
      %4435 = vmatpush.bf16.msra.mxu0 0
      %4436 = vmatpush.bf16.msra.mxu0 %v1210
      %4437 = vmatpush.bf16.msra.mxu0 %v1208
      %4438 = vmatmul.bf16.gmra.mxu0 %v4414
      %v4439 = vpop.f32.mrf.mxu0
      %v4440 = vadd.f32 %v4409, %v4439
      %v4441 = vpop.f32.mrf.mxu0
      %v4442 = vadd.f32 %v4411, %v4441
      %4443 = vdwg.mxu0
      %4444 = vrot.lane.b32.xlu0 %v4191, 120
      %v4445 = vpop.permute.xlu0 %4444
      %v4447 = vsel %vm748, %v4445, 0
      %4449 = vmatpush.bf16.msra.mxu0 0
      %4450 = vmatpush.bf16.msra.mxu0 0
      %4451 = vmatpush.bf16.msra.mxu0 0
      %4452 = vmatpush.bf16.msra.mxu0 0
      %4453 = vmatpush.bf16.msra.mxu0 0
      %4454 = vmatpush.bf16.msra.mxu0 0
      %4455 = vmatpush.bf16.msra.mxu0 0
      %4456 = vmatpush.bf16.msra.mxu0 %v1257
      %4457 = vmatmul.bf16.gmra.mxu0 %v4447
      %v4458 = vpop.f32.mrf.mxu0
      %v4459 = vadd.f32 0.0, %v4458
      %v4460 = vpop.f32.mrf.mxu0
      %v4461 = vadd.f32 0.0, %v4460
      %4462 = vdwg.mxu0
      %4463 = vmatpush.bf16.msra.mxu0 0
      %4464 = vmatpush.bf16.msra.mxu0 0
      %4465 = vmatpush.bf16.msra.mxu0 0
      %4466 = vmatpush.bf16.msra.mxu0 0
      %4467 = vmatpush.bf16.msra.mxu0 0
      %4468 = vmatpush.bf16.msra.mxu0 0
      %4469 = vmatpush.bf16.msra.mxu0 0
      %4470 = vmatpush.bf16.msra.mxu0 %v1260
      %4471 = vmatmul.bf16.gmra.mxu0 %v4447
      %v4472 = vpop.f32.mrf.mxu0
      %v4473 = vadd.f32 0.0, %v4472
      %v4474 = vpop.f32.mrf.mxu0
      %v4475 = vadd.f32 0.0, %v4474
      %4476 = vdwg.mxu0
      %v4477 = vmul.f32 %v4426, %v4459
      %v4478 = vmul.f32 %v4440, %v4473
      %v4479 = vmul.f32 %v4428, %v4461
      %v4480 = vmul.f32 %v4442, %v4475
      %v4481 = vpack.c.bf16 %v4479, %v4477
      %v4482 = vpack.c.bf16 %v4480, %v4478
      %4483 = vmatpush.bf16.msra.mxu0 %v1367
      %4484 = vmatpush.bf16.msra.mxu0 %v1366
      %4485 = vmatpush.bf16.msra.mxu0 %v1365
      %4486 = vmatpush.bf16.msra.mxu0 %v1364
      %4487 = vmatpush.bf16.msra.mxu0 %v1363
      %4488 = vmatpush.bf16.msra.mxu0 %v1362
      %4489 = vmatpush.bf16.msra.mxu0 %v1361
      %4490 = vmatpush.bf16.msra.mxu0 %v1360
      %4491 = vmatmul.bf16.gmra.mxu0 %v4481
      %v4492 = vpop.f32.mrf.mxu0
      %v4493 = vadd.f32 0.0, %v4492
      %v4494 = vpop.f32.mrf.mxu0
      %v4495 = vadd.f32 0.0, %v4494
      %4496 = vdwg.mxu0
      %4497 = vmatpush.bf16.msra.mxu0 %v1375
      %4498 = vmatpush.bf16.msra.mxu0 %v1374
      %4499 = vmatpush.bf16.msra.mxu0 %v1373
      %4500 = vmatpush.bf16.msra.mxu0 %v1372
      %4501 = vmatpush.bf16.msra.mxu0 %v1371
      %4502 = vmatpush.bf16.msra.mxu0 %v1370
      %4503 = vmatpush.bf16.msra.mxu0 %v1369
      %4504 = vmatpush.bf16.msra.mxu0 %v1368
      %4505 = vmatmul.bf16.gmra.mxu0 %v4482
      %v4506 = vpop.f32.mrf.mxu0
      %v4507 = vadd.f32 %v4493, %v4506
      %v4508 = vpop.f32.mrf.mxu0
      %v4509 = vadd.f32 %v4495, %v4508
      %4510 = vdwg.mxu0
      %4513 = vrot.lane.b32.xlu0 %v4507, 64
      %v4514 = vpop.permute.xlu0 %4513
      %4515 = vrot.lane.b32.xlu0 %v4509, 64
      %v4516 = vpop.permute.xlu0 %4515
      %v4519 = vadd.f32 %v4039, %v4514
      %v4520 = vadd.f32 %v4040, %v4516
      %v4521 = vtanh.pop %v4519
      %v4522 = vtanh.pop %v4520
      %v4523 = vmul.f32 %v4343, %v4023
      %v4524 = vmul.f32 %v4358, %v4024
      %v4525 = vsub.f32 1.0, %v4343
      %v4526 = vsub.f32 1.0, %v4358
      %4529 = vrot.lane.b32.xlu0 %v4521, 96
      %v4530 = vpop.permute.xlu0 %4529
      %4531 = vrot.lane.b32.xlu0 %v4522, 96
      %v4532 = vpop.permute.xlu0 %4531
      %v4535 = vmul.f32 %v4525, %v4530
      %v4536 = vmul.f32 %v4526, %v4532
      %v4537 = vadd.f32 %v4523, %v4535
      %v4538 = vadd.f32 %v4524, %v4536
      %4541 = vrot.lane.b32.xlu0 %v4537, 96
      %v4542 = vpop.permute.xlu0 %4541
      %4543 = vrot.lane.b32.xlu0 %v4538, 96
      %v4544 = vpop.permute.xlu0 %4543
      %s4547 = scalar_lea.vmem %s368, 96
      %4548 = vst.msk [vmem:[%s4547] sm:$0xff] %vm576, %v4542
      %4549 = vst.msk [vmem:[%s4547 + $0x8] sm:$0xff] %vm576, %v4544
      %s4550 = scalar_lea.vmem %s357, 112
      %v4551 = vld [vmem:[%s4550] sm:$0xff]
      %v4552 = vld [vmem:[%s4550 + $0x8] sm:$0xff]
      %v4553 = vunpack.c.l.bf16 %v4551
      %v4554 = vunpack.c.l.bf16 %v4552
      %v4555 = vpack.c.bf16 %v4538, %v4537
      %v4558 = vunpack.c.l.b16 %v4551
      %v4559 = vunpack.c.l.b16 %v4552
      %v4560 = vpack.c.b16 %v4559, %v4558
      %4561 = vrot.lane.b32.xlu0 %v4560, 32
      %v4562 = vpop.permute.xlu0 %4561
      %4564 = vrot.lane.b32.xlu0 %v4555, 96
      %v4565 = vpop.permute.xlu0 %4564
      %v4568 = vsel %vm517, %v4562, 0
      %4570 = vmatpush.bf16.msra.mxu0 0
      %4571 = vmatpush.bf16.msra.mxu0 0
      %4572 = vmatpush.bf16.msra.mxu0 0
      %4573 = vmatpush.bf16.msra.mxu0 0
      %4574 = vmatpush.bf16.msra.mxu0 0
      %4575 = vmatpush.bf16.msra.mxu0 0
      %4576 = vmatpush.bf16.msra.mxu0 0
      %4577 = vmatpush.bf16.msra.mxu0 %v4565
      %4578 = vmatmul.bf16.gmra.mxu0 %v4568
      %v4579 = vpop.f32.mrf.mxu0
      %v4580 = vadd.f32 0.0, %v4579
      %v4581 = vpop.f32.mrf.mxu0
      %v4582 = vadd.f32 0.0, %v4581
      %4583 = vdwg.mxu0
      %v4584 = vpack.c.bf16 %v4582, %v4580
      %v4586 = vsel %vm576, %v4584, 0
      %4588 = vmatpush.bf16.msra.mxu0 0
      %4589 = vmatpush.bf16.msra.mxu0 0
      %4590 = vmatpush.bf16.msra.mxu0 0
      %4591 = vmatpush.bf16.msra.mxu0 0
      %4592 = vmatpush.bf16.msra.mxu0 0
      %4593 = vmatpush.bf16.msra.mxu0 0
      %4594 = vmatpush.bf16.msra.mxu0 %v564
      %4595 = vmatpush.bf16.msra.mxu0 %v560
      %4596 = vmatmul.bf16.gmra.mxu0 %v4586
      %v4597 = vpop.f32.mrf.mxu0
      %v4598 = vadd.f32 0.0, %v4597
      %v4599 = vpop.f32.mrf.mxu0
      %v4600 = vadd.f32 0.0, %v4599
      %4601 = vdwg.mxu0
      %4602 = vmatpush.bf16.msra.mxu0 0
      %4603 = vmatpush.bf16.msra.mxu0 0
      %4604 = vmatpush.bf16.msra.mxu0 0
      %4605 = vmatpush.bf16.msra.mxu0 0
      %4606 = vmatpush.bf16.msra.mxu0 0
      %4607 = vmatpush.bf16.msra.mxu0 0
      %4608 = vmatpush.bf16.msra.mxu0 %v565
      %4609 = vmatpush.bf16.msra.mxu0 %v561
      %4610 = vmatmul.bf16.gmra.mxu0 %v4586
      %v4611 = vpop.f32.mrf.mxu0
      %v4612 = vadd.f32 0.0, %v4611
      %v4613 = vpop.f32.mrf.mxu0
      %v4614 = vadd.f32 0.0, %v4613
      %4615 = vdwg.mxu0
      %4616 = vmatpush.bf16.msra.mxu0 0
      %4617 = vmatpush.bf16.msra.mxu0 0
      %4618 = vmatpush.bf16.msra.mxu0 0
      %4619 = vmatpush.bf16.msra.mxu0 0
      %4620 = vmatpush.bf16.msra.mxu0 0
      %4621 = vmatpush.bf16.msra.mxu0 0
      %4622 = vmatpush.bf16.msra.mxu0 %v566
      %4623 = vmatpush.bf16.msra.mxu0 %v562
      %4624 = vmatmul.bf16.gmra.mxu0 %v4586
      %v4625 = vpop.f32.mrf.mxu0
      %v4626 = vadd.f32 0.0, %v4625
      %v4627 = vpop.f32.mrf.mxu0
      %v4628 = vadd.f32 0.0, %v4627
      %4629 = vdwg.mxu0
      %4630 = vmatpush.bf16.msra.mxu0 0
      %4631 = vmatpush.bf16.msra.mxu0 0
      %4632 = vmatpush.bf16.msra.mxu0 0
      %4633 = vmatpush.bf16.msra.mxu0 0
      %4634 = vmatpush.bf16.msra.mxu0 0
      %4635 = vmatpush.bf16.msra.mxu0 0
      %4636 = vmatpush.bf16.msra.mxu0 %v567
      %4637 = vmatpush.bf16.msra.mxu0 %v563
      %4638 = vmatmul.bf16.gmra.mxu0 %v4586
      %v4639 = vpop.f32.mrf.mxu0
      %v4640 = vadd.f32 0.0, %v4639
      %v4641 = vpop.f32.mrf.mxu0
      %v4642 = vadd.f32 0.0, %v4641
      %4643 = vdwg.mxu0
      %v4645 = vsel %vm576, %v4565, 0
      %4647 = vmatpush.bf16.msra.mxu0 0
      %4648 = vmatpush.bf16.msra.mxu0 0
      %4649 = vmatpush.bf16.msra.mxu0 0
      %4650 = vmatpush.bf16.msra.mxu0 0
      %4651 = vmatpush.bf16.msra.mxu0 0
      %4652 = vmatpush.bf16.msra.mxu0 0
      %4653 = vmatpush.bf16.msra.mxu0 %v664
      %4654 = vmatpush.bf16.msra.mxu0 %v660
      %4655 = vmatmul.bf16.gmra.mxu0 %v4645
      %v4656 = vpop.f32.mrf.mxu0
      %v4657 = vadd.f32 %v4598, %v4656
      %v4658 = vpop.f32.mrf.mxu0
      %v4659 = vadd.f32 %v4600, %v4658
      %4660 = vdwg.mxu0
      %4661 = vmatpush.bf16.msra.mxu0 0
      %4662 = vmatpush.bf16.msra.mxu0 0
      %4663 = vmatpush.bf16.msra.mxu0 0
      %4664 = vmatpush.bf16.msra.mxu0 0
      %4665 = vmatpush.bf16.msra.mxu0 0
      %4666 = vmatpush.bf16.msra.mxu0 0
      %4667 = vmatpush.bf16.msra.mxu0 %v665
      %4668 = vmatpush.bf16.msra.mxu0 %v661
      %4669 = vmatmul.bf16.gmra.mxu0 %v4645
      %v4670 = vpop.f32.mrf.mxu0
      %v4671 = vadd.f32 %v4612, %v4670
      %v4672 = vpop.f32.mrf.mxu0
      %v4673 = vadd.f32 %v4614, %v4672
      %4674 = vdwg.mxu0
      %4675 = vmatpush.bf16.msra.mxu0 0
      %4676 = vmatpush.bf16.msra.mxu0 0
      %4677 = vmatpush.bf16.msra.mxu0 0
      %4678 = vmatpush.bf16.msra.mxu0 0
      %4679 = vmatpush.bf16.msra.mxu0 0
      %4680 = vmatpush.bf16.msra.mxu0 0
      %4681 = vmatpush.bf16.msra.mxu0 %v666
      %4682 = vmatpush.bf16.msra.mxu0 %v662
      %4683 = vmatmul.bf16.gmra.mxu0 %v4645
      %v4684 = vpop.f32.mrf.mxu0
      %v4685 = vadd.f32 %v4626, %v4684
      %v4686 = vpop.f32.mrf.mxu0
      %v4687 = vadd.f32 %v4628, %v4686
      %4688 = vdwg.mxu0
      %4689 = vmatpush.bf16.msra.mxu0 0
      %4690 = vmatpush.bf16.msra.mxu0 0
      %4691 = vmatpush.bf16.msra.mxu0 0
      %4692 = vmatpush.bf16.msra.mxu0 0
      %4693 = vmatpush.bf16.msra.mxu0 0
      %4694 = vmatpush.bf16.msra.mxu0 0
      %4695 = vmatpush.bf16.msra.mxu0 %v667
      %4696 = vmatpush.bf16.msra.mxu0 %v663
      %4697 = vmatmul.bf16.gmra.mxu0 %v4645
      %v4698 = vpop.f32.mrf.mxu0
      %v4699 = vadd.f32 %v4640, %v4698
      %v4700 = vpop.f32.mrf.mxu0
      %v4701 = vadd.f32 %v4642, %v4700
      %4702 = vdwg.mxu0
      %v4703 = vunpack.c.h.b16 %v4551
      %v4704 = vunpack.c.h.b16 %v4552
      %v4705 = vpack.c.b16 %v4704, %v4703
      %v4707 = vsel %vm748, %v4705, 0
      %4709 = vmatpush.bf16.msra.mxu0 0
      %4710 = vmatpush.bf16.msra.mxu0 0
      %4711 = vmatpush.bf16.msra.mxu0 0
      %4712 = vmatpush.bf16.msra.mxu0 0
      %4713 = vmatpush.bf16.msra.mxu0 0
      %4714 = vmatpush.bf16.msra.mxu0 0
      %4715 = vmatpush.bf16.msra.mxu0 0
      %4716 = vmatpush.bf16.msra.mxu0 %v754
      %4717 = vmatmul.bf16.gmra.mxu0 %v4707
      %v4718 = vpop.f32.mrf.mxu0
      %v4719 = vadd.f32 0.0, %v4718
      %v4720 = vpop.f32.mrf.mxu0
      %v4721 = vadd.f32 0.0, %v4720
      %4722 = vdwg.mxu0
      %4723 = vmatpush.bf16.msra.mxu0 0
      %4724 = vmatpush.bf16.msra.mxu0 0
      %4725 = vmatpush.bf16.msra.mxu0 0
      %4726 = vmatpush.bf16.msra.mxu0 0
      %4727 = vmatpush.bf16.msra.mxu0 0
      %4728 = vmatpush.bf16.msra.mxu0 0
      %4729 = vmatpush.bf16.msra.mxu0 0
      %4730 = vmatpush.bf16.msra.mxu0 %v757
      %4731 = vmatmul.bf16.gmra.mxu0 %v4707
      %v4732 = vpop.f32.mrf.mxu0
      %v4733 = vadd.f32 0.0, %v4732
      %v4734 = vpop.f32.mrf.mxu0
      %v4735 = vadd.f32 0.0, %v4734
      %4736 = vdwg.mxu0
      %4737 = vmatpush.bf16.msra.mxu0 0
      %4738 = vmatpush.bf16.msra.mxu0 0
      %4739 = vmatpush.bf16.msra.mxu0 0
      %4740 = vmatpush.bf16.msra.mxu0 0
      %4741 = vmatpush.bf16.msra.mxu0 0
      %4742 = vmatpush.bf16.msra.mxu0 0
      %4743 = vmatpush.bf16.msra.mxu0 0
      %4744 = vmatpush.bf16.msra.mxu0 %v760
      %4745 = vmatmul.bf16.gmra.mxu0 %v4707
      %v4746 = vpop.f32.mrf.mxu0
      %v4747 = vadd.f32 0.0, %v4746
      %v4748 = vpop.f32.mrf.mxu0
      %v4749 = vadd.f32 0.0, %v4748
      %4750 = vdwg.mxu0
      %4751 = vmatpush.bf16.msra.mxu0 0
      %4752 = vmatpush.bf16.msra.mxu0 0
      %4753 = vmatpush.bf16.msra.mxu0 0
      %4754 = vmatpush.bf16.msra.mxu0 0
      %4755 = vmatpush.bf16.msra.mxu0 0
      %4756 = vmatpush.bf16.msra.mxu0 0
      %4757 = vmatpush.bf16.msra.mxu0 0
      %4758 = vmatpush.bf16.msra.mxu0 %v763
      %4759 = vmatmul.bf16.gmra.mxu0 %v4707
      %v4760 = vpop.f32.mrf.mxu0
      %v4761 = vadd.f32 0.0, %v4760
      %v4762 = vpop.f32.mrf.mxu0
      %v4763 = vadd.f32 0.0, %v4762
      %4764 = vdwg.mxu0
      %v4765 = vmul.f32 %v4657, %v4719
      %v4766 = vmul.f32 %v4671, %v4733
      %v4767 = vmul.f32 %v4685, %v4747
      %v4768 = vmul.f32 %v4699, %v4761
      %v4769 = vmul.f32 %v4659, %v4721
      %v4770 = vmul.f32 %v4673, %v4735
      %v4771 = vmul.f32 %v4687, %v4749
      %v4772 = vmul.f32 %v4701, %v4763
      %v4773 = vpack.c.bf16 %v4769, %v4765
      %v4774 = vpack.c.bf16 %v4770, %v4766
      %v4775 = vpack.c.bf16 %v4771, %v4767
      %v4776 = vpack.c.bf16 %v4772, %v4768
      %4777 = vmatpush.bf16.msra.mxu0 %v968
      %4778 = vmatpush.bf16.msra.mxu0 %v967
      %4779 = vmatpush.bf16.msra.mxu0 %v966
      %4780 = vmatpush.bf16.msra.mxu0 %v965
      %4781 = vmatpush.bf16.msra.mxu0 %v964
      %4782 = vmatpush.bf16.msra.mxu0 %v963
      %4783 = vmatpush.bf16.msra.mxu0 %v962
      %4784 = vmatpush.bf16.msra.mxu0 %v961
      %4785 = vmatmul.bf16.gmra.mxu0 %v4773
      %v4786 = vpop.f32.mrf.mxu0
      %v4787 = vadd.f32 0.0, %v4786
      %v4788 = vpop.f32.mrf.mxu0
      %v4789 = vadd.f32 0.0, %v4788
      %4790 = vdwg.mxu0
      %4791 = vmatpush.bf16.msra.mxu0 %v976
      %4792 = vmatpush.bf16.msra.mxu0 %v975
      %4793 = vmatpush.bf16.msra.mxu0 %v974
      %4794 = vmatpush.bf16.msra.mxu0 %v973
      %4795 = vmatpush.bf16.msra.mxu0 %v972
      %4796 = vmatpush.bf16.msra.mxu0 %v971
      %4797 = vmatpush.bf16.msra.mxu0 %v970
      %4798 = vmatpush.bf16.msra.mxu0 %v969
      %4799 = vmatmul.bf16.gmra.mxu0 %v4774
      %v4800 = vpop.f32.mrf.mxu0
      %v4801 = vadd.f32 %v4787, %v4800
      %v4802 = vpop.f32.mrf.mxu0
      %v4803 = vadd.f32 %v4789, %v4802
      %4804 = vdwg.mxu0
      %4805 = vmatpush.bf16.msra.mxu0 %v984
      %4806 = vmatpush.bf16.msra.mxu0 %v983
      %4807 = vmatpush.bf16.msra.mxu0 %v982
      %4808 = vmatpush.bf16.msra.mxu0 %v981
      %4809 = vmatpush.bf16.msra.mxu0 %v980
      %4810 = vmatpush.bf16.msra.mxu0 %v979
      %4811 = vmatpush.bf16.msra.mxu0 %v978
      %4812 = vmatpush.bf16.msra.mxu0 %v977
      %4813 = vmatmul.bf16.gmra.mxu0 %v4775
      %v4814 = vpop.f32.mrf.mxu0
      %v4815 = vadd.f32 %v4801, %v4814
      %v4816 = vpop.f32.mrf.mxu0
      %v4817 = vadd.f32 %v4803, %v4816
      %4818 = vdwg.mxu0
      %4819 = vmatpush.bf16.msra.mxu0 %v992
      %4820 = vmatpush.bf16.msra.mxu0 %v991
      %4821 = vmatpush.bf16.msra.mxu0 %v990
      %4822 = vmatpush.bf16.msra.mxu0 %v989
      %4823 = vmatpush.bf16.msra.mxu0 %v988
      %4824 = vmatpush.bf16.msra.mxu0 %v987
      %4825 = vmatpush.bf16.msra.mxu0 %v986
      %4826 = vmatpush.bf16.msra.mxu0 %v985
      %4827 = vmatmul.bf16.gmra.mxu0 %v4776
      %v4828 = vpop.f32.mrf.mxu0
      %v4829 = vadd.f32 %v4815, %v4828
      %v4830 = vpop.f32.mrf.mxu0
      %v4831 = vadd.f32 %v4817, %v4830
      %4832 = vdwg.mxu0
      %v4833 = vadd.f32 %v4553, %v4829
      %v4834 = vadd.f32 %v4554, %v4831
      %v4835 = vxor.u32 %v4833, 2147483648
      %v4836 = vxor.u32 %v4834, 2147483648
      %v4837 = vmul.f32 %v4835, 1.442695
      %v4838 = vpow.pop %v4837
      %v4839 = vmul.f32 %v4836, 1.442695
      %v4840 = vpow.pop %v4839
      %v4841 = vadd.f32 %v4838, 1.0
      %v4842 = vadd.f32 %v4840, 1.0
      %v4843 = vrcp.pop %v4841
      %v4844 = vmul.f32 %v4841, %v4843
      %v4845 = vsub.f32 1.0, %v4844
      %v4846 = vmul.f32 %v4843, %v4845
      %v4847 = vadd.f32 %v4843, %v4846
      %vm4848 = vweird.f32 %v4841
      %vm4849 = vweird.f32 %v4843
      %vm4850 = vmor %vm4848, %vm4849
      %v4851 = vsel %vm4850, %v4843, %v4847
      %v4852 = vand.u32 2147483647, %v4841
      %vm4853 = vcmp.eq.f32.partialorder %v4852, 8.507059e+37
      %v4854 = vand.u32 %v4841, 2147483648
      %v4855 = vor.u32 1.1754944e-38, %v4854
      %v4856 = vsel %vm4853, %v4855, %v4851
      %v4857 = vmul.f32 1.0, %v4856
      %v4858 = vrcp.pop %v4842
      %v4859 = vmul.f32 %v4842, %v4858
      %v4860 = vsub.f32 1.0, %v4859
      %v4861 = vmul.f32 %v4858, %v4860
      %v4862 = vadd.f32 %v4858, %v4861
      %vm4863 = vweird.f32 %v4842
      %vm4864 = vweird.f32 %v4858
      %vm4865 = vmor %vm4863, %vm4864
      %v4866 = vsel %vm4865, %v4858, %v4862
      %v4867 = vand.u32 2147483647, %v4842
      %vm4868 = vcmp.eq.f32.partialorder %v4867, 8.507059e+37
      %v4869 = vand.u32 %v4842, 2147483648
      %v4870 = vor.u32 1.1754944e-38, %v4869
      %v4871 = vsel %vm4868, %v4870, %v4866
      %v4872 = vmul.f32 1.0, %v4871
      %v4873 = vmul.f32 %v4857, %v4542
      %v4874 = vmul.f32 %v4872, %v4544
      %v4875 = vpack.c.bf16 %v4874, %v4873
      %4876 = vrot.lane.b32.xlu0 %v4560, 16
      %v4877 = vpop.permute.xlu0 %4876
      %v4879 = vsel %vm517, %v4877, 0
      %4881 = vmatpush.bf16.msra.mxu0 0
      %4882 = vmatpush.bf16.msra.mxu0 0
      %4883 = vmatpush.bf16.msra.mxu0 0
      %4884 = vmatpush.bf16.msra.mxu0 0
      %4885 = vmatpush.bf16.msra.mxu0 0
      %4886 = vmatpush.bf16.msra.mxu0 0
      %4887 = vmatpush.bf16.msra.mxu0 0
      %4888 = vmatpush.bf16.msra.mxu0 %v4875
      %4889 = vmatmul.bf16.gmra.mxu0 %v4879
      %v4890 = vpop.f32.mrf.mxu0
      %v4891 = vadd.f32 0.0, %v4890
      %v4892 = vpop.f32.mrf.mxu0
      %v4893 = vadd.f32 0.0, %v4892
      %4894 = vdwg.mxu0
      %v4895 = vpack.c.bf16 %v4893, %v4891
      %v4897 = vsel %vm576, %v4895, 0
      %4899 = vmatpush.bf16.msra.mxu0 0
      %4900 = vmatpush.bf16.msra.mxu0 0
      %4901 = vmatpush.bf16.msra.mxu0 0
      %4902 = vmatpush.bf16.msra.mxu0 0
      %4903 = vmatpush.bf16.msra.mxu0 0
      %4904 = vmatpush.bf16.msra.mxu0 0
      %4905 = vmatpush.bf16.msra.mxu0 %v1158
      %4906 = vmatpush.bf16.msra.mxu0 %v1156
      %4907 = vmatmul.bf16.gmra.mxu0 %v4897
      %v4908 = vpop.f32.mrf.mxu0
      %v4909 = vadd.f32 0.0, %v4908
      %v4910 = vpop.f32.mrf.mxu0
      %v4911 = vadd.f32 0.0, %v4910
      %4912 = vdwg.mxu0
      %4913 = vmatpush.bf16.msra.mxu0 0
      %4914 = vmatpush.bf16.msra.mxu0 0
      %4915 = vmatpush.bf16.msra.mxu0 0
      %4916 = vmatpush.bf16.msra.mxu0 0
      %4917 = vmatpush.bf16.msra.mxu0 0
      %4918 = vmatpush.bf16.msra.mxu0 0
      %4919 = vmatpush.bf16.msra.mxu0 %v1159
      %4920 = vmatpush.bf16.msra.mxu0 %v1157
      %4921 = vmatmul.bf16.gmra.mxu0 %v4897
      %v4922 = vpop.f32.mrf.mxu0
      %v4923 = vadd.f32 0.0, %v4922
      %v4924 = vpop.f32.mrf.mxu0
      %v4925 = vadd.f32 0.0, %v4924
      %4926 = vdwg.mxu0
      %v4928 = vsel %vm576, %v4875, 0
      %4930 = vmatpush.bf16.msra.mxu0 0
      %4931 = vmatpush.bf16.msra.mxu0 0
      %4932 = vmatpush.bf16.msra.mxu0 0
      %4933 = vmatpush.bf16.msra.mxu0 0
      %4934 = vmatpush.bf16.msra.mxu0 0
      %4935 = vmatpush.bf16.msra.mxu0 0
      %4936 = vmatpush.bf16.msra.mxu0 %v1209
      %4937 = vmatpush.bf16.msra.mxu0 %v1207
      %4938 = vmatmul.bf16.gmra.mxu0 %v4928
      %v4939 = vpop.f32.mrf.mxu0
      %v4940 = vadd.f32 %v4909, %v4939
      %v4941 = vpop.f32.mrf.mxu0
      %v4942 = vadd.f32 %v4911, %v4941
      %4943 = vdwg.mxu0
      %4944 = vmatpush.bf16.msra.mxu0 0
      %4945 = vmatpush.bf16.msra.mxu0 0
      %4946 = vmatpush.bf16.msra.mxu0 0
      %4947 = vmatpush.bf16.msra.mxu0 0
      %4948 = vmatpush.bf16.msra.mxu0 0
      %4949 = vmatpush.bf16.msra.mxu0 0
      %4950 = vmatpush.bf16.msra.mxu0 %v1210
      %4951 = vmatpush.bf16.msra.mxu0 %v1208
      %4952 = vmatmul.bf16.gmra.mxu0 %v4928
      %v4953 = vpop.f32.mrf.mxu0
      %v4954 = vadd.f32 %v4923, %v4953
      %v4955 = vpop.f32.mrf.mxu0
      %v4956 = vadd.f32 %v4925, %v4955
      %4957 = vdwg.mxu0
      %4958 = vrot.lane.b32.xlu0 %v4705, 120
      %v4959 = vpop.permute.xlu0 %4958
      %v4961 = vsel %vm748, %v4959, 0
      %4963 = vmatpush.bf16.msra.mxu0 0
      %4964 = vmatpush.bf16.msra.mxu0 0
      %4965 = vmatpush.bf16.msra.mxu0 0
      %4966 = vmatpush.bf16.msra.mxu0 0
      %4967 = vmatpush.bf16.msra.mxu0 0
      %4968 = vmatpush.bf16.msra.mxu0 0
      %4969 = vmatpush.bf16.msra.mxu0 0
      %4970 = vmatpush.bf16.msra.mxu0 %v1257
      %4971 = vmatmul.bf16.gmra.mxu0 %v4961
      %v4972 = vpop.f32.mrf.mxu0
      %v4973 = vadd.f32 0.0, %v4972
      %v4974 = vpop.f32.mrf.mxu0
      %v4975 = vadd.f32 0.0, %v4974
      %4976 = vdwg.mxu0
      %4977 = vmatpush.bf16.msra.mxu0 0
      %4978 = vmatpush.bf16.msra.mxu0 0
      %4979 = vmatpush.bf16.msra.mxu0 0
      %4980 = vmatpush.bf16.msra.mxu0 0
      %4981 = vmatpush.bf16.msra.mxu0 0
      %4982 = vmatpush.bf16.msra.mxu0 0
      %4983 = vmatpush.bf16.msra.mxu0 0
      %4984 = vmatpush.bf16.msra.mxu0 %v1260
      %4985 = vmatmul.bf16.gmra.mxu0 %v4961
      %v4986 = vpop.f32.mrf.mxu0
      %v4987 = vadd.f32 0.0, %v4986
      %v4988 = vpop.f32.mrf.mxu0
      %v4989 = vadd.f32 0.0, %v4988
      %4990 = vdwg.mxu0
      %v4991 = vmul.f32 %v4940, %v4973
      %v4992 = vmul.f32 %v4954, %v4987
      %v4993 = vmul.f32 %v4942, %v4975
      %v4994 = vmul.f32 %v4956, %v4989
      %v4995 = vpack.c.bf16 %v4993, %v4991
      %v4996 = vpack.c.bf16 %v4994, %v4992
      %4997 = vmatpush.bf16.msra.mxu0 %v1367
      %4998 = vmatpush.bf16.msra.mxu0 %v1366
      %4999 = vmatpush.bf16.msra.mxu0 %v1365
      %5000 = vmatpush.bf16.msra.mxu0 %v1364
      %5001 = vmatpush.bf16.msra.mxu0 %v1363
      %5002 = vmatpush.bf16.msra.mxu0 %v1362
      %5003 = vmatpush.bf16.msra.mxu0 %v1361
      %5004 = vmatpush.bf16.msra.mxu0 %v1360
      %5005 = vmatmul.bf16.gmra.mxu0 %v4995
      %v5006 = vpop.f32.mrf.mxu0
      %v5007 = vadd.f32 0.0, %v5006
      %v5008 = vpop.f32.mrf.mxu0
      %v5009 = vadd.f32 0.0, %v5008
      %5010 = vdwg.mxu0
      %5011 = vmatpush.bf16.msra.mxu0 %v1375
      %5012 = vmatpush.bf16.msra.mxu0 %v1374
      %5013 = vmatpush.bf16.msra.mxu0 %v1373
      %5014 = vmatpush.bf16.msra.mxu0 %v1372
      %5015 = vmatpush.bf16.msra.mxu0 %v1371
      %5016 = vmatpush.bf16.msra.mxu0 %v1370
      %5017 = vmatpush.bf16.msra.mxu0 %v1369
      %5018 = vmatpush.bf16.msra.mxu0 %v1368
      %5019 = vmatmul.bf16.gmra.mxu0 %v4996
      %v5020 = vpop.f32.mrf.mxu0
      %v5021 = vadd.f32 %v5007, %v5020
      %v5022 = vpop.f32.mrf.mxu0
      %v5023 = vadd.f32 %v5009, %v5022
      %5024 = vdwg.mxu0
      %5027 = vrot.lane.b32.xlu0 %v5021, 64
      %v5028 = vpop.permute.xlu0 %5027
      %5029 = vrot.lane.b32.xlu0 %v5023, 64
      %v5030 = vpop.permute.xlu0 %5029
      %v5033 = vadd.f32 %v4553, %v5028
      %v5034 = vadd.f32 %v4554, %v5030
      %v5035 = vtanh.pop %v5033
      %v5036 = vtanh.pop %v5034
      %v5037 = vmul.f32 %v4857, %v4537
      %v5038 = vmul.f32 %v4872, %v4538
      %v5039 = vsub.f32 1.0, %v4857
      %v5040 = vsub.f32 1.0, %v4872
      %5043 = vrot.lane.b32.xlu0 %v5035, 96
      %v5044 = vpop.permute.xlu0 %5043
      %5045 = vrot.lane.b32.xlu0 %v5036, 96
      %v5046 = vpop.permute.xlu0 %5045
      %v5049 = vmul.f32 %v5039, %v5044
      %v5050 = vmul.f32 %v5040, %v5046
      %v5051 = vadd.f32 %v5037, %v5049
      %v5052 = vadd.f32 %v5038, %v5050
      %5055 = vrot.lane.b32.xlu0 %v5051, 96
      %v5056 = vpop.permute.xlu0 %5055
      %5057 = vrot.lane.b32.xlu0 %v5052, 96
      %v5058 = vpop.permute.xlu0 %5057
      %s5061 = scalar_lea.vmem %s368, 112
      %5062 = vst.msk [vmem:[%s5061] sm:$0xff] %vm576, %v5056
      %5063 = vst.msk [vmem:[%s5061 + $0x8] sm:$0xff] %vm576, %v5058
      %5064 = vst.msk [vmem:[#allocation2] sm:$0xff] %vm576, %v5056
      %5065 = vst.msk [vmem:[#allocation2 + $0x8] sm:$0xff] %vm576, %v5058
      %s5066 = smul.u32 8, %s24
      %p5067 = scmp.lt.s32.totalorder %s23, 1
      %s5068 = scalar_select %p5067, %s23, 1
      %p5069 = scmp.lt.s32.totalorder %s5066, 7
      %s5070 = scalar_select %p5069, %s5066, 7
      %s5071 = smul.addr %s5070, 2
      %s5072 = smul.addr %s5068, 16
      %s5073 = sadd.s32 %s5071, %s5072
      %s5074 = smul.addr %s5073, 8
      %s5075 = scalar_lea.vmem %s8, %s5074
      // Predicated region
      $region57: #{pm_encoder_forward.2} parent=51 // pred_check
        %p5076 = pneg %p231
      $region58: #{pm_encoder_forward.2} parent=51 // pred_check_branch
        %5078 = sbr.rel (%p5076) target = $region60
      $region59: #{pm_encoder_forward.2} parent=51 // pred_region
        %s5079 = smul.u32 8, %s24
      $region60: #{pm_encoder_forward.2} parent=51 // pred_fallthru
        _
    $region52: #{pm_encoder_forward.2} parent=5 // pred_fallthru
      _
    %p5080 = scmp.le.s32.totalorder 2, %s14
    // Predicated region
    $region61: #{pm_encoder_forward.2} parent=5 // pred_check
      %p5081 = pneg %p5080
    $region62: #{pm_encoder_forward.2} parent=5 // pred_check_branch
      %5083 = sbr.rel (%p5081) target = $region64
    $region63: #{pm_encoder_forward.2} parent=5 // pred_region
      %s5084 = ssub.s32 %s14, 2
      // Predicated region
      $region65: #{pm_encoder_forward.2} parent=63 // pred_check
        %p5085 = pneg %p237
      $region66: #{pm_encoder_forward.2} parent=63 // pred_check_branch
        %5087 = sbr.rel (%p5085) target = $region68
      $region67: #{pm_encoder_forward.2} parent=63 // pred_region
        %s5088 = smul.u32 8, %s26
        %p5089 = scmp.lt.s32.totalorder %s25, 1
        %s5090 = scalar_select %p5089, %s25, 1
        %p5091 = scmp.lt.s32.totalorder %s5088, 7
        %s5092 = scalar_select %p5091, %s5088, 7
        %s5093 = smul.addr %s5092, 2
        %s5094 = smul.addr %s5090, 16
        %s5095 = sadd.s32 %s5093, %s5094
        %s5096 = smul.addr %s5095, 8
        %s5097 = scalar_lea.vmem %s8, %s5096
      $region68: #{pm_encoder_forward.2} parent=63 // pred_fallthru
        _
    $region64: #{pm_encoder_forward.2} parent=5 // pred_fallthru
      _
  $region6: #{pm_encoder_forward.2} parent=0 // loop_footer
    %s18 = sadd.s32 1, %s14
  $region7: #{pm_encoder_forward.2} parent=0 // loop_footer_branch
    %13 = sbr.rel target = $region3
  $region8: #{pm_encoder_forward.2} parent=0 // loop_exit
    _

</llo_original>
